<compile_context>
chip_gen: v7x
topology: tpu7x:2x2x1
jax: 0.10.0
libtpu: 0.0.40
codegen_flags: <defaults>
</compile_context>

<pallas_src>
import functools

import numpy as np
import jax
import jax.numpy as jnp
from jax.experimental import pallas as pl


# ----------------------------------------------------------------------------
# Static layout of the packed f32 constant slab (one DMA). Offsets depend only
# on the fixed channel sizes, so pack_params() and the kernel agree by
# construction.
# ----------------------------------------------------------------------------
_CONST_ENTRIES = (
    ("wc1", 27, 32),    # conv1 weight, rows=(ky,kx,cin), cols=cout
    ("wdw1", 9, 32),    # depthwise weights, rows=k=ky*3+kx, cols=channel
    ("wpw1", 32, 64),   # 1x1 weights, (cin, cout)
    ("wdw2", 9, 64),
    ("wpw2", 64, 32),
    ("wdw3", 9, 32),
    ("wpw3", 32, 16),
    ("w4", 7, 16),      # final 1x1 kept as (cout, cin) for the channels-major dot
    ("bc1", 1, 32), ("bdw1", 1, 32), ("bpw1", 1, 64), ("bdw2", 1, 64),
    ("bpw2", 1, 32), ("bdw3", 1, 32), ("bpw3", 1, 16),
    ("b4col", 7, 1),    # final bias as a column (added to the (7, rows) output)
)
_CONST_WIDTH = 128


def _const_layout():
    off, r = {}, 0
    for name, nr, nc in _CONST_ENTRIES:
        off[name] = (r, nr, nc)
        r += ((nr + 7) // 8) * 8          # 8-align each entry's row offset
    return off, ((r + 7) // 8) * 8


def pack_params(params):
    """One-time host-side packing of every weight/bias into a (rows,128) f32 slab."""
    off, total = _const_layout()
    pack = np.zeros((total, _CONST_WIDTH), np.float32)

    def put(name, a):
        r0, nr, nc = off[name]
        a = np.asarray(a, np.float32).reshape(nr, nc)
        pack[r0:r0 + nr, :nc] = a

    w, b = params["conv1"]
    put("wc1", np.asarray(w).transpose(2, 3, 1, 0).reshape(27, 32))   # (ky,kx,cin)->cout
    put("bc1", np.asarray(b).reshape(1, 32))

    for dw_name, wname, bname in (("dw1", "wdw1", "bdw1"),
                                  ("dw2", "wdw2", "bdw2"),
                                  ("dw3", "wdw3", "bdw3")):
        wd, bd = params[dw_name]
        wd = np.asarray(wd)
        c = wd.shape[0]
        put(wname, wd.reshape(c, 9).T)                                # (9, C)
        put(bname, np.asarray(bd).reshape(1, c))

    for pw_name, wname, bname in (("pw1", "wpw1", "bpw1"),
                                  ("pw2", "wpw2", "bpw2"),
                                  ("pw3", "wpw3", "bpw3")):
        wp, bp = params[pw_name]
        wp = np.asarray(wp)
        put(wname, wp.reshape(wp.shape[0], wp.shape[1]).T)            # (cin, cout)
        put(bname, np.asarray(bp).reshape(1, -1))

    w4, b4 = params["pw4"]
    put("w4", np.asarray(w4).reshape(7, 16))                          # (cout, cin)
    put("b4col", np.asarray(b4).reshape(7, 1))
    return jnp.asarray(pack)


# ----------------------------------------------------------------------------
# {0,1} gather matrices for the depthwise 3x3/stride-2/pad-1 convs
# (compile-time numpy constants; padding taps are all-zero columns).
# ----------------------------------------------------------------------------
@functools.lru_cache(maxsize=None)
def _dw_select_np(hi, wi):
    ho, wo = (hi + 1) // 2, (wi + 1) // 2
    s = np.zeros((9, ho * wo, hi * wi), np.float32)
    for ky in range(3):
        for kx in range(3):
            k = ky * 3 + kx
            for oy in range(ho):
                iy = 2 * oy + ky - 1
                if iy < 0 or iy >= hi:
                    continue
                for ox in range(wo):
                    ix = 2 * ox + kx - 1
                    if ix < 0 or ix >= wi:
                        continue
                    s[k, oy * wo + ox, iy * wi + ix] = 1.0
    return s


@functools.lru_cache(maxsize=None)
def _dw_select_cat_np(hi, wi, bsz):
    """(B*No, 9*B*Ni) {0,1} matrix, block-diagonal over batch, taps concatenated
    along columns in (k, b, i) order: one matmul does the whole depthwise conv."""
    s = _dw_select_np(hi, wi)
    no, ni = s.shape[1], s.shape[2]
    out = np.zeros((bsz * no, 9 * bsz * ni), np.float32)
    for k in range(9):
        for b in range(bsz):
            out[b * no:(b + 1) * no,
                k * bsz * ni + b * ni:k * bsz * ni + (b + 1) * ni] = s[k]
    return out


def _im2col_conv1(x_nhwc):
    """(B,H,W,3) -> (B*Ho*Wo, 27) patches for the 3x3/s2/p1 first conv.
    Column order (ky,kx,cin) matches the packed conv1 weight rows."""
    b, h, w, c = x_nhwc.shape
    ho, wo = (h + 1) // 2, (w + 1) // 2
    xp = jnp.pad(x_nhwc, ((0, 0), (1, 1), (1, 1), (0, 0)))
    taps = [jax.lax.slice(xp, (0, ky, kx, 0),
                          (b, ky + 2 * (ho - 1) + 1, kx + 2 * (wo - 1) + 1, c),
                          (1, 2, 2, 1))
            for ky in range(3) for kx in range(3)]
    return jnp.concatenate(taps, axis=-1).reshape(b * ho * wo, 9 * c)


# ----------------------------------------------------------------------------
# Parameters (deterministic, PyTorch-style uniform init)
# ----------------------------------------------------------------------------
def init_params(key):
    def conv_init(k, cout, cin_pg, kh, kw):
        k1, k2 = jax.random.split(k)
        fan_in = cin_pg * kh * kw
        bound = 1.0 / (fan_in ** 0.5)
        w = jax.random.uniform(k1, (cout, cin_pg, kh, kw), jnp.float32, -bound, bound)
        bvec = jax.random.uniform(k2, (cout,), jnp.float32, -bound, bound)
        return w, bvec

    keys = jax.random.split(key, 8)
    return {
        "conv1": conv_init(keys[0], 32, 3, 3, 3),
        "dw1": conv_init(keys[1], 32, 1, 3, 3),
        "pw1": conv_init(keys[2], 64, 32, 1, 1),
        "dw2": conv_init(keys[3], 64, 1, 3, 3),
        "pw2": conv_init(keys[4], 32, 64, 1, 1),
        "dw3": conv_init(keys[5], 32, 1, 3, 3),
        "pw3": conv_init(keys[6], 16, 32, 1, 1),
        "pw4": conv_init(keys[7], 7, 16, 1, 1),
    }


# ----------------------------------------------------------------------------
# Forward: one fused Pallas kernel (3 inputs, 1 output)
# ----------------------------------------------------------------------------
def forward(x_nchw, c_pack):
    bsz, _cin, hin, win = x_nchw.shape
    h1, w1 = (hin + 1) // 2, (win + 1) // 2
    h2, w2 = (h1 + 1) // 2, (w1 + 1) // 2
    h3, w3 = (h2 + 1) // 2, (w2 + 1) // 2
    h4, w4 = (h3 + 1) // 2, (w3 + 1) // 2
    n4 = h4 * w4
    r1, r2, r3, r4 = bsz * h1 * w1, bsz * h2 * w2, bsz * h3 * w3, bsz * n4
    off, _ = _const_layout()

    x = jnp.transpose(x_nchw, (0, 2, 3, 1))              # NCHW -> NHWC
    patches = _im2col_conv1(x)                           # (r1, 27) f32

    # Gather-matrix slab: compile-time constant; {0,1} is exact in bf16.
    s1 = _dw_select_cat_np(h1, w1, bsz)                  # (r2, 9*r1)
    s2 = _dw_select_cat_np(h2, w2, bsz)                  # (r3, 9*r2)
    s3 = _dw_select_cat_np(h3, w3, bsz)                  # (r4, 9*r3)
    s_np = np.zeros((r2 + r3 + r4, 9 * r1), np.float32)
    s_np[0:r2, 0:9 * r1] = s1
    s_np[r2:r2 + r3, 0:9 * r2] = s2
    s_np[r2 + r3:, 0:9 * r3] = s3
    s_pack = jnp.asarray(s_np, dtype=jnp.bfloat16)

    def kernel(p_ref, s_ref, c_ref, o_ref):
        def cw(name):                                    # static const-slab slice
            r0, nr, nc = off[name]
            return c_ref[r0:r0 + nr, 0:nc]

        def pw(xv, wname, bname, relu):                  # 1x1 conv on the MXU
            y = jnp.dot(xv, cw(wname),
                        preferred_element_type=jnp.float32) + cw(bname)
            return jnp.maximum(y, 0.0) if relu else y

        def dw(xv, row0, rout, rin, wname, bname):
            # Depthwise 3x3/s2/p1 as ONE matmul: S (rout, 9*rin) @ Xw (9*rin, C)
            # with Xw = the 9 per-tap weighted copies of x (taps/bias stay f32;
            # only the dot operands are bf16, acc is f32).
            w = cw(wname)                                # (9, C) f32
            xw = jnp.concatenate([xv * w[k:k + 1, :] for k in range(9)], axis=0)
            xw = xw.astype(jnp.bfloat16)
            s = s_ref[row0:row0 + rout, 0:9 * rin]       # (rout, 9*rin) bf16
            return jnp.dot(s, xw,
                           preferred_element_type=jnp.float32) + cw(bname)

        h = pw(p_ref[...], "wc1", "bc1", relu=True)      # conv1 3x3 s2 -> (r1, 32)
        h = dw(h, 0, r2, r1, "wdw1", "bdw1")             # dw 3x3 s2    -> (r2, 32)
        h = pw(h, "wpw1", "bpw1", relu=True)             # 1x1 32->64 + ReLU
        h = dw(h, r2, r3, r2, "wdw2", "bdw2")            # dw 3x3 s2    -> (r3, 64)
        h = pw(h, "wpw2", "bpw2", relu=True)             # 1x1 64->32 + ReLU
        h = dw(h, r2 + r3, r4, r3, "wdw3", "bdw3")       # dw 3x3 s2    -> (r4, 32)
        h = pw(h, "wpw3", "bpw3", relu=True)             # 1x1 32->16 + ReLU
        # Final 1x1 16->7 computed channels-major: contract the shared cin dim
        # (lhs (7,16) x rhs (r4,16)) so the result is already (7, rows) and the
        # NCHW flatten order needs no transpose anywhere.
        out_t = jax.lax.dot_general(
            cw("w4"), h, dimension_numbers=(((1,), (1,)), ((), ())),
            preferred_element_type=jnp.float32) + cw("b4col")   # (7, r4)
        for b in range(bsz):
            o_ref[b] = out_t[:, b * n4:(b + 1) * n4]

    out = pl.pallas_call(
        kernel,
        grid=(1,),
        in_specs=[pl.BlockSpec(patches.shape, lambda i: (0, 0)),
                  pl.BlockSpec(s_pack.shape, lambda i: (0, 0)),
                  pl.BlockSpec(c_pack.shape, lambda i: (0, 0))],
        out_specs=pl.BlockSpec((bsz, 7, n4), lambda i: (0, 0, 0)),
        out_shape=jax.ShapeDtypeStruct((bsz, 7, n4), jnp.float32),
    )(patches, s_pack, c_pack)

    # (b, c, spatial) already equals torch.flatten(NCHW, 1); metadata-only reshape.
    return out.reshape(bsz, 7 * n4)


# ----------------------------------------------------------------------------
# Pure-JAX reference
# ----------------------------------------------------------------------------
def ref_forward(x_nchw, params):
    x = jnp.transpose(x_nchw, (0, 2, 3, 1))

    def conv(x, wb, stride, pad, groups, relu):
        w, b = wb
        hwio = jnp.transpose(w, (2, 3, 1, 0))
        y = jax.lax.conv_general_dilated(
            x, hwio, (stride, stride), [(pad, pad), (pad, pad)],
            dimension_numbers=("NHWC", "HWIO", "NHWC"),
            feature_group_count=groups,
            precision=jax.lax.Precision.HIGHEST,
        ) + b.reshape(1, 1, 1, -1)
        return jnp.maximum(y, 0.0) if relu else y

    x = conv(x, params["conv1"], 2, 1, 1, True)
    x = conv(x, params["dw1"], 2, 1, 32, False)
    x = conv(x, params["pw1"], 1, 0, 1, True)
    x = conv(x, params["dw2"], 2, 1, 64, False)
    x = conv(x, params["pw2"], 1, 0, 1, True)
    x = conv(x, params["dw3"], 2, 1, 32, False)
    x = conv(x, params["pw3"], 1, 0, 1, True)
    x = conv(x, params["pw4"], 1, 0, 1, False)
    x = jnp.transpose(x, (0, 3, 1, 2))
    return x.reshape(x.shape[0], -1)


if __name__ == "__main__":
    key = jax.random.PRNGKey(0)
    kp, kx = jax.random.split(key)
    params = init_params(kp)
    c_pack = pack_params(params)                         # one-time host packing
    x = jax.random.normal(kx, (2, 3, 32, 32), jnp.float32)   # NCHW, like PyTorch

    out = jax.jit(forward)(x, c_pack)
    out = jax.block_until_ready(out)

    ref = ref_forward(x, params)
    assert out.shape == (2, 7 * 2 * 2), out.shape        # 32 -> 16 -> 8 -> 4 -> 2
    max_err = float(jnp.max(jnp.abs(out - ref)))
    assert max_err < 1e-2, f"mismatch vs reference: {max_err}"
    print("KERNEL_OK")
</pallas_src>

<mosaic_0001>
module attributes {stable_mosaic.version = 11 : i64} {
  func.func @kernel(%arg0: i32, %arg1: memref<512x27xf32, #tpu.memory_space<vmem>>, %arg2: memref<168x4608xbf16, #tpu.memory_space<vmem>>, %arg3: memref<280x128xf32, #tpu.memory_space<vmem>>, %arg4: memref<2x7x4xf32, #tpu.memory_space<vmem>>) attributes {dimension_semantics = [#tpu.dimension_semantics<arbitrary>], iteration_bounds = array<i64: 1>, scalar_prefetch = 0 : i64, scratch_operands = 0 : i64, tpu.core_type = #tpu.core_type<tc>, window_params = [{pipeline_mode = #tpu.pipeline_mode<synchronous>, transform_indices = @transform_0, window_bounds = array<i64: 512, 27>}, {pipeline_mode = #tpu.pipeline_mode<synchronous>, transform_indices = @transform_1, window_bounds = array<i64: 168, 4608>}, {pipeline_mode = #tpu.pipeline_mode<synchronous>, transform_indices = @transform_2, window_bounds = array<i64: 280, 128>}, {pipeline_mode = #tpu.pipeline_mode<synchronous>, transform_indices = @transform_3, window_bounds = array<i64: 2, 7, 4>}]} {
    %c0 = arith.constant 0 : index
    %c0_0 = arith.constant 0 : index
    %0 = vector.load %arg1[%c0, %c0_0] : memref<512x27xf32, #tpu.memory_space<vmem>>, vector<512x27xf32>
    %c0_1 = arith.constant 0 : index
    %c0_2 = arith.constant 0 : index
    %1 = vector.load %arg3[%c0_1, %c0_2] : memref<280x128xf32, #tpu.memory_space<vmem>>, vector<27x32xf32>
    %cst = arith.constant dense<0.000000e+00> : vector<512x32xf32>
    %2 = tpu.matmul %0, %1, %cst {dimension_numbers = #tpu.dot_dimension_numbers<[1], [0], [0], [1], [0, 0, 1, 1], [], []>} : vector<512x27xf32>, vector<27x32xf32>, vector<512x32xf32> -> vector<512x32xf32>
    %c216 = arith.constant 216 : index
    %c0_3 = arith.constant 0 : index
    %3 = vector.load %arg3[%c216, %c0_3] : memref<280x128xf32, #tpu.memory_space<vmem>>, vector<1x32xf32>
    %4 = vector.broadcast %3 : vector<1x32xf32> to vector<512x32xf32>
    %5 = arith.addf %2, %4 : vector<512x32xf32>
    %cst_4 = arith.constant 0.000000e+00 : f32
    %6 = vector.broadcast %cst_4 : f32 to vector<512x32xf32>
    %7 = arith.maximumf %5, %6 : vector<512x32xf32>
    %c32 = arith.constant 32 : index
    %c0_5 = arith.constant 0 : index
    %8 = vector.load %arg3[%c32, %c0_5] : memref<280x128xf32, #tpu.memory_space<vmem>>, vector<9x32xf32>
    %9 = vector.extract_strided_slice %8 {offsets = [0, 0], sizes = [1, 32], strides = [1, 1]} : vector<9x32xf32> to vector<1x32xf32>
    %10 = vector.broadcast %9 : vector<1x32xf32> to vector<512x32xf32>
    %11 = arith.mulf %7, %10 : vector<512x32xf32>
    %12 = vector.extract_strided_slice %8 {offsets = [1, 0], sizes = [1, 32], strides = [1, 1]} : vector<9x32xf32> to vector<1x32xf32>
    %13 = vector.broadcast %12 : vector<1x32xf32> to vector<512x32xf32>
    %14 = arith.mulf %7, %13 : vector<512x32xf32>
    %15 = vector.extract_strided_slice %8 {offsets = [2, 0], sizes = [1, 32], strides = [1, 1]} : vector<9x32xf32> to vector<1x32xf32>
    %16 = vector.broadcast %15 : vector<1x32xf32> to vector<512x32xf32>
    %17 = arith.mulf %7, %16 : vector<512x32xf32>
    %18 = vector.extract_strided_slice %8 {offsets = [3, 0], sizes = [1, 32], strides = [1, 1]} : vector<9x32xf32> to vector<1x32xf32>
    %19 = vector.broadcast %18 : vector<1x32xf32> to vector<512x32xf32>
    %20 = arith.mulf %7, %19 : vector<512x32xf32>
    %21 = vector.extract_strided_slice %8 {offsets = [4, 0], sizes = [1, 32], strides = [1, 1]} : vector<9x32xf32> to vector<1x32xf32>
    %22 = vector.broadcast %21 : vector<1x32xf32> to vector<512x32xf32>
    %23 = arith.mulf %7, %22 : vector<512x32xf32>
    %24 = vector.extract_strided_slice %8 {offsets = [5, 0], sizes = [1, 32], strides = [1, 1]} : vector<9x32xf32> to vector<1x32xf32>
    %25 = vector.broadcast %24 : vector<1x32xf32> to vector<512x32xf32>
    %26 = arith.mulf %7, %25 : vector<512x32xf32>
    %27 = vector.extract_strided_slice %8 {offsets = [6, 0], sizes = [1, 32], strides = [1, 1]} : vector<9x32xf32> to vector<1x32xf32>
    %28 = vector.broadcast %27 : vector<1x32xf32> to vector<512x32xf32>
    %29 = arith.mulf %7, %28 : vector<512x32xf32>
    %30 = vector.extract_strided_slice %8 {offsets = [7, 0], sizes = [1, 32], strides = [1, 1]} : vector<9x32xf32> to vector<1x32xf32>
    %31 = vector.broadcast %30 : vector<1x32xf32> to vector<512x32xf32>
    %32 = arith.mulf %7, %31 : vector<512x32xf32>
    %33 = vector.extract_strided_slice %8 {offsets = [8, 0], sizes = [1, 32], strides = [1, 1]} : vector<9x32xf32> to vector<1x32xf32>
    %34 = vector.broadcast %33 : vector<1x32xf32> to vector<512x32xf32>
    %35 = arith.mulf %7, %34 : vector<512x32xf32>
    %36 = tpu.concatenate %11, %14, %17, %20, %23, %26, %29, %32, %35 in 0 : vector<512x32xf32>, vector<512x32xf32>, vector<512x32xf32>, vector<512x32xf32>, vector<512x32xf32>, vector<512x32xf32>, vector<512x32xf32>, vector<512x32xf32>, vector<512x32xf32> -> vector<4608x32xf32>
    %37 = arith.truncf %36 : vector<4608x32xf32> to vector<4608x32xbf16>
    %c0_6 = arith.constant 0 : index
    %c0_7 = arith.constant 0 : index
    %38 = vector.load %arg2[%c0_6, %c0_7] : memref<168x4608xbf16, #tpu.memory_space<vmem>>, vector<128x4608xbf16>
    %cst_8 = arith.constant dense<0.000000e+00> : vector<128x32xf32>
    %39 = tpu.matmul %38, %37, %cst_8 {dimension_numbers = #tpu.dot_dimension_numbers<[1], [0], [0], [1], [0, 0, 1, 1], [], []>} : vector<128x4608xbf16>, vector<4608x32xbf16>, vector<128x32xf32> -> vector<128x32xf32>
    %c224 = arith.constant 224 : index
    %c0_9 = arith.constant 0 : index
    %40 = vector.load %arg3[%c224, %c0_9] : memref<280x128xf32, #tpu.memory_space<vmem>>, vector<1x32xf32>
    %41 = vector.broadcast %40 : vector<1x32xf32> to vector<128x32xf32>
    %42 = arith.addf %39, %41 : vector<128x32xf32>
    %c48 = arith.constant 48 : index
    %c0_10 = arith.constant 0 : index
    %43 = vector.load %arg3[%c48, %c0_10] : memref<280x128xf32, #tpu.memory_space<vmem>>, vector<32x64xf32>
    %cst_11 = arith.constant dense<0.000000e+00> : vector<128x64xf32>
    %44 = tpu.matmul %42, %43, %cst_11 {dimension_numbers = #tpu.dot_dimension_numbers<[1], [0], [0], [1], [0, 0, 1, 1], [], []>} : vector<128x32xf32>, vector<32x64xf32>, vector<128x64xf32> -> vector<128x64xf32>
    %c232 = arith.constant 232 : index
    %c0_12 = arith.constant 0 : index
    %45 = vector.load %arg3[%c232, %c0_12] : memref<280x128xf32, #tpu.memory_space<vmem>>, vector<1x64xf32>
    %46 = vector.broadcast %45 : vector<1x64xf32> to vector<128x64xf32>
    %47 = arith.addf %44, %46 : vector<128x64xf32>
    %cst_13 = arith.constant 0.000000e+00 : f32
    %48 = vector.broadcast %cst_13 : f32 to vector<128x64xf32>
    %49 = arith.maximumf %47, %48 : vector<128x64xf32>
    %c80 = arith.constant 80 : index
    %c0_14 = arith.constant 0 : index
    %50 = vector.load %arg3[%c80, %c0_14] : memref<280x128xf32, #tpu.memory_space<vmem>>, vector<9x64xf32>
    %51 = vector.extract_strided_slice %50 {offsets = [0, 0], sizes = [1, 64], strides = [1, 1]} : vector<9x64xf32> to vector<1x64xf32>
    %52 = vector.broadcast %51 : vector<1x64xf32> to vector<128x64xf32>
    %53 = arith.mulf %49, %52 : vector<128x64xf32>
    %54 = vector.extract_strided_slice %50 {offsets = [1, 0], sizes = [1, 64], strides = [1, 1]} : vector<9x64xf32> to vector<1x64xf32>
    %55 = vector.broadcast %54 : vector<1x64xf32> to vector<128x64xf32>
    %56 = arith.mulf %49, %55 : vector<128x64xf32>
    %57 = vector.extract_strided_slice %50 {offsets = [2, 0], sizes = [1, 64], strides = [1, 1]} : vector<9x64xf32> to vector<1x64xf32>
    %58 = vector.broadcast %57 : vector<1x64xf32> to vector<128x64xf32>
    %59 = arith.mulf %49, %58 : vector<128x64xf32>
    %60 = vector.extract_strided_slice %50 {offsets = [3, 0], sizes = [1, 64], strides = [1, 1]} : vector<9x64xf32> to vector<1x64xf32>
    %61 = vector.broadcast %60 : vector<1x64xf32> to vector<128x64xf32>
    %62 = arith.mulf %49, %61 : vector<128x64xf32>
    %63 = vector.extract_strided_slice %50 {offsets = [4, 0], sizes = [1, 64], strides = [1, 1]} : vector<9x64xf32> to vector<1x64xf32>
    %64 = vector.broadcast %63 : vector<1x64xf32> to vector<128x64xf32>
    %65 = arith.mulf %49, %64 : vector<128x64xf32>
    %66 = vector.extract_strided_slice %50 {offsets = [5, 0], sizes = [1, 64], strides = [1, 1]} : vector<9x64xf32> to vector<1x64xf32>
    %67 = vector.broadcast %66 : vector<1x64xf32> to vector<128x64xf32>
    %68 = arith.mulf %49, %67 : vector<128x64xf32>
    %69 = vector.extract_strided_slice %50 {offsets = [6, 0], sizes = [1, 64], strides = [1, 1]} : vector<9x64xf32> to vector<1x64xf32>
    %70 = vector.broadcast %69 : vector<1x64xf32> to vector<128x64xf32>
    %71 = arith.mulf %49, %70 : vector<128x64xf32>
    %72 = vector.extract_strided_slice %50 {offsets = [7, 0], sizes = [1, 64], strides = [1, 1]} : vector<9x64xf32> to vector<1x64xf32>
    %73 = vector.broadcast %72 : vector<1x64xf32> to vector<128x64xf32>
    %74 = arith.mulf %49, %73 : vector<128x64xf32>
    %75 = vector.extract_strided_slice %50 {offsets = [8, 0], sizes = [1, 64], strides = [1, 1]} : vector<9x64xf32> to vector<1x64xf32>
    %76 = vector.broadcast %75 : vector<1x64xf32> to vector<128x64xf32>
    %77 = arith.mulf %49, %76 : vector<128x64xf32>
    %78 = tpu.concatenate %53, %56, %59, %62, %65, %68, %71, %74, %77 in 0 : vector<128x64xf32>, vector<128x64xf32>, vector<128x64xf32>, vector<128x64xf32>, vector<128x64xf32>, vector<128x64xf32>, vector<128x64xf32>, vector<128x64xf32>, vector<128x64xf32> -> vector<1152x64xf32>
    %79 = arith.truncf %78 : vector<1152x64xf32> to vector<1152x64xbf16>
    %c128 = arith.constant 128 : index
    %c0_15 = arith.constant 0 : index
    %80 = vector.load %arg2[%c128, %c0_15] : memref<168x4608xbf16, #tpu.memory_space<vmem>>, vector<32x1152xbf16>
    %cst_16 = arith.constant dense<0.000000e+00> : vector<32x64xf32>
    %81 = tpu.matmul %80, %79, %cst_16 {dimension_numbers = #tpu.dot_dimension_numbers<[1], [0], [0], [1], [0, 0, 1, 1], [], []>} : vector<32x1152xbf16>, vector<1152x64xbf16>, vector<32x64xf32> -> vector<32x64xf32>
    %c240 = arith.constant 240 : index
    %c0_17 = arith.constant 0 : index
    %82 = vector.load %arg3[%c240, %c0_17] : memref<280x128xf32, #tpu.memory_space<vmem>>, vector<1x64xf32>
    %83 = vector.broadcast %82 : vector<1x64xf32> to vector<32x64xf32>
    %84 = arith.addf %81, %83 : vector<32x64xf32>
    %c96 = arith.constant 96 : index
    %c0_18 = arith.constant 0 : index
    %85 = vector.load %arg3[%c96, %c0_18] : memref<280x128xf32, #tpu.memory_space<vmem>>, vector<64x32xf32>
    %cst_19 = arith.constant dense<0.000000e+00> : vector<32x32xf32>
    %86 = tpu.matmul %84, %85, %cst_19 {dimension_numbers = #tpu.dot_dimension_numbers<[1], [0], [0], [1], [0, 0, 1, 1], [], []>} : vector<32x64xf32>, vector<64x32xf32>, vector<32x32xf32> -> vector<32x32xf32>
    %c248 = arith.constant 248 : index
    %c0_20 = arith.constant 0 : index
    %87 = vector.load %arg3[%c248, %c0_20] : memref<280x128xf32, #tpu.memory_space<vmem>>, vector<1x32xf32>
    %88 = vector.broadcast %87 : vector<1x32xf32> to vector<32x32xf32>
    %89 = arith.addf %86, %88 : vector<32x32xf32>
    %cst_21 = arith.constant 0.000000e+00 : f32
    %90 = vector.broadcast %cst_21 : f32 to vector<32x32xf32>
    %91 = arith.maximumf %89, %90 : vector<32x32xf32>
    %c160 = arith.constant 160 : index
    %c0_22 = arith.constant 0 : index
    %92 = vector.load %arg3[%c160, %c0_22] : memref<280x128xf32, #tpu.memory_space<vmem>>, vector<9x32xf32>
    %93 = vector.extract_strided_slice %92 {offsets = [0, 0], sizes = [1, 32], strides = [1, 1]} : vector<9x32xf32> to vector<1x32xf32>
    %94 = vector.broadcast %93 : vector<1x32xf32> to vector<32x32xf32>
    %95 = arith.mulf %91, %94 : vector<32x32xf32>
    %96 = vector.extract_strided_slice %92 {offsets = [1, 0], sizes = [1, 32], strides = [1, 1]} : vector<9x32xf32> to vector<1x32xf32>
    %97 = vector.broadcast %96 : vector<1x32xf32> to vector<32x32xf32>
    %98 = arith.mulf %91, %97 : vector<32x32xf32>
    %99 = vector.extract_strided_slice %92 {offsets = [2, 0], sizes = [1, 32], strides = [1, 1]} : vector<9x32xf32> to vector<1x32xf32>
    %100 = vector.broadcast %99 : vector<1x32xf32> to vector<32x32xf32>
    %101 = arith.mulf %91, %100 : vector<32x32xf32>
    %102 = vector.extract_strided_slice %92 {offsets = [3, 0], sizes = [1, 32], strides = [1, 1]} : vector<9x32xf32> to vector<1x32xf32>
    %103 = vector.broadcast %102 : vector<1x32xf32> to vector<32x32xf32>
    %104 = arith.mulf %91, %103 : vector<32x32xf32>
    %105 = vector.extract_strided_slice %92 {offsets = [4, 0], sizes = [1, 32], strides = [1, 1]} : vector<9x32xf32> to vector<1x32xf32>
    %106 = vector.broadcast %105 : vector<1x32xf32> to vector<32x32xf32>
    %107 = arith.mulf %91, %106 : vector<32x32xf32>
    %108 = vector.extract_strided_slice %92 {offsets = [5, 0], sizes = [1, 32], strides = [1, 1]} : vector<9x32xf32> to vector<1x32xf32>
    %109 = vector.broadcast %108 : vector<1x32xf32> to vector<32x32xf32>
    %110 = arith.mulf %91, %109 : vector<32x32xf32>
    %111 = vector.extract_strided_slice %92 {offsets = [6, 0], sizes = [1, 32], strides = [1, 1]} : vector<9x32xf32> to vector<1x32xf32>
    %112 = vector.broadcast %111 : vector<1x32xf32> to vector<32x32xf32>
    %113 = arith.mulf %91, %112 : vector<32x32xf32>
    %114 = vector.extract_strided_slice %92 {offsets = [7, 0], sizes = [1, 32], strides = [1, 1]} : vector<9x32xf32> to vector<1x32xf32>
    %115 = vector.broadcast %114 : vector<1x32xf32> to vector<32x32xf32>
    %116 = arith.mulf %91, %115 : vector<32x32xf32>
    %117 = vector.extract_strided_slice %92 {offsets = [8, 0], sizes = [1, 32], strides = [1, 1]} : vector<9x32xf32> to vector<1x32xf32>
    %118 = vector.broadcast %117 : vector<1x32xf32> to vector<32x32xf32>
    %119 = arith.mulf %91, %118 : vector<32x32xf32>
    %120 = tpu.concatenate %95, %98, %101, %104, %107, %110, %113, %116, %119 in 0 : vector<32x32xf32>, vector<32x32xf32>, vector<32x32xf32>, vector<32x32xf32>, vector<32x32xf32>, vector<32x32xf32>, vector<32x32xf32>, vector<32x32xf32>, vector<32x32xf32> -> vector<288x32xf32>
    %121 = arith.truncf %120 : vector<288x32xf32> to vector<288x32xbf16>
    %c160_23 = arith.constant 160 : index
    %c0_24 = arith.constant 0 : index
    %122 = vector.load %arg2[%c160_23, %c0_24] : memref<168x4608xbf16, #tpu.memory_space<vmem>>, vector<8x288xbf16>
    %cst_25 = arith.constant dense<0.000000e+00> : vector<8x32xf32>
    %123 = tpu.matmul %122, %121, %cst_25 {dimension_numbers = #tpu.dot_dimension_numbers<[1], [0], [0], [1], [0, 0, 1, 1], [], []>} : vector<8x288xbf16>, vector<288x32xbf16>, vector<8x32xf32> -> vector<8x32xf32>
    %c256 = arith.constant 256 : index
    %c0_26 = arith.constant 0 : index
    %124 = vector.load %arg3[%c256, %c0_26] : memref<280x128xf32, #tpu.memory_space<vmem>>, vector<1x32xf32>
    %125 = vector.broadcast %124 : vector<1x32xf32> to vector<8x32xf32>
    %126 = arith.addf %123, %125 : vector<8x32xf32>
    %c176 = arith.constant 176 : index
    %c0_27 = arith.constant 0 : index
    %127 = vector.load %arg3[%c176, %c0_27] : memref<280x128xf32, #tpu.memory_space<vmem>>, vector<32x16xf32>
    %cst_28 = arith.constant dense<0.000000e+00> : vector<8x16xf32>
    %128 = tpu.matmul %126, %127, %cst_28 {dimension_numbers = #tpu.dot_dimension_numbers<[1], [0], [0], [1], [0, 0, 1, 1], [], []>} : vector<8x32xf32>, vector<32x16xf32>, vector<8x16xf32> -> vector<8x16xf32>
    %c264 = arith.constant 264 : index
    %c0_29 = arith.constant 0 : index
    %129 = vector.load %arg3[%c264, %c0_29] : memref<280x128xf32, #tpu.memory_space<vmem>>, vector<1x16xf32>
    %130 = vector.broadcast %129 : vector<1x16xf32> to vector<8x16xf32>
    %131 = arith.addf %128, %130 : vector<8x16xf32>
    %cst_30 = arith.constant 0.000000e+00 : f32
    %132 = vector.broadcast %cst_30 : f32 to vector<8x16xf32>
    %133 = arith.maximumf %131, %132 : vector<8x16xf32>
    %c208 = arith.constant 208 : index
    %c0_31 = arith.constant 0 : index
    %134 = vector.load %arg3[%c208, %c0_31] : memref<280x128xf32, #tpu.memory_space<vmem>>, vector<7x16xf32>
    %cst_32 = arith.constant dense<0.000000e+00> : vector<7x8xf32>
    %135 = tpu.matmul %134, %133, %cst_32 {dimension_numbers = #tpu.dot_dimension_numbers<[1], [1], [0], [0], [0, 0, 1, 0], [], []>} : vector<7x16xf32>, vector<8x16xf32>, vector<7x8xf32> -> vector<7x8xf32>
    %c272 = arith.constant 272 : index
    %c0_33 = arith.constant 0 : index
    %136 = vector.load %arg3[%c272, %c0_33] : memref<280x128xf32, #tpu.memory_space<vmem>>, vector<7x1xf32>
    %137 = vector.broadcast %136 : vector<7x1xf32> to vector<7x8xf32>
    %138 = arith.addf %135, %137 : vector<7x8xf32>
    %139 = vector.extract_strided_slice %138 {offsets = [0, 0], sizes = [7, 4], strides = [1, 1]} : vector<7x8xf32> to vector<7x4xf32>
    %c0_34 = arith.constant 0 : index
    %c0_35 = arith.constant 0 : index
    %c0_36 = arith.constant 0 : index
    %140 = vector.load %arg4[%c0_34, %c0_35, %c0_36] : memref<2x7x4xf32, #tpu.memory_space<vmem>>, vector<1x7x4xf32>
    %141 = vector.shape_cast %140 : vector<1x7x4xf32> to vector<7x4xf32>
    %142 = vector.shape_cast %139 : vector<7x4xf32> to vector<1x7x4xf32>
    tpu.vector_store %arg4[%c0_34, %c0_35, %c0_36], %142 {strides = array<i32>} : memref<2x7x4xf32, #tpu.memory_space<vmem>>, vector<1x7x4xf32>,
    %143 = vector.extract_strided_slice %138 {offsets = [0, 4], sizes = [7, 4], strides = [1, 1]} : vector<7x8xf32> to vector<7x4xf32>
    %c1 = arith.constant 1 : index
    %c0_37 = arith.constant 0 : index
    %c0_38 = arith.constant 0 : index
    %144 = vector.load %arg4[%c1, %c0_37, %c0_38] : memref<2x7x4xf32, #tpu.memory_space<vmem>>, vector<1x7x4xf32>
    %145 = vector.shape_cast %144 : vector<1x7x4xf32> to vector<7x4xf32>
    %146 = vector.shape_cast %143 : vector<7x4xf32> to vector<1x7x4xf32>
    tpu.vector_store %arg4[%c1, %c0_37, %c0_38], %146 {strides = array<i32>} : memref<2x7x4xf32, #tpu.memory_space<vmem>>, vector<1x7x4xf32>,
    return
  }
  func.func @transform_0(%arg0: i32) -> (i32, i32) {
    %c0_i32 = arith.constant 0 : i32
    %c0_i32_0 = arith.constant 0 : i32
    %c0_i32_1 = arith.constant 0 : i32
    return %c0_i32, %c0_i32_0 : i32, i32
  }
  func.func @transform_1(%arg0: i32) -> (i32, i32) {
    %c0_i32 = arith.constant 0 : i32
    %c0_i32_0 = arith.constant 0 : i32
    %c0_i32_1 = arith.constant 0 : i32
    return %c0_i32, %c0_i32_0 : i32, i32
  }
  func.func @transform_2(%arg0: i32) -> (i32, i32) {
    %c0_i32 = arith.constant 0 : i32
    %c0_i32_0 = arith.constant 0 : i32
    %c0_i32_1 = arith.constant 0 : i32
    return %c0_i32, %c0_i32_0 : i32, i32
  }
  func.func @transform_3(%arg0: i32) -> (i32, i32, i32) {
    %c0_i32 = arith.constant 0 : i32
    %c0_i32_0 = arith.constant 0 : i32
    %c0_i32_1 = arith.constant 0 : i32
    %c0_i32_2 = arith.constant 0 : i32
    return %c0_i32, %c0_i32_0, %c0_i32_1 : i32, i32, i32
  }
}

</mosaic_0001>

<llo_original>
// kernel: forward.1
$region0: #{forward.1}
  #allocation0 [shape = 'u32[]', space=smem, size = 0x4, offset = 0x4, fixed_abs, tag = 'smem constant byte address 0x4 - core index']
  #allocation1 [shape = 'u32[144,128]{1,0:T(1,128)}', space=vmem, size = 0x12000, scoped, tag = 'internal scratch']
  %s0 = inlined_call_operand.vmem [shape: f32[512,27], index: 0, kind: input, shape index: {}]
  %s1 = inlined_call_operand.vmem [shape: bf16[168,4608], index: 1, kind: input, shape index: {}]
  %s2 = inlined_call_operand.vmem [shape: f32[280,128], index: 2, kind: input, shape index: {}]
  %s3 = inlined_call_operand.vmem [shape: f32[2,7,4], index: 3, kind: output, shape index: {}]
  %s4 = sld [smem:[#allocation0]]
  $region22: #{forward.1} parent=0
    _
  %s6 = ssub.s32 1, %s4
  %s7 = scalar_select 0, %s6, %s4
  // Predicated region
  $region2: #{forward.1} parent=0 // pred_check
    _
  $region3: #{forward.1} parent=0 // pred_check_branch
    %9 = sbr.rel (0) target = $region5
  $region4: #{forward.1} parent=0 // pred_region
    _
  $region5: #{forward.1} parent=0 // pred_fallthru
    _
  // Predicated region
  $region6: #{forward.1} parent=0 // pred_check
    _
  $region7: #{forward.1} parent=0 // pred_check_branch
    %11 = sbr.rel (0) target = $region9
  $region8: #{forward.1} parent=0 // pred_region
    _
  $region9: #{forward.1} parent=0 // pred_fallthru
    _
  // Predicated region
  $region10: #{forward.1} parent=0 // pred_check
    _
  $region11: #{forward.1} parent=0 // pred_check_branch
    %13 = sbr.rel (0) target = $region13
  $region12: #{forward.1} parent=0 // pred_region
    _
  $region13: #{forward.1} parent=0 // pred_fallthru
    _
  %v15 = vld [vmem:[%s0] sm:$0xff]
  %v16 = vld [vmem:[%s0 + $0x8] sm:$0xff]
  %v17 = vld [vmem:[%s0 + $0x10] sm:$0xff]
  %v18 = vld [vmem:[%s0 + $0x18] sm:$0xff]
  %v19 = vld [vmem:[%s0 + $0x20] sm:$0xff]
  %v20 = vld [vmem:[%s0 + $0x28] sm:$0xff]
  %v21 = vld [vmem:[%s0 + $0x30] sm:$0xff]
  %v22 = vld [vmem:[%s0 + $0x38] sm:$0xff]
  %v23 = vld [vmem:[%s0 + $0x40] sm:$0xff]
  %v24 = vld [vmem:[%s0 + $0x48] sm:$0xff]
  %v25 = vld [vmem:[%s0 + $0x50] sm:$0xff]
  %v26 = vld [vmem:[%s0 + $0x58] sm:$0xff]
  %v27 = vld [vmem:[%s0 + $0x60] sm:$0xff]
  %v28 = vld [vmem:[%s0 + $0x68] sm:$0xff]
  %v29 = vld [vmem:[%s0 + $0x70] sm:$0xff]
  %v30 = vld [vmem:[%s0 + $0x78] sm:$0xff]
  %v31 = vld [vmem:[%s0 + $0x80] sm:$0xff]
  %v32 = vld [vmem:[%s0 + $0x88] sm:$0xff]
  %v33 = vld [vmem:[%s0 + $0x90] sm:$0xff]
  %v34 = vld [vmem:[%s0 + $0x98] sm:$0xff]
  %v35 = vld [vmem:[%s0 + $0xa0] sm:$0xff]
  %v36 = vld [vmem:[%s0 + $0xa8] sm:$0xff]
  %v37 = vld [vmem:[%s0 + $0xb0] sm:$0xff]
  %v38 = vld [vmem:[%s0 + $0xb8] sm:$0xff]
  %v39 = vld [vmem:[%s0 + $0xc0] sm:$0xff]
  %v40 = vld [vmem:[%s0 + $0xc8] sm:$0xff]
  %v41 = vld [vmem:[%s0 + $0xd0] sm:$0xff]
  %v42 = vld [vmem:[%s0 + $0xd8] sm:$0xff]
  %v43 = vld [vmem:[%s0 + $0xe0] sm:$0xff]
  %v44 = vld [vmem:[%s0 + $0xe8] sm:$0xff]
  %v45 = vld [vmem:[%s0 + $0xf0] sm:$0xff]
  %v46 = vld [vmem:[%s0 + $0xf8] sm:$0xff]
  %v47 = vld [vmem:[%s0 + $0x100] sm:$0xff]
  %v48 = vld [vmem:[%s0 + $0x108] sm:$0xff]
  %v49 = vld [vmem:[%s0 + $0x110] sm:$0xff]
  %v50 = vld [vmem:[%s0 + $0x118] sm:$0xff]
  %v51 = vld [vmem:[%s0 + $0x120] sm:$0xff]
  %v52 = vld [vmem:[%s0 + $0x128] sm:$0xff]
  %v53 = vld [vmem:[%s0 + $0x130] sm:$0xff]
  %v54 = vld [vmem:[%s0 + $0x138] sm:$0xff]
  %v55 = vld [vmem:[%s0 + $0x140] sm:$0xff]
  %v56 = vld [vmem:[%s0 + $0x148] sm:$0xff]
  %v57 = vld [vmem:[%s0 + $0x150] sm:$0xff]
  %v58 = vld [vmem:[%s0 + $0x158] sm:$0xff]
  %v59 = vld [vmem:[%s0 + $0x160] sm:$0xff]
  %v60 = vld [vmem:[%s0 + $0x168] sm:$0xff]
  %v61 = vld [vmem:[%s0 + $0x170] sm:$0xff]
  %v62 = vld [vmem:[%s0 + $0x178] sm:$0xff]
  %v63 = vld [vmem:[%s0 + $0x180] sm:$0xff]
  %v64 = vld [vmem:[%s0 + $0x188] sm:$0xff]
  %v65 = vld [vmem:[%s0 + $0x190] sm:$0xff]
  %v66 = vld [vmem:[%s0 + $0x198] sm:$0xff]
  %v67 = vld [vmem:[%s0 + $0x1a0] sm:$0xff]
  %v68 = vld [vmem:[%s0 + $0x1a8] sm:$0xff]
  %v69 = vld [vmem:[%s0 + $0x1b0] sm:$0xff]
  %v70 = vld [vmem:[%s0 + $0x1b8] sm:$0xff]
  %v71 = vld [vmem:[%s0 + $0x1c0] sm:$0xff]
  %v72 = vld [vmem:[%s0 + $0x1c8] sm:$0xff]
  %v73 = vld [vmem:[%s0 + $0x1d0] sm:$0xff]
  %v74 = vld [vmem:[%s0 + $0x1d8] sm:$0xff]
  %v75 = vld [vmem:[%s0 + $0x1e0] sm:$0xff]
  %v76 = vld [vmem:[%s0 + $0x1e8] sm:$0xff]
  %v77 = vld [vmem:[%s0 + $0x1f0] sm:$0xff]
  %v78 = vld [vmem:[%s0 + $0x1f8] sm:$0xff]
  %v79 = vld [vmem:[%s2] sm:$0xff]
  %v80 = vld [vmem:[%s2 + $0x8] sm:$0xff]
  %v81 = vld [vmem:[%s2 + $0x10] sm:$0xff]
  %v82 = vld [vmem:[%s2 + $0x18] sm:$0x7]
  %v83 = vld [vmem:[%s2 + $0xd8] sm:$0x1]
  %v84 = vlaneseq
  %v85 = vshrl.u32 %v84, 7
  %v86 = vsub.s32 0, %v85
  %v87 = vrot.slane %v83, %v86
  %vm88 = vcmask 220160
  %v90 = vsel %vm88, %v15, 0
  %v93 = vsel %vm88, %v16, 0
  %v96 = vsel %vm88, %v17, 0
  %v99 = vsel %vm88, %v18, 0
  %v102 = vsel %vm88, %v19, 0
  %v105 = vsel %vm88, %v20, 0
  %v108 = vsel %vm88, %v21, 0
  %v111 = vsel %vm88, %v22, 0
  %v114 = vsel %vm88, %v23, 0
  %v117 = vsel %vm88, %v24, 0
  %v120 = vsel %vm88, %v25, 0
  %v123 = vsel %vm88, %v26, 0
  %v126 = vsel %vm88, %v27, 0
  %v129 = vsel %vm88, %v28, 0
  %v132 = vsel %vm88, %v29, 0
  %v135 = vsel %vm88, %v30, 0
  %v138 = vsel %vm88, %v31, 0
  %v141 = vsel %vm88, %v32, 0
  %v144 = vsel %vm88, %v33, 0
  %v147 = vsel %vm88, %v34, 0
  %v150 = vsel %vm88, %v35, 0
  %v153 = vsel %vm88, %v36, 0
  %v156 = vsel %vm88, %v37, 0
  %v159 = vsel %vm88, %v38, 0
  %v162 = vsel %vm88, %v39, 0
  %v165 = vsel %vm88, %v40, 0
  %v168 = vsel %vm88, %v41, 0
  %v171 = vsel %vm88, %v42, 0
  %v174 = vsel %vm88, %v43, 0
  %v177 = vsel %vm88, %v44, 0
  %v180 = vsel %vm88, %v45, 0
  %v183 = vsel %vm88, %v46, 0
  %v186 = vsel %vm88, %v47, 0
  %v189 = vsel %vm88, %v48, 0
  %v192 = vsel %vm88, %v49, 0
  %v195 = vsel %vm88, %v50, 0
  %v198 = vsel %vm88, %v51, 0
  %v201 = vsel %vm88, %v52, 0
  %v204 = vsel %vm88, %v53, 0
  %v207 = vsel %vm88, %v54, 0
  %v210 = vsel %vm88, %v55, 0
  %v213 = vsel %vm88, %v56, 0
  %v216 = vsel %vm88, %v57, 0
  %v219 = vsel %vm88, %v58, 0
  %v222 = vsel %vm88, %v59, 0
  %v225 = vsel %vm88, %v60, 0
  %v228 = vsel %vm88, %v61, 0
  %v231 = vsel %vm88, %v62, 0
  %v234 = vsel %vm88, %v63, 0
  %v237 = vsel %vm88, %v64, 0
  %v240 = vsel %vm88, %v65, 0
  %v243 = vsel %vm88, %v66, 0
  %v246 = vsel %vm88, %v67, 0
  %v249 = vsel %vm88, %v68, 0
  %v252 = vsel %vm88, %v69, 0
  %v255 = vsel %vm88, %v70, 0
  %v258 = vsel %vm88, %v71, 0
  %v261 = vsel %vm88, %v72, 0
  %v264 = vsel %vm88, %v73, 0
  %v267 = vsel %vm88, %v74, 0
  %v270 = vsel %vm88, %v75, 0
  %v273 = vsel %vm88, %v76, 0
  %v276 = vsel %vm88, %v77, 0
  %v279 = vsel %vm88, %v78, 0
  %vm281 = vcmask 1042432
  %v283 = vsel %vm281, %v82, 0
  %285 = vmatprep.subr.mxu0 0.0
  %286 = vmatpush1.msra.mxu0 %v79
  %287 = vmatprep.subr.mxu0 0.0
  %288 = vmatpush1.msra.mxu0 %v80
  %289 = vmatprep.subr.mxu0 0.0
  %290 = vmatpush1.msra.mxu0 %v81
  %291 = vmatprep.subr.mxu0 0.0
  %292 = vmatpush1.msra.mxu0 %v283
  %293 = vmatprep.subr.mxu0 0.0
  %294 = vmatpush1.msra.mxu0 0.0
  %295 = vmatprep.subr.mxu0 0.0
  %296 = vmatpush1.msra.mxu0 0.0
  %297 = vmatprep.subr.mxu0 0.0
  %298 = vmatpush1.msra.mxu0 0.0
  %299 = vmatprep.subr.mxu0 0.0
  %300 = vmatpush1.msra.mxu0 0.0
  %301 = vmatprep.subr.mxu0 0.0
  %302 = vmatpush1.msra.mxu0 0.0
  %303 = vmatprep.subr.mxu0 0.0
  %304 = vmatpush1.msra.mxu0 0.0
  %305 = vmatprep.subr.mxu0 0.0
  %306 = vmatpush1.msra.mxu0 0.0
  %307 = vmatprep.subr.mxu0 0.0
  %308 = vmatpush1.msra.mxu0 0.0
  %309 = vmatprep.subr.mxu0 0.0
  %310 = vmatpush1.msra.mxu0 0.0
  %311 = vmatprep.subr.mxu0 0.0
  %312 = vmatpush1.msra.mxu0 0.0
  %313 = vmatprep.subr.mxu0 0.0
  %314 = vmatpush1.msra.mxu0 0.0
  %315 = vmatprep.subr.mxu0 0.0
  %316 = vmatpush1.msra.mxu0 0.0
  %317 = vmatprep.subr.mxu0 0.0
  %318 = vmatpush1.msra.mxu0 0.0
  %319 = vmatprep.subr.mxu0 0.0
  %320 = vmatpush1.msra.mxu0 0.0
  %321 = vmatprep.subr.mxu0 0.0
  %322 = vmatpush1.msra.mxu0 0.0
  %323 = vmatprep.subr.mxu0 0.0
  %324 = vmatpush1.msra.mxu0 0.0
  %325 = vmatprep.subr.mxu0 0.0
  %326 = vmatpush1.msra.mxu0 0.0
  %327 = vmatprep.subr.mxu0 0.0
  %328 = vmatpush1.msra.mxu0 0.0
  %329 = vmatprep.subr.mxu0 0.0
  %330 = vmatpush1.msra.mxu0 0.0
  %331 = vmatprep.subr.mxu0 0.0
  %332 = vmatpush1.msra.mxu0 0.0
  %333 = vmatprep.subr.mxu0 0.0
  %334 = vmatpush1.msra.mxu0 0.0
  %335 = vmatprep.subr.mxu0 0.0
  %336 = vmatpush1.msra.mxu0 0.0
  %337 = vmatprep.subr.mxu0 0.0
  %338 = vmatpush1.msra.mxu0 0.0
  %339 = vmatprep.subr.mxu0 0.0
  %340 = vmatpush1.msra.mxu0 0.0
  %341 = vmatprep.subr.mxu0 0.0
  %342 = vmatpush1.msra.mxu0 0.0
  %343 = vmatprep.subr.mxu0 0.0
  %344 = vmatpush1.msra.mxu0 0.0
  %345 = vmatprep.subr.mxu0 0.0
  %346 = vmatpush1.msra.mxu0 0.0
  %347 = vmatprep.subr.mxu0 0.0
  %348 = vmatpush1.msra.mxu0 0.0
  %349 = vmatprep.mubr.f32.mxu0 0.0
  %350 = vmatmul.mubr.f32.gmra.mrb[0].mxu0 %v90
  %v351 = vpop.f32.mrb[0].mxu0
  %v352 = vadd.f32 %v87, %v351
  %v353 = vpop.f32.mrb[0].mxu0
  %354 = vmatprep.mubr.f32.mxu0 0.0
  %355 = vmatmul.mubr.f32.gmra.mrb[0].mxu0 %v93
  %v356 = vpop.f32.mrb[0].mxu0
  %v357 = vadd.f32 %v87, %v356
  %v358 = vpop.f32.mrb[0].mxu0
  %359 = vmatprep.mubr.f32.mxu0 0.0
  %360 = vmatmul.mubr.f32.gmra.mrb[0].mxu0 %v96
  %v361 = vpop.f32.mrb[0].mxu0
  %v362 = vadd.f32 %v87, %v361
  %v363 = vpop.f32.mrb[0].mxu0
  %364 = vmatprep.mubr.f32.mxu0 0.0
  %365 = vmatmul.mubr.f32.gmra.mrb[0].mxu0 %v99
  %v366 = vpop.f32.mrb[0].mxu0
  %v367 = vadd.f32 %v87, %v366
  %v368 = vpop.f32.mrb[0].mxu0
  %369 = vmatprep.mubr.f32.mxu0 0.0
  %370 = vmatmul.mubr.f32.gmra.mrb[0].mxu0 %v102
  %v371 = vpop.f32.mrb[0].mxu0
  %v372 = vadd.f32 %v87, %v371
  %v373 = vpop.f32.mrb[0].mxu0
  %374 = vmatprep.mubr.f32.mxu0 0.0
  %375 = vmatmul.mubr.f32.gmra.mrb[0].mxu0 %v105
  %v376 = vpop.f32.mrb[0].mxu0
  %v377 = vadd.f32 %v87, %v376
  %v378 = vpop.f32.mrb[0].mxu0
  %379 = vmatprep.mubr.f32.mxu0 0.0
  %380 = vmatmul.mubr.f32.gmra.mrb[0].mxu0 %v108
  %v381 = vpop.f32.mrb[0].mxu0
  %v382 = vadd.f32 %v87, %v381
  %v383 = vpop.f32.mrb[0].mxu0
  %384 = vmatprep.mubr.f32.mxu0 0.0
  %385 = vmatmul.mubr.f32.gmra.mrb[0].mxu0 %v111
  %v386 = vpop.f32.mrb[0].mxu0
  %v387 = vadd.f32 %v87, %v386
  %v388 = vpop.f32.mrb[0].mxu0
  %389 = vmatprep.mubr.f32.mxu0 0.0
  %390 = vmatmul.mubr.f32.gmra.mrb[0].mxu0 %v114
  %v391 = vpop.f32.mrb[0].mxu0
  %v392 = vadd.f32 %v87, %v391
  %v393 = vpop.f32.mrb[0].mxu0
  %394 = vmatprep.mubr.f32.mxu0 0.0
  %395 = vmatmul.mubr.f32.gmra.mrb[0].mxu0 %v117
  %v396 = vpop.f32.mrb[0].mxu0
  %v397 = vadd.f32 %v87, %v396
  %v398 = vpop.f32.mrb[0].mxu0
  %399 = vmatprep.mubr.f32.mxu0 0.0
  %400 = vmatmul.mubr.f32.gmra.mrb[0].mxu0 %v120
  %v401 = vpop.f32.mrb[0].mxu0
  %v402 = vadd.f32 %v87, %v401
  %v403 = vpop.f32.mrb[0].mxu0
  %404 = vmatprep.mubr.f32.mxu0 0.0
  %405 = vmatmul.mubr.f32.gmra.mrb[0].mxu0 %v123
  %v406 = vpop.f32.mrb[0].mxu0
  %v407 = vadd.f32 %v87, %v406
  %v408 = vpop.f32.mrb[0].mxu0
  %409 = vmatprep.mubr.f32.mxu0 0.0
  %410 = vmatmul.mubr.f32.gmra.mrb[0].mxu0 %v126
  %v411 = vpop.f32.mrb[0].mxu0
  %v412 = vadd.f32 %v87, %v411
  %v413 = vpop.f32.mrb[0].mxu0
  %414 = vmatprep.mubr.f32.mxu0 0.0
  %415 = vmatmul.mubr.f32.gmra.mrb[0].mxu0 %v129
  %v416 = vpop.f32.mrb[0].mxu0
  %v417 = vadd.f32 %v87, %v416
  %v418 = vpop.f32.mrb[0].mxu0
  %419 = vmatprep.mubr.f32.mxu0 0.0
  %420 = vmatmul.mubr.f32.gmra.mrb[0].mxu0 %v132
  %v421 = vpop.f32.mrb[0].mxu0
  %v422 = vadd.f32 %v87, %v421
  %v423 = vpop.f32.mrb[0].mxu0
  %424 = vmatprep.mubr.f32.mxu0 0.0
  %425 = vmatmul.mubr.f32.gmra.mrb[0].mxu0 %v135
  %v426 = vpop.f32.mrb[0].mxu0
  %v427 = vadd.f32 %v87, %v426
  %v428 = vpop.f32.mrb[0].mxu0
  %429 = vmatprep.mubr.f32.mxu0 0.0
  %430 = vmatmul.mubr.f32.gmra.mrb[0].mxu0 %v138
  %v431 = vpop.f32.mrb[0].mxu0
  %v432 = vadd.f32 %v87, %v431
  %v433 = vpop.f32.mrb[0].mxu0
  %434 = vmatprep.mubr.f32.mxu0 0.0
  %435 = vmatmul.mubr.f32.gmra.mrb[0].mxu0 %v141
  %v436 = vpop.f32.mrb[0].mxu0
  %v437 = vadd.f32 %v87, %v436
  %v438 = vpop.f32.mrb[0].mxu0
  %439 = vmatprep.mubr.f32.mxu0 0.0
  %440 = vmatmul.mubr.f32.gmra.mrb[0].mxu0 %v144
  %v441 = vpop.f32.mrb[0].mxu0
  %v442 = vadd.f32 %v87, %v441
  %v443 = vpop.f32.mrb[0].mxu0
  %444 = vmatprep.mubr.f32.mxu0 0.0
  %445 = vmatmul.mubr.f32.gmra.mrb[0].mxu0 %v147
  %v446 = vpop.f32.mrb[0].mxu0
  %v447 = vadd.f32 %v87, %v446
  %v448 = vpop.f32.mrb[0].mxu0
  %449 = vmatprep.mubr.f32.mxu0 0.0
  %450 = vmatmul.mubr.f32.gmra.mrb[0].mxu0 %v150
  %v451 = vpop.f32.mrb[0].mxu0
  %v452 = vadd.f32 %v87, %v451
  %v453 = vpop.f32.mrb[0].mxu0
  %454 = vmatprep.mubr.f32.mxu0 0.0
  %455 = vmatmul.mubr.f32.gmra.mrb[0].mxu0 %v153
  %v456 = vpop.f32.mrb[0].mxu0
  %v457 = vadd.f32 %v87, %v456
  %v458 = vpop.f32.mrb[0].mxu0
  %459 = vmatprep.mubr.f32.mxu0 0.0
  %460 = vmatmul.mubr.f32.gmra.mrb[0].mxu0 %v156
  %v461 = vpop.f32.mrb[0].mxu0
  %v462 = vadd.f32 %v87, %v461
  %v463 = vpop.f32.mrb[0].mxu0
  %464 = vmatprep.mubr.f32.mxu0 0.0
  %465 = vmatmul.mubr.f32.gmra.mrb[0].mxu0 %v159
  %v466 = vpop.f32.mrb[0].mxu0
  %v467 = vadd.f32 %v87, %v466
  %v468 = vpop.f32.mrb[0].mxu0
  %469 = vmatprep.mubr.f32.mxu0 0.0
  %470 = vmatmul.mubr.f32.gmra.mrb[0].mxu0 %v162
  %v471 = vpop.f32.mrb[0].mxu0
  %v472 = vadd.f32 %v87, %v471
  %v473 = vpop.f32.mrb[0].mxu0
  %474 = vmatprep.mubr.f32.mxu0 0.0
  %475 = vmatmul.mubr.f32.gmra.mrb[0].mxu0 %v165
  %v476 = vpop.f32.mrb[0].mxu0
  %v477 = vadd.f32 %v87, %v476
  %v478 = vpop.f32.mrb[0].mxu0
  %479 = vmatprep.mubr.f32.mxu0 0.0
  %480 = vmatmul.mubr.f32.gmra.mrb[0].mxu0 %v168
  %v481 = vpop.f32.mrb[0].mxu0
  %v482 = vadd.f32 %v87, %v481
  %v483 = vpop.f32.mrb[0].mxu0
  %484 = vmatprep.mubr.f32.mxu0 0.0
  %485 = vmatmul.mubr.f32.gmra.mrb[0].mxu0 %v171
  %v486 = vpop.f32.mrb[0].mxu0
  %v487 = vadd.f32 %v87, %v486
  %v488 = vpop.f32.mrb[0].mxu0
  %489 = vmatprep.mubr.f32.mxu0 0.0
  %490 = vmatmul.mubr.f32.gmra.mrb[0].mxu0 %v174
  %v491 = vpop.f32.mrb[0].mxu0
  %v492 = vadd.f32 %v87, %v491
  %v493 = vpop.f32.mrb[0].mxu0
  %494 = vmatprep.mubr.f32.mxu0 0.0
  %495 = vmatmul.mubr.f32.gmra.mrb[0].mxu0 %v177
  %v496 = vpop.f32.mrb[0].mxu0
  %v497 = vadd.f32 %v87, %v496
  %v498 = vpop.f32.mrb[0].mxu0
  %499 = vmatprep.mubr.f32.mxu0 0.0
  %500 = vmatmul.mubr.f32.gmra.mrb[0].mxu0 %v180
  %v501 = vpop.f32.mrb[0].mxu0
  %v502 = vadd.f32 %v87, %v501
  %v503 = vpop.f32.mrb[0].mxu0
  %504 = vmatprep.mubr.f32.mxu0 0.0
  %505 = vmatmul.mubr.f32.gmra.mrb[0].mxu0 %v183
  %v506 = vpop.f32.mrb[0].mxu0
  %v507 = vadd.f32 %v87, %v506
  %v508 = vpop.f32.mrb[0].mxu0
  %509 = vmatprep.mubr.f32.mxu0 0.0
  %510 = vmatmul.mubr.f32.gmra.mrb[0].mxu0 %v186
  %v511 = vpop.f32.mrb[0].mxu0
  %v512 = vadd.f32 %v87, %v511
  %v513 = vpop.f32.mrb[0].mxu0
  %514 = vmatprep.mubr.f32.mxu0 0.0
  %515 = vmatmul.mubr.f32.gmra.mrb[0].mxu0 %v189
  %v516 = vpop.f32.mrb[0].mxu0
  %v517 = vadd.f32 %v87, %v516
  %v518 = vpop.f32.mrb[0].mxu0
  %519 = vmatprep.mubr.f32.mxu0 0.0
  %520 = vmatmul.mubr.f32.gmra.mrb[0].mxu0 %v192
  %v521 = vpop.f32.mrb[0].mxu0
  %v522 = vadd.f32 %v87, %v521
  %v523 = vpop.f32.mrb[0].mxu0
  %524 = vmatprep.mubr.f32.mxu0 0.0
  %525 = vmatmul.mubr.f32.gmra.mrb[0].mxu0 %v195
  %v526 = vpop.f32.mrb[0].mxu0
  %v527 = vadd.f32 %v87, %v526
  %v528 = vpop.f32.mrb[0].mxu0
  %529 = vmatprep.mubr.f32.mxu0 0.0
  %530 = vmatmul.mubr.f32.gmra.mrb[0].mxu0 %v198
  %v531 = vpop.f32.mrb[0].mxu0
  %v532 = vadd.f32 %v87, %v531
  %v533 = vpop.f32.mrb[0].mxu0
  %534 = vmatprep.mubr.f32.mxu0 0.0
  %535 = vmatmul.mubr.f32.gmra.mrb[0].mxu0 %v201
  %v536 = vpop.f32.mrb[0].mxu0
  %v537 = vadd.f32 %v87, %v536
  %v538 = vpop.f32.mrb[0].mxu0
  %539 = vmatprep.mubr.f32.mxu0 0.0
  %540 = vmatmul.mubr.f32.gmra.mrb[0].mxu0 %v204
  %v541 = vpop.f32.mrb[0].mxu0
  %v542 = vadd.f32 %v87, %v541
  %v543 = vpop.f32.mrb[0].mxu0
  %544 = vmatprep.mubr.f32.mxu0 0.0
  %545 = vmatmul.mubr.f32.gmra.mrb[0].mxu0 %v207
  %v546 = vpop.f32.mrb[0].mxu0
  %v547 = vadd.f32 %v87, %v546
  %v548 = vpop.f32.mrb[0].mxu0
  %549 = vmatprep.mubr.f32.mxu0 0.0
  %550 = vmatmul.mubr.f32.gmra.mrb[0].mxu0 %v210
  %v551 = vpop.f32.mrb[0].mxu0
  %v552 = vadd.f32 %v87, %v551
  %v553 = vpop.f32.mrb[0].mxu0
  %554 = vmatprep.mubr.f32.mxu0 0.0
  %555 = vmatmul.mubr.f32.gmra.mrb[0].mxu0 %v213
  %v556 = vpop.f32.mrb[0].mxu0
  %v557 = vadd.f32 %v87, %v556
  %v558 = vpop.f32.mrb[0].mxu0
  %559 = vmatprep.mubr.f32.mxu0 0.0
  %560 = vmatmul.mubr.f32.gmra.mrb[0].mxu0 %v216
  %v561 = vpop.f32.mrb[0].mxu0
  %v562 = vadd.f32 %v87, %v561
  %v563 = vpop.f32.mrb[0].mxu0
  %564 = vmatprep.mubr.f32.mxu0 0.0
  %565 = vmatmul.mubr.f32.gmra.mrb[0].mxu0 %v219
  %v566 = vpop.f32.mrb[0].mxu0
  %v567 = vadd.f32 %v87, %v566
  %v568 = vpop.f32.mrb[0].mxu0
  %569 = vmatprep.mubr.f32.mxu0 0.0
  %570 = vmatmul.mubr.f32.gmra.mrb[0].mxu0 %v222
  %v571 = vpop.f32.mrb[0].mxu0
  %v572 = vadd.f32 %v87, %v571
  %v573 = vpop.f32.mrb[0].mxu0
  %574 = vmatprep.mubr.f32.mxu0 0.0
  %575 = vmatmul.mubr.f32.gmra.mrb[0].mxu0 %v225
  %v576 = vpop.f32.mrb[0].mxu0
  %v577 = vadd.f32 %v87, %v576
  %v578 = vpop.f32.mrb[0].mxu0
  %579 = vmatprep.mubr.f32.mxu0 0.0
  %580 = vmatmul.mubr.f32.gmra.mrb[0].mxu0 %v228
  %v581 = vpop.f32.mrb[0].mxu0
  %v582 = vadd.f32 %v87, %v581
  %v583 = vpop.f32.mrb[0].mxu0
  %584 = vmatprep.mubr.f32.mxu0 0.0
  %585 = vmatmul.mubr.f32.gmra.mrb[0].mxu0 %v231
  %v586 = vpop.f32.mrb[0].mxu0
  %v587 = vadd.f32 %v87, %v586
  %v588 = vpop.f32.mrb[0].mxu0
  %589 = vmatprep.mubr.f32.mxu0 0.0
  %590 = vmatmul.mubr.f32.gmra.mrb[0].mxu0 %v234
  %v591 = vpop.f32.mrb[0].mxu0
  %v592 = vadd.f32 %v87, %v591
  %v593 = vpop.f32.mrb[0].mxu0
  %594 = vmatprep.mubr.f32.mxu0 0.0
  %595 = vmatmul.mubr.f32.gmra.mrb[0].mxu0 %v237
  %v596 = vpop.f32.mrb[0].mxu0
  %v597 = vadd.f32 %v87, %v596
  %v598 = vpop.f32.mrb[0].mxu0
  %599 = vmatprep.mubr.f32.mxu0 0.0
  %600 = vmatmul.mubr.f32.gmra.mrb[0].mxu0 %v240
  %v601 = vpop.f32.mrb[0].mxu0
  %v602 = vadd.f32 %v87, %v601
  %v603 = vpop.f32.mrb[0].mxu0
  %604 = vmatprep.mubr.f32.mxu0 0.0
  %605 = vmatmul.mubr.f32.gmra.mrb[0].mxu0 %v243
  %v606 = vpop.f32.mrb[0].mxu0
  %v607 = vadd.f32 %v87, %v606
  %v608 = vpop.f32.mrb[0].mxu0
  %609 = vmatprep.mubr.f32.mxu0 0.0
  %610 = vmatmul.mubr.f32.gmra.mrb[0].mxu0 %v246
  %v611 = vpop.f32.mrb[0].mxu0
  %v612 = vadd.f32 %v87, %v611
  %v613 = vpop.f32.mrb[0].mxu0
  %614 = vmatprep.mubr.f32.mxu0 0.0
  %615 = vmatmul.mubr.f32.gmra.mrb[0].mxu0 %v249
  %v616 = vpop.f32.mrb[0].mxu0
  %v617 = vadd.f32 %v87, %v616
  %v618 = vpop.f32.mrb[0].mxu0
  %619 = vmatprep.mubr.f32.mxu0 0.0
  %620 = vmatmul.mubr.f32.gmra.mrb[0].mxu0 %v252
  %v621 = vpop.f32.mrb[0].mxu0
  %v622 = vadd.f32 %v87, %v621
  %v623 = vpop.f32.mrb[0].mxu0
  %624 = vmatprep.mubr.f32.mxu0 0.0
  %625 = vmatmul.mubr.f32.gmra.mrb[0].mxu0 %v255
  %v626 = vpop.f32.mrb[0].mxu0
  %v627 = vadd.f32 %v87, %v626
  %v628 = vpop.f32.mrb[0].mxu0
  %629 = vmatprep.mubr.f32.mxu0 0.0
  %630 = vmatmul.mubr.f32.gmra.mrb[0].mxu0 %v258
  %v631 = vpop.f32.mrb[0].mxu0
  %v632 = vadd.f32 %v87, %v631
  %v633 = vpop.f32.mrb[0].mxu0
  %634 = vmatprep.mubr.f32.mxu0 0.0
  %635 = vmatmul.mubr.f32.gmra.mrb[0].mxu0 %v261
  %v636 = vpop.f32.mrb[0].mxu0
  %v637 = vadd.f32 %v87, %v636
  %v638 = vpop.f32.mrb[0].mxu0
  %639 = vmatprep.mubr.f32.mxu0 0.0
  %640 = vmatmul.mubr.f32.gmra.mrb[0].mxu0 %v264
  %v641 = vpop.f32.mrb[0].mxu0
  %v642 = vadd.f32 %v87, %v641
  %v643 = vpop.f32.mrb[0].mxu0
  %644 = vmatprep.mubr.f32.mxu0 0.0
  %645 = vmatmul.mubr.f32.gmra.mrb[0].mxu0 %v267
  %v646 = vpop.f32.mrb[0].mxu0
  %v647 = vadd.f32 %v87, %v646
  %v648 = vpop.f32.mrb[0].mxu0
  %649 = vmatprep.mubr.f32.mxu0 0.0
  %650 = vmatmul.mubr.f32.gmra.mrb[0].mxu0 %v270
  %v651 = vpop.f32.mrb[0].mxu0
  %v652 = vadd.f32 %v87, %v651
  %v653 = vpop.f32.mrb[0].mxu0
  %654 = vmatprep.mubr.f32.mxu0 0.0
  %655 = vmatmul.mubr.f32.gmra.mrb[0].mxu0 %v273
  %v656 = vpop.f32.mrb[0].mxu0
  %v657 = vadd.f32 %v87, %v656
  %v658 = vpop.f32.mrb[0].mxu0
  %659 = vmatprep.mubr.f32.mxu0 0.0
  %660 = vmatmul.mubr.f32.gmra.mrb[0].mxu0 %v276
  %v661 = vpop.f32.mrb[0].mxu0
  %v662 = vadd.f32 %v87, %v661
  %v663 = vpop.f32.mrb[0].mxu0
  %664 = vmatprep.mubr.f32.mxu0 0.0
  %665 = vmatmul.mubr.f32.gmra.mrb[0].mxu0 %v279
  %v666 = vpop.f32.mrb[0].mxu0
  %v667 = vadd.f32 %v87, %v666
  %v668 = vpop.f32.mrb[0].mxu0
  %669 = vdwg.mxu0
  %v670 = vmax.f32 %v352, 0.0
  %v671 = vmax.f32 %v357, 0.0
  %v672 = vmax.f32 %v362, 0.0
  %v673 = vmax.f32 %v367, 0.0
  %v674 = vmax.f32 %v372, 0.0
  %v675 = vmax.f32 %v377, 0.0
  %v676 = vmax.f32 %v382, 0.0
  %v677 = vmax.f32 %v387, 0.0
  %v678 = vmax.f32 %v392, 0.0
  %v679 = vmax.f32 %v397, 0.0
  %v680 = vmax.f32 %v402, 0.0
  %v681 = vmax.f32 %v407, 0.0
  %v682 = vmax.f32 %v412, 0.0
  %v683 = vmax.f32 %v417, 0.0
  %v684 = vmax.f32 %v422, 0.0
  %v685 = vmax.f32 %v427, 0.0
  %v686 = vmax.f32 %v432, 0.0
  %v687 = vmax.f32 %v437, 0.0
  %v688 = vmax.f32 %v442, 0.0
  %v689 = vmax.f32 %v447, 0.0
  %v690 = vmax.f32 %v452, 0.0
  %v691 = vmax.f32 %v457, 0.0
  %v692 = vmax.f32 %v462, 0.0
  %v693 = vmax.f32 %v467, 0.0
  %v694 = vmax.f32 %v472, 0.0
  %v695 = vmax.f32 %v477, 0.0
  %v696 = vmax.f32 %v482, 0.0
  %v697 = vmax.f32 %v487, 0.0
  %v698 = vmax.f32 %v492, 0.0
  %v699 = vmax.f32 %v497, 0.0
  %v700 = vmax.f32 %v502, 0.0
  %v701 = vmax.f32 %v507, 0.0
  %v702 = vmax.f32 %v512, 0.0
  %v703 = vmax.f32 %v517, 0.0
  %v704 = vmax.f32 %v522, 0.0
  %v705 = vmax.f32 %v527, 0.0
  %v706 = vmax.f32 %v532, 0.0
  %v707 = vmax.f32 %v537, 0.0
  %v708 = vmax.f32 %v542, 0.0
  %v709 = vmax.f32 %v547, 0.0
  %v710 = vmax.f32 %v552, 0.0
  %v711 = vmax.f32 %v557, 0.0
  %v712 = vmax.f32 %v562, 0.0
  %v713 = vmax.f32 %v567, 0.0
  %v714 = vmax.f32 %v572, 0.0
  %v715 = vmax.f32 %v577, 0.0
  %v716 = vmax.f32 %v582, 0.0
  %v717 = vmax.f32 %v587, 0.0
  %v718 = vmax.f32 %v592, 0.0
  %v719 = vmax.f32 %v597, 0.0
  %v720 = vmax.f32 %v602, 0.0
  %v721 = vmax.f32 %v607, 0.0
  %v722 = vmax.f32 %v612, 0.0
  %v723 = vmax.f32 %v617, 0.0
  %v724 = vmax.f32 %v622, 0.0
  %v725 = vmax.f32 %v627, 0.0
  %v726 = vmax.f32 %v632, 0.0
  %v727 = vmax.f32 %v637, 0.0
  %v728 = vmax.f32 %v642, 0.0
  %v729 = vmax.f32 %v647, 0.0
  %v730 = vmax.f32 %v652, 0.0
  %v731 = vmax.f32 %v657, 0.0
  %v732 = vmax.f32 %v662, 0.0
  %v733 = vmax.f32 %v667, 0.0
  %v734 = vld [vmem:[%s2 + $0x20] sm:$0xff]
  %v735 = vld [vmem:[%s2 + $0x28] sm:$0x1]
  %v736 = vlaneseq
  %v737 = vshrl.u32 %v736, 7
  %v738 = vsub.s32 0, %v737
  %v739 = vrot.slane %v734, %v738
  %v740 = vmul.f32 %v670, %v739
  %v741 = vmul.f32 %v671, %v739
  %v742 = vmul.f32 %v672, %v739
  %v743 = vmul.f32 %v673, %v739
  %v744 = vmul.f32 %v674, %v739
  %v745 = vmul.f32 %v675, %v739
  %v746 = vmul.f32 %v676, %v739
  %v747 = vmul.f32 %v677, %v739
  %v748 = vmul.f32 %v678, %v739
  %v749 = vmul.f32 %v679, %v739
  %v750 = vmul.f32 %v680, %v739
  %v751 = vmul.f32 %v681, %v739
  %v752 = vmul.f32 %v682, %v739
  %v753 = vmul.f32 %v683, %v739
  %v754 = vmul.f32 %v684, %v739
  %v755 = vmul.f32 %v685, %v739
  %v756 = vmul.f32 %v686, %v739
  %v757 = vmul.f32 %v687, %v739
  %v758 = vmul.f32 %v688, %v739
  %v759 = vmul.f32 %v689, %v739
  %v760 = vmul.f32 %v690, %v739
  %v761 = vmul.f32 %v691, %v739
  %v762 = vmul.f32 %v692, %v739
  %v763 = vmul.f32 %v693, %v739
  %v764 = vmul.f32 %v694, %v739
  %v765 = vmul.f32 %v695, %v739
  %v766 = vmul.f32 %v696, %v739
  %v767 = vmul.f32 %v697, %v739
  %v768 = vmul.f32 %v698, %v739
  %v769 = vmul.f32 %v699, %v739
  %v770 = vmul.f32 %v700, %v739
  %v771 = vmul.f32 %v701, %v739
  %v772 = vmul.f32 %v702, %v739
  %v773 = vmul.f32 %v703, %v739
  %v774 = vmul.f32 %v704, %v739
  %v775 = vmul.f32 %v705, %v739
  %v776 = vmul.f32 %v706, %v739
  %v777 = vmul.f32 %v707, %v739
  %v778 = vmul.f32 %v708, %v739
  %v779 = vmul.f32 %v709, %v739
  %v780 = vmul.f32 %v710, %v739
  %v781 = vmul.f32 %v711, %v739
  %v782 = vmul.f32 %v712, %v739
  %v783 = vmul.f32 %v713, %v739
  %v784 = vmul.f32 %v714, %v739
  %v785 = vmul.f32 %v715, %v739
  %v786 = vmul.f32 %v716, %v739
  %v787 = vmul.f32 %v717, %v739
  %v788 = vmul.f32 %v718, %v739
  %v789 = vmul.f32 %v719, %v739
  %v790 = vmul.f32 %v720, %v739
  %v791 = vmul.f32 %v721, %v739
  %v792 = vmul.f32 %v722, %v739
  %v793 = vmul.f32 %v723, %v739
  %v794 = vmul.f32 %v724, %v739
  %v795 = vmul.f32 %v725, %v739
  %v796 = vmul.f32 %v726, %v739
  %v797 = vmul.f32 %v727, %v739
  %v798 = vmul.f32 %v728, %v739
  %v799 = vmul.f32 %v729, %v739
  %v800 = vmul.f32 %v730, %v739
  %v801 = vmul.f32 %v731, %v739
  %v802 = vmul.f32 %v732, %v739
  %v803 = vmul.f32 %v733, %v739
  %v804 = vlaneseq
  %v805 = vshrl.u32 %v804, 7
  %v806 = vsub.s32 1, %v805
  %v807 = vrot.slane %v734, %v806
  %v808 = vmul.f32 %v670, %v807
  %v809 = vmul.f32 %v671, %v807
  %v810 = vmul.f32 %v672, %v807
  %v811 = vmul.f32 %v673, %v807
  %v812 = vmul.f32 %v674, %v807
  %v813 = vmul.f32 %v675, %v807
  %v814 = vmul.f32 %v676, %v807
  %v815 = vmul.f32 %v677, %v807
  %v816 = vmul.f32 %v678, %v807
  %v817 = vmul.f32 %v679, %v807
  %v818 = vmul.f32 %v680, %v807
  %v819 = vmul.f32 %v681, %v807
  %v820 = vmul.f32 %v682, %v807
  %v821 = vmul.f32 %v683, %v807
  %v822 = vmul.f32 %v684, %v807
  %v823 = vmul.f32 %v685, %v807
  %v824 = vmul.f32 %v686, %v807
  %v825 = vmul.f32 %v687, %v807
  %v826 = vmul.f32 %v688, %v807
  %v827 = vmul.f32 %v689, %v807
  %v828 = vmul.f32 %v690, %v807
  %v829 = vmul.f32 %v691, %v807
  %v830 = vmul.f32 %v692, %v807
  %v831 = vmul.f32 %v693, %v807
  %v832 = vmul.f32 %v694, %v807
  %v833 = vmul.f32 %v695, %v807
  %v834 = vmul.f32 %v696, %v807
  %v835 = vmul.f32 %v697, %v807
  %v836 = vmul.f32 %v698, %v807
  %v837 = vmul.f32 %v699, %v807
  %v838 = vmul.f32 %v700, %v807
  %v839 = vmul.f32 %v701, %v807
  %v840 = vmul.f32 %v702, %v807
  %v841 = vmul.f32 %v703, %v807
  %v842 = vmul.f32 %v704, %v807
  %v843 = vmul.f32 %v705, %v807
  %v844 = vmul.f32 %v706, %v807
  %v845 = vmul.f32 %v707, %v807
  %v846 = vmul.f32 %v708, %v807
  %v847 = vmul.f32 %v709, %v807
  %v848 = vmul.f32 %v710, %v807
  %v849 = vmul.f32 %v711, %v807
  %v850 = vmul.f32 %v712, %v807
  %v851 = vmul.f32 %v713, %v807
  %v852 = vmul.f32 %v714, %v807
  %v853 = vmul.f32 %v715, %v807
  %v854 = vmul.f32 %v716, %v807
  %v855 = vmul.f32 %v717, %v807
  %v856 = vmul.f32 %v718, %v807
  %v857 = vmul.f32 %v719, %v807
  %v858 = vmul.f32 %v720, %v807
  %v859 = vmul.f32 %v721, %v807
  %v860 = vmul.f32 %v722, %v807
  %v861 = vmul.f32 %v723, %v807
  %v862 = vmul.f32 %v724, %v807
  %v863 = vmul.f32 %v725, %v807
  %v864 = vmul.f32 %v726, %v807
  %v865 = vmul.f32 %v727, %v807
  %v866 = vmul.f32 %v728, %v807
  %v867 = vmul.f32 %v729, %v807
  %v868 = vmul.f32 %v730, %v807
  %v869 = vmul.f32 %v731, %v807
  %v870 = vmul.f32 %v732, %v807
  %v871 = vmul.f32 %v733, %v807
  %v872 = vlaneseq
  %v873 = vshrl.u32 %v872, 7
  %v874 = vsub.s32 2, %v873
  %v875 = vrot.slane %v734, %v874
  %v876 = vmul.f32 %v670, %v875
  %v877 = vmul.f32 %v671, %v875
  %v878 = vmul.f32 %v672, %v875
  %v879 = vmul.f32 %v673, %v875
  %v880 = vmul.f32 %v674, %v875
  %v881 = vmul.f32 %v675, %v875
  %v882 = vmul.f32 %v676, %v875
  %v883 = vmul.f32 %v677, %v875
  %v884 = vmul.f32 %v678, %v875
  %v885 = vmul.f32 %v679, %v875
  %v886 = vmul.f32 %v680, %v875
  %v887 = vmul.f32 %v681, %v875
  %v888 = vmul.f32 %v682, %v875
  %v889 = vmul.f32 %v683, %v875
  %v890 = vmul.f32 %v684, %v875
  %v891 = vmul.f32 %v685, %v875
  %v892 = vmul.f32 %v686, %v875
  %v893 = vmul.f32 %v687, %v875
  %v894 = vmul.f32 %v688, %v875
  %v895 = vmul.f32 %v689, %v875
  %v896 = vmul.f32 %v690, %v875
  %v897 = vmul.f32 %v691, %v875
  %v898 = vmul.f32 %v692, %v875
  %v899 = vmul.f32 %v693, %v875
  %v900 = vmul.f32 %v694, %v875
  %v901 = vmul.f32 %v695, %v875
  %v902 = vmul.f32 %v696, %v875
  %v903 = vmul.f32 %v697, %v875
  %v904 = vmul.f32 %v698, %v875
  %v905 = vmul.f32 %v699, %v875
  %v906 = vmul.f32 %v700, %v875
  %v907 = vmul.f32 %v701, %v875
  %v908 = vmul.f32 %v702, %v875
  %v909 = vmul.f32 %v703, %v875
  %v910 = vmul.f32 %v704, %v875
  %v911 = vmul.f32 %v705, %v875
  %v912 = vmul.f32 %v706, %v875
  %v913 = vmul.f32 %v707, %v875
  %v914 = vmul.f32 %v708, %v875
  %v915 = vmul.f32 %v709, %v875
  %v916 = vmul.f32 %v710, %v875
  %v917 = vmul.f32 %v711, %v875
  %v918 = vmul.f32 %v712, %v875
  %v919 = vmul.f32 %v713, %v875
  %v920 = vmul.f32 %v714, %v875
  %v921 = vmul.f32 %v715, %v875
  %v922 = vmul.f32 %v716, %v875
  %v923 = vmul.f32 %v717, %v875
  %v924 = vmul.f32 %v718, %v875
  %v925 = vmul.f32 %v719, %v875
  %v926 = vmul.f32 %v720, %v875
  %v927 = vmul.f32 %v721, %v875
  %v928 = vmul.f32 %v722, %v875
  %v929 = vmul.f32 %v723, %v875
  %v930 = vmul.f32 %v724, %v875
  %v931 = vmul.f32 %v725, %v875
  %v932 = vmul.f32 %v726, %v875
  %v933 = vmul.f32 %v727, %v875
  %v934 = vmul.f32 %v728, %v875
  %v935 = vmul.f32 %v729, %v875
  %v936 = vmul.f32 %v730, %v875
  %v937 = vmul.f32 %v731, %v875
  %v938 = vmul.f32 %v732, %v875
  %v939 = vmul.f32 %v733, %v875
  %v940 = vlaneseq
  %v941 = vshrl.u32 %v940, 7
  %v942 = vsub.s32 3, %v941
  %v943 = vrot.slane %v734, %v942
  %v944 = vmul.f32 %v670, %v943
  %v945 = vmul.f32 %v671, %v943
  %v946 = vmul.f32 %v672, %v943
  %v947 = vmul.f32 %v673, %v943
  %v948 = vmul.f32 %v674, %v943
  %v949 = vmul.f32 %v675, %v943
  %v950 = vmul.f32 %v676, %v943
  %v951 = vmul.f32 %v677, %v943
  %v952 = vmul.f32 %v678, %v943
  %v953 = vmul.f32 %v679, %v943
  %v954 = vmul.f32 %v680, %v943
  %v955 = vmul.f32 %v681, %v943
  %v956 = vmul.f32 %v682, %v943
  %v957 = vmul.f32 %v683, %v943
  %v958 = vmul.f32 %v684, %v943
  %v959 = vmul.f32 %v685, %v943
  %v960 = vmul.f32 %v686, %v943
  %v961 = vmul.f32 %v687, %v943
  %v962 = vmul.f32 %v688, %v943
  %v963 = vmul.f32 %v689, %v943
  %v964 = vmul.f32 %v690, %v943
  %v965 = vmul.f32 %v691, %v943
  %v966 = vmul.f32 %v692, %v943
  %v967 = vmul.f32 %v693, %v943
  %v968 = vmul.f32 %v694, %v943
  %v969 = vmul.f32 %v695, %v943
  %v970 = vmul.f32 %v696, %v943
  %v971 = vmul.f32 %v697, %v943
  %v972 = vmul.f32 %v698, %v943
  %v973 = vmul.f32 %v699, %v943
  %v974 = vmul.f32 %v700, %v943
  %v975 = vmul.f32 %v701, %v943
  %v976 = vmul.f32 %v702, %v943
  %v977 = vmul.f32 %v703, %v943
  %v978 = vmul.f32 %v704, %v943
  %v979 = vmul.f32 %v705, %v943
  %v980 = vmul.f32 %v706, %v943
  %v981 = vmul.f32 %v707, %v943
  %v982 = vmul.f32 %v708, %v943
  %v983 = vmul.f32 %v709, %v943
  %v984 = vmul.f32 %v710, %v943
  %v985 = vmul.f32 %v711, %v943
  %v986 = vmul.f32 %v712, %v943
  %v987 = vmul.f32 %v713, %v943
  %v988 = vmul.f32 %v714, %v943
  %v989 = vmul.f32 %v715, %v943
  %v990 = vmul.f32 %v716, %v943
  %v991 = vmul.f32 %v717, %v943
  %v992 = vmul.f32 %v718, %v943
  %v993 = vmul.f32 %v719, %v943
  %v994 = vmul.f32 %v720, %v943
  %v995 = vmul.f32 %v721, %v943
  %v996 = vmul.f32 %v722, %v943
  %v997 = vmul.f32 %v723, %v943
  %v998 = vmul.f32 %v724, %v943
  %v999 = vmul.f32 %v725, %v943
  %v1000 = vmul.f32 %v726, %v943
  %v1001 = vmul.f32 %v727, %v943
  %v1002 = vmul.f32 %v728, %v943
  %v1003 = vmul.f32 %v729, %v943
  %v1004 = vmul.f32 %v730, %v943
  %v1005 = vmul.f32 %v731, %v943
  %v1006 = vmul.f32 %v732, %v943
  %v1007 = vmul.f32 %v733, %v943
  %v1008 = vlaneseq
  %v1009 = vshrl.u32 %v1008, 7
  %v1010 = vsub.s32 4, %v1009
  %v1011 = vrot.slane %v734, %v1010
  %v1012 = vmul.f32 %v670, %v1011
  %v1013 = vmul.f32 %v671, %v1011
  %v1014 = vmul.f32 %v672, %v1011
  %v1015 = vmul.f32 %v673, %v1011
  %v1016 = vmul.f32 %v674, %v1011
  %v1017 = vmul.f32 %v675, %v1011
  %v1018 = vmul.f32 %v676, %v1011
  %v1019 = vmul.f32 %v677, %v1011
  %v1020 = vmul.f32 %v678, %v1011
  %v1021 = vmul.f32 %v679, %v1011
  %v1022 = vmul.f32 %v680, %v1011
  %v1023 = vmul.f32 %v681, %v1011
  %v1024 = vmul.f32 %v682, %v1011
  %v1025 = vmul.f32 %v683, %v1011
  %v1026 = vmul.f32 %v684, %v1011
  %v1027 = vmul.f32 %v685, %v1011
  %v1028 = vmul.f32 %v686, %v1011
  %v1029 = vmul.f32 %v687, %v1011
  %v1030 = vmul.f32 %v688, %v1011
  %v1031 = vmul.f32 %v689, %v1011
  %v1032 = vmul.f32 %v690, %v1011
  %v1033 = vmul.f32 %v691, %v1011
  %v1034 = vmul.f32 %v692, %v1011
  %v1035 = vmul.f32 %v693, %v1011
  %v1036 = vmul.f32 %v694, %v1011
  %v1037 = vmul.f32 %v695, %v1011
  %v1038 = vmul.f32 %v696, %v1011
  %v1039 = vmul.f32 %v697, %v1011
  %v1040 = vmul.f32 %v698, %v1011
  %v1041 = vmul.f32 %v699, %v1011
  %v1042 = vmul.f32 %v700, %v1011
  %v1043 = vmul.f32 %v701, %v1011
  %v1044 = vmul.f32 %v702, %v1011
  %v1045 = vmul.f32 %v703, %v1011
  %v1046 = vmul.f32 %v704, %v1011
  %v1047 = vmul.f32 %v705, %v1011
  %v1048 = vmul.f32 %v706, %v1011
  %v1049 = vmul.f32 %v707, %v1011
  %v1050 = vmul.f32 %v708, %v1011
  %v1051 = vmul.f32 %v709, %v1011
  %v1052 = vmul.f32 %v710, %v1011
  %v1053 = vmul.f32 %v711, %v1011
  %v1054 = vmul.f32 %v712, %v1011
  %v1055 = vmul.f32 %v713, %v1011
  %v1056 = vmul.f32 %v714, %v1011
  %v1057 = vmul.f32 %v715, %v1011
  %v1058 = vmul.f32 %v716, %v1011
  %v1059 = vmul.f32 %v717, %v1011
  %v1060 = vmul.f32 %v718, %v1011
  %v1061 = vmul.f32 %v719, %v1011
  %v1062 = vmul.f32 %v720, %v1011
  %v1063 = vmul.f32 %v721, %v1011
  %v1064 = vmul.f32 %v722, %v1011
  %v1065 = vmul.f32 %v723, %v1011
  %v1066 = vmul.f32 %v724, %v1011
  %v1067 = vmul.f32 %v725, %v1011
  %v1068 = vmul.f32 %v726, %v1011
  %v1069 = vmul.f32 %v727, %v1011
  %v1070 = vmul.f32 %v728, %v1011
  %v1071 = vmul.f32 %v729, %v1011
  %v1072 = vmul.f32 %v730, %v1011
  %v1073 = vmul.f32 %v731, %v1011
  %v1074 = vmul.f32 %v732, %v1011
  %v1075 = vmul.f32 %v733, %v1011
  %v1076 = vlaneseq
  %v1077 = vshrl.u32 %v1076, 7
  %v1078 = vsub.s32 5, %v1077
  %v1079 = vrot.slane %v734, %v1078
  %v1080 = vmul.f32 %v670, %v1079
  %v1081 = vmul.f32 %v671, %v1079
  %v1082 = vmul.f32 %v672, %v1079
  %v1083 = vmul.f32 %v673, %v1079
  %v1084 = vmul.f32 %v674, %v1079
  %v1085 = vmul.f32 %v675, %v1079
  %v1086 = vmul.f32 %v676, %v1079
  %v1087 = vmul.f32 %v677, %v1079
  %v1088 = vmul.f32 %v678, %v1079
  %v1089 = vmul.f32 %v679, %v1079
  %v1090 = vmul.f32 %v680, %v1079
  %v1091 = vmul.f32 %v681, %v1079
  %v1092 = vmul.f32 %v682, %v1079
  %v1093 = vmul.f32 %v683, %v1079
  %v1094 = vmul.f32 %v684, %v1079
  %v1095 = vmul.f32 %v685, %v1079
  %v1096 = vmul.f32 %v686, %v1079
  %v1097 = vmul.f32 %v687, %v1079
  %v1098 = vmul.f32 %v688, %v1079
  %v1099 = vmul.f32 %v689, %v1079
  %v1100 = vmul.f32 %v690, %v1079
  %v1101 = vmul.f32 %v691, %v1079
  %v1102 = vmul.f32 %v692, %v1079
  %v1103 = vmul.f32 %v693, %v1079
  %v1104 = vmul.f32 %v694, %v1079
  %v1105 = vmul.f32 %v695, %v1079
  %v1106 = vmul.f32 %v696, %v1079
  %v1107 = vmul.f32 %v697, %v1079
  %v1108 = vmul.f32 %v698, %v1079
  %v1109 = vmul.f32 %v699, %v1079
  %v1110 = vmul.f32 %v700, %v1079
  %v1111 = vmul.f32 %v701, %v1079
  %v1112 = vmul.f32 %v702, %v1079
  %v1113 = vmul.f32 %v703, %v1079
  %v1114 = vmul.f32 %v704, %v1079
  %v1115 = vmul.f32 %v705, %v1079
  %v1116 = vmul.f32 %v706, %v1079
  %v1117 = vmul.f32 %v707, %v1079
  %v1118 = vmul.f32 %v708, %v1079
  %v1119 = vmul.f32 %v709, %v1079
  %v1120 = vmul.f32 %v710, %v1079
  %v1121 = vmul.f32 %v711, %v1079
  %v1122 = vmul.f32 %v712, %v1079
  %v1123 = vmul.f32 %v713, %v1079
  %v1124 = vmul.f32 %v714, %v1079
  %v1125 = vmul.f32 %v715, %v1079
  %v1126 = vmul.f32 %v716, %v1079
  %v1127 = vmul.f32 %v717, %v1079
  %v1128 = vmul.f32 %v718, %v1079
  %v1129 = vmul.f32 %v719, %v1079
  %v1130 = vmul.f32 %v720, %v1079
  %v1131 = vmul.f32 %v721, %v1079
  %v1132 = vmul.f32 %v722, %v1079
  %v1133 = vmul.f32 %v723, %v1079
  %v1134 = vmul.f32 %v724, %v1079
  %v1135 = vmul.f32 %v725, %v1079
  %v1136 = vmul.f32 %v726, %v1079
  %v1137 = vmul.f32 %v727, %v1079
  %v1138 = vmul.f32 %v728, %v1079
  %v1139 = vmul.f32 %v729, %v1079
  %v1140 = vmul.f32 %v730, %v1079
  %v1141 = vmul.f32 %v731, %v1079
  %v1142 = vmul.f32 %v732, %v1079
  %v1143 = vmul.f32 %v733, %v1079
  %v1144 = vlaneseq
  %v1145 = vshrl.u32 %v1144, 7
  %v1146 = vsub.s32 6, %v1145
  %v1147 = vrot.slane %v734, %v1146
  %v1148 = vmul.f32 %v670, %v1147
  %v1149 = vmul.f32 %v671, %v1147
  %v1150 = vmul.f32 %v672, %v1147
  %v1151 = vmul.f32 %v673, %v1147
  %v1152 = vmul.f32 %v674, %v1147
  %v1153 = vmul.f32 %v675, %v1147
  %v1154 = vmul.f32 %v676, %v1147
  %v1155 = vmul.f32 %v677, %v1147
  %v1156 = vmul.f32 %v678, %v1147
  %v1157 = vmul.f32 %v679, %v1147
  %v1158 = vmul.f32 %v680, %v1147
  %v1159 = vmul.f32 %v681, %v1147
  %v1160 = vmul.f32 %v682, %v1147
  %v1161 = vmul.f32 %v683, %v1147
  %v1162 = vmul.f32 %v684, %v1147
  %v1163 = vmul.f32 %v685, %v1147
  %v1164 = vmul.f32 %v686, %v1147
  %v1165 = vmul.f32 %v687, %v1147
  %v1166 = vmul.f32 %v688, %v1147
  %v1167 = vmul.f32 %v689, %v1147
  %v1168 = vmul.f32 %v690, %v1147
  %v1169 = vmul.f32 %v691, %v1147
  %v1170 = vmul.f32 %v692, %v1147
  %v1171 = vmul.f32 %v693, %v1147
  %v1172 = vmul.f32 %v694, %v1147
  %v1173 = vmul.f32 %v695, %v1147
  %v1174 = vmul.f32 %v696, %v1147
  %v1175 = vmul.f32 %v697, %v1147
  %v1176 = vmul.f32 %v698, %v1147
  %v1177 = vmul.f32 %v699, %v1147
  %v1178 = vmul.f32 %v700, %v1147
  %v1179 = vmul.f32 %v701, %v1147
  %v1180 = vmul.f32 %v702, %v1147
  %v1181 = vmul.f32 %v703, %v1147
  %v1182 = vmul.f32 %v704, %v1147
  %v1183 = vmul.f32 %v705, %v1147
  %v1184 = vmul.f32 %v706, %v1147
  %v1185 = vmul.f32 %v707, %v1147
  %v1186 = vmul.f32 %v708, %v1147
  %v1187 = vmul.f32 %v709, %v1147
  %v1188 = vmul.f32 %v710, %v1147
  %v1189 = vmul.f32 %v711, %v1147
  %v1190 = vmul.f32 %v712, %v1147
  %v1191 = vmul.f32 %v713, %v1147
  %v1192 = vmul.f32 %v714, %v1147
  %v1193 = vmul.f32 %v715, %v1147
  %v1194 = vmul.f32 %v716, %v1147
  %v1195 = vmul.f32 %v717, %v1147
  %v1196 = vmul.f32 %v718, %v1147
  %v1197 = vmul.f32 %v719, %v1147
  %v1198 = vmul.f32 %v720, %v1147
  %v1199 = vmul.f32 %v721, %v1147
  %v1200 = vmul.f32 %v722, %v1147
  %v1201 = vmul.f32 %v723, %v1147
  %v1202 = vmul.f32 %v724, %v1147
  %v1203 = vmul.f32 %v725, %v1147
  %v1204 = vmul.f32 %v726, %v1147
  %v1205 = vmul.f32 %v727, %v1147
  %v1206 = vmul.f32 %v728, %v1147
  %v1207 = vmul.f32 %v729, %v1147
  %v1208 = vmul.f32 %v730, %v1147
  %v1209 = vmul.f32 %v731, %v1147
  %v1210 = vmul.f32 %v732, %v1147
  %v1211 = vmul.f32 %v733, %v1147
  %v1212 = vlaneseq
  %v1213 = vshrl.u32 %v1212, 7
  %v1214 = vsub.s32 7, %v1213
  %v1215 = vrot.slane %v734, %v1214
  %v1216 = vmul.f32 %v670, %v1215
  %v1217 = vmul.f32 %v671, %v1215
  %v1218 = vmul.f32 %v672, %v1215
  %v1219 = vmul.f32 %v673, %v1215
  %v1220 = vmul.f32 %v674, %v1215
  %v1221 = vmul.f32 %v675, %v1215
  %v1222 = vmul.f32 %v676, %v1215
  %v1223 = vmul.f32 %v677, %v1215
  %v1224 = vmul.f32 %v678, %v1215
  %v1225 = vmul.f32 %v679, %v1215
  %v1226 = vmul.f32 %v680, %v1215
  %v1227 = vmul.f32 %v681, %v1215
  %v1228 = vmul.f32 %v682, %v1215
  %v1229 = vmul.f32 %v683, %v1215
  %v1230 = vmul.f32 %v684, %v1215
  %v1231 = vmul.f32 %v685, %v1215
  %v1232 = vmul.f32 %v686, %v1215
  %v1233 = vmul.f32 %v687, %v1215
  %v1234 = vmul.f32 %v688, %v1215
  %v1235 = vmul.f32 %v689, %v1215
  %v1236 = vmul.f32 %v690, %v1215
  %v1237 = vmul.f32 %v691, %v1215
  %v1238 = vmul.f32 %v692, %v1215
  %v1239 = vmul.f32 %v693, %v1215
  %v1240 = vmul.f32 %v694, %v1215
  %v1241 = vmul.f32 %v695, %v1215
  %v1242 = vmul.f32 %v696, %v1215
  %v1243 = vmul.f32 %v697, %v1215
  %v1244 = vmul.f32 %v698, %v1215
  %v1245 = vmul.f32 %v699, %v1215
  %v1246 = vmul.f32 %v700, %v1215
  %v1247 = vmul.f32 %v701, %v1215
  %v1248 = vmul.f32 %v702, %v1215
  %v1249 = vmul.f32 %v703, %v1215
  %v1250 = vmul.f32 %v704, %v1215
  %v1251 = vmul.f32 %v705, %v1215
  %v1252 = vmul.f32 %v706, %v1215
  %v1253 = vmul.f32 %v707, %v1215
  %v1254 = vmul.f32 %v708, %v1215
  %v1255 = vmul.f32 %v709, %v1215
  %v1256 = vmul.f32 %v710, %v1215
  %v1257 = vmul.f32 %v711, %v1215
  %v1258 = vmul.f32 %v712, %v1215
  %v1259 = vmul.f32 %v713, %v1215
  %v1260 = vmul.f32 %v714, %v1215
  %v1261 = vmul.f32 %v715, %v1215
  %v1262 = vmul.f32 %v716, %v1215
  %v1263 = vmul.f32 %v717, %v1215
  %v1264 = vmul.f32 %v718, %v1215
  %v1265 = vmul.f32 %v719, %v1215
  %v1266 = vmul.f32 %v720, %v1215
  %v1267 = vmul.f32 %v721, %v1215
  %v1268 = vmul.f32 %v722, %v1215
  %v1269 = vmul.f32 %v723, %v1215
  %v1270 = vmul.f32 %v724, %v1215
  %v1271 = vmul.f32 %v725, %v1215
  %v1272 = vmul.f32 %v726, %v1215
  %v1273 = vmul.f32 %v727, %v1215
  %v1274 = vmul.f32 %v728, %v1215
  %v1275 = vmul.f32 %v729, %v1215
  %v1276 = vmul.f32 %v730, %v1215
  %v1277 = vmul.f32 %v731, %v1215
  %v1278 = vmul.f32 %v732, %v1215
  %v1279 = vmul.f32 %v733, %v1215
  %v1280 = vlaneseq
  %v1281 = vshrl.u32 %v1280, 7
  %v1282 = vsub.s32 0, %v1281
  %v1283 = vrot.slane %v735, %v1282
  %v1284 = vmul.f32 %v670, %v1283
  %v1285 = vmul.f32 %v671, %v1283
  %v1286 = vmul.f32 %v672, %v1283
  %v1287 = vmul.f32 %v673, %v1283
  %v1288 = vmul.f32 %v674, %v1283
  %v1289 = vmul.f32 %v675, %v1283
  %v1290 = vmul.f32 %v676, %v1283
  %v1291 = vmul.f32 %v677, %v1283
  %v1292 = vmul.f32 %v678, %v1283
  %v1293 = vmul.f32 %v679, %v1283
  %v1294 = vmul.f32 %v680, %v1283
  %v1295 = vmul.f32 %v681, %v1283
  %v1296 = vmul.f32 %v682, %v1283
  %v1297 = vmul.f32 %v683, %v1283
  %v1298 = vmul.f32 %v684, %v1283
  %v1299 = vmul.f32 %v685, %v1283
  %v1300 = vmul.f32 %v686, %v1283
  %v1301 = vmul.f32 %v687, %v1283
  %v1302 = vmul.f32 %v688, %v1283
  %v1303 = vmul.f32 %v689, %v1283
  %v1304 = vmul.f32 %v690, %v1283
  %v1305 = vmul.f32 %v691, %v1283
  %v1306 = vmul.f32 %v692, %v1283
  %v1307 = vmul.f32 %v693, %v1283
  %v1308 = vmul.f32 %v694, %v1283
  %v1309 = vmul.f32 %v695, %v1283
  %v1310 = vmul.f32 %v696, %v1283
  %v1311 = vmul.f32 %v697, %v1283
  %v1312 = vmul.f32 %v698, %v1283
  %v1313 = vmul.f32 %v699, %v1283
  %v1314 = vmul.f32 %v700, %v1283
  %v1315 = vmul.f32 %v701, %v1283
  %v1316 = vmul.f32 %v702, %v1283
  %v1317 = vmul.f32 %v703, %v1283
  %v1318 = vmul.f32 %v704, %v1283
  %v1319 = vmul.f32 %v705, %v1283
  %v1320 = vmul.f32 %v706, %v1283
  %v1321 = vmul.f32 %v707, %v1283
  %v1322 = vmul.f32 %v708, %v1283
  %v1323 = vmul.f32 %v709, %v1283
  %v1324 = vmul.f32 %v710, %v1283
  %v1325 = vmul.f32 %v711, %v1283
  %v1326 = vmul.f32 %v712, %v1283
  %v1327 = vmul.f32 %v713, %v1283
  %v1328 = vmul.f32 %v714, %v1283
  %v1329 = vmul.f32 %v715, %v1283
  %v1330 = vmul.f32 %v716, %v1283
  %v1331 = vmul.f32 %v717, %v1283
  %v1332 = vmul.f32 %v718, %v1283
  %v1333 = vmul.f32 %v719, %v1283
  %v1334 = vmul.f32 %v720, %v1283
  %v1335 = vmul.f32 %v721, %v1283
  %v1336 = vmul.f32 %v722, %v1283
  %v1337 = vmul.f32 %v723, %v1283
  %v1338 = vmul.f32 %v724, %v1283
  %v1339 = vmul.f32 %v725, %v1283
  %v1340 = vmul.f32 %v726, %v1283
  %v1341 = vmul.f32 %v727, %v1283
  %v1342 = vmul.f32 %v728, %v1283
  %v1343 = vmul.f32 %v729, %v1283
  %v1344 = vmul.f32 %v730, %v1283
  %v1345 = vmul.f32 %v731, %v1283
  %v1346 = vmul.f32 %v732, %v1283
  %v1347 = vmul.f32 %v733, %v1283
  %v1348 = vpack.c.bf16 %v741, %v740
  %v1349 = vpack.c.bf16 %v743, %v742
  %v1350 = vpack.c.bf16 %v745, %v744
  %v1351 = vpack.c.bf16 %v747, %v746
  %v1352 = vpack.c.bf16 %v749, %v748
  %v1353 = vpack.c.bf16 %v751, %v750
  %v1354 = vpack.c.bf16 %v753, %v752
  %v1355 = vpack.c.bf16 %v755, %v754
  %v1356 = vpack.c.bf16 %v757, %v756
  %v1357 = vpack.c.bf16 %v759, %v758
  %v1358 = vpack.c.bf16 %v761, %v760
  %v1359 = vpack.c.bf16 %v763, %v762
  %v1360 = vpack.c.bf16 %v765, %v764
  %v1361 = vpack.c.bf16 %v767, %v766
  %v1362 = vpack.c.bf16 %v769, %v768
  %v1363 = vpack.c.bf16 %v771, %v770
  %v1364 = vpack.c.bf16 %v773, %v772
  %v1365 = vpack.c.bf16 %v775, %v774
  %v1366 = vpack.c.bf16 %v777, %v776
  %v1367 = vpack.c.bf16 %v779, %v778
  %v1368 = vpack.c.bf16 %v781, %v780
  %v1369 = vpack.c.bf16 %v783, %v782
  %v1370 = vpack.c.bf16 %v785, %v784
  %v1371 = vpack.c.bf16 %v787, %v786
  %v1372 = vpack.c.bf16 %v789, %v788
  %v1373 = vpack.c.bf16 %v791, %v790
  %v1374 = vpack.c.bf16 %v793, %v792
  %v1375 = vpack.c.bf16 %v795, %v794
  %v1376 = vpack.c.bf16 %v797, %v796
  %v1377 = vpack.c.bf16 %v799, %v798
  %v1378 = vpack.c.bf16 %v801, %v800
  %v1379 = vpack.c.bf16 %v803, %v802
  %v1380 = vpack.c.bf16 %v809, %v808
  %v1381 = vpack.c.bf16 %v811, %v810
  %v1382 = vpack.c.bf16 %v813, %v812
  %v1383 = vpack.c.bf16 %v815, %v814
  %v1384 = vpack.c.bf16 %v817, %v816
  %v1385 = vpack.c.bf16 %v819, %v818
  %v1386 = vpack.c.bf16 %v821, %v820
  %v1387 = vpack.c.bf16 %v823, %v822
  %v1388 = vpack.c.bf16 %v825, %v824
  %v1389 = vpack.c.bf16 %v827, %v826
  %v1390 = vpack.c.bf16 %v829, %v828
  %v1391 = vpack.c.bf16 %v831, %v830
  %v1392 = vpack.c.bf16 %v833, %v832
  %v1393 = vpack.c.bf16 %v835, %v834
  %v1394 = vpack.c.bf16 %v837, %v836
  %v1395 = vpack.c.bf16 %v839, %v838
  %v1396 = vpack.c.bf16 %v841, %v840
  %v1397 = vpack.c.bf16 %v843, %v842
  %v1398 = vpack.c.bf16 %v845, %v844
  %v1399 = vpack.c.bf16 %v847, %v846
  %v1400 = vpack.c.bf16 %v849, %v848
  %v1401 = vpack.c.bf16 %v851, %v850
  %v1402 = vpack.c.bf16 %v853, %v852
  %v1403 = vpack.c.bf16 %v855, %v854
  %v1404 = vpack.c.bf16 %v857, %v856
  %v1405 = vpack.c.bf16 %v859, %v858
  %v1406 = vpack.c.bf16 %v861, %v860
  %v1407 = vpack.c.bf16 %v863, %v862
  %v1408 = vpack.c.bf16 %v865, %v864
  %v1409 = vpack.c.bf16 %v867, %v866
  %v1410 = vpack.c.bf16 %v869, %v868
  %v1411 = vpack.c.bf16 %v871, %v870
  %v1412 = vpack.c.bf16 %v877, %v876
  %v1413 = vpack.c.bf16 %v879, %v878
  %v1414 = vpack.c.bf16 %v881, %v880
  %v1415 = vpack.c.bf16 %v883, %v882
  %v1416 = vpack.c.bf16 %v885, %v884
  %v1417 = vpack.c.bf16 %v887, %v886
  %v1418 = vpack.c.bf16 %v889, %v888
  %v1419 = vpack.c.bf16 %v891, %v890
  %v1420 = vpack.c.bf16 %v893, %v892
  %v1421 = vpack.c.bf16 %v895, %v894
  %v1422 = vpack.c.bf16 %v897, %v896
  %v1423 = vpack.c.bf16 %v899, %v898
  %v1424 = vpack.c.bf16 %v901, %v900
  %v1425 = vpack.c.bf16 %v903, %v902
  %v1426 = vpack.c.bf16 %v905, %v904
  %v1427 = vpack.c.bf16 %v907, %v906
  %v1428 = vpack.c.bf16 %v909, %v908
  %v1429 = vpack.c.bf16 %v911, %v910
  %v1430 = vpack.c.bf16 %v913, %v912
  %v1431 = vpack.c.bf16 %v915, %v914
  %v1432 = vpack.c.bf16 %v917, %v916
  %v1433 = vpack.c.bf16 %v919, %v918
  %v1434 = vpack.c.bf16 %v921, %v920
  %v1435 = vpack.c.bf16 %v923, %v922
  %v1436 = vpack.c.bf16 %v925, %v924
  %v1437 = vpack.c.bf16 %v927, %v926
  %v1438 = vpack.c.bf16 %v929, %v928
  %v1439 = vpack.c.bf16 %v931, %v930
  %v1440 = vpack.c.bf16 %v933, %v932
  %v1441 = vpack.c.bf16 %v935, %v934
  %v1442 = vpack.c.bf16 %v937, %v936
  %v1443 = vpack.c.bf16 %v939, %v938
  %v1444 = vpack.c.bf16 %v945, %v944
  %v1445 = vpack.c.bf16 %v947, %v946
  %v1446 = vpack.c.bf16 %v949, %v948
  %v1447 = vpack.c.bf16 %v951, %v950
  %v1448 = vpack.c.bf16 %v953, %v952
  %v1449 = vpack.c.bf16 %v955, %v954
  %v1450 = vpack.c.bf16 %v957, %v956
  %v1451 = vpack.c.bf16 %v959, %v958
  %v1452 = vpack.c.bf16 %v961, %v960
  %v1453 = vpack.c.bf16 %v963, %v962
  %v1454 = vpack.c.bf16 %v965, %v964
  %v1455 = vpack.c.bf16 %v967, %v966
  %v1456 = vpack.c.bf16 %v969, %v968
  %v1457 = vpack.c.bf16 %v971, %v970
  %v1458 = vpack.c.bf16 %v973, %v972
  %v1459 = vpack.c.bf16 %v975, %v974
  %v1460 = vpack.c.bf16 %v977, %v976
  %v1461 = vpack.c.bf16 %v979, %v978
  %v1462 = vpack.c.bf16 %v981, %v980
  %v1463 = vpack.c.bf16 %v983, %v982
  %v1464 = vpack.c.bf16 %v985, %v984
  %v1465 = vpack.c.bf16 %v987, %v986
  %v1466 = vpack.c.bf16 %v989, %v988
  %v1467 = vpack.c.bf16 %v991, %v990
  %v1468 = vpack.c.bf16 %v993, %v992
  %v1469 = vpack.c.bf16 %v995, %v994
  %v1470 = vpack.c.bf16 %v997, %v996
  %v1471 = vpack.c.bf16 %v999, %v998
  %v1472 = vpack.c.bf16 %v1001, %v1000
  %v1473 = vpack.c.bf16 %v1003, %v1002
  %v1474 = vpack.c.bf16 %v1005, %v1004
  %v1475 = vpack.c.bf16 %v1007, %v1006
  %v1476 = vpack.c.bf16 %v1013, %v1012
  %v1477 = vpack.c.bf16 %v1015, %v1014
  %v1478 = vpack.c.bf16 %v1017, %v1016
  %v1479 = vpack.c.bf16 %v1019, %v1018
  %v1480 = vpack.c.bf16 %v1021, %v1020
  %v1481 = vpack.c.bf16 %v1023, %v1022
  %v1482 = vpack.c.bf16 %v1025, %v1024
  %v1483 = vpack.c.bf16 %v1027, %v1026
  %v1484 = vpack.c.bf16 %v1029, %v1028
  %v1485 = vpack.c.bf16 %v1031, %v1030
  %v1486 = vpack.c.bf16 %v1033, %v1032
  %v1487 = vpack.c.bf16 %v1035, %v1034
  %v1488 = vpack.c.bf16 %v1037, %v1036
  %v1489 = vpack.c.bf16 %v1039, %v1038
  %v1490 = vpack.c.bf16 %v1041, %v1040
  %v1491 = vpack.c.bf16 %v1043, %v1042
  %v1492 = vpack.c.bf16 %v1045, %v1044
  %v1493 = vpack.c.bf16 %v1047, %v1046
  %v1494 = vpack.c.bf16 %v1049, %v1048
  %v1495 = vpack.c.bf16 %v1051, %v1050
  %v1496 = vpack.c.bf16 %v1053, %v1052
  %v1497 = vpack.c.bf16 %v1055, %v1054
  %v1498 = vpack.c.bf16 %v1057, %v1056
  %v1499 = vpack.c.bf16 %v1059, %v1058
  %v1500 = vpack.c.bf16 %v1061, %v1060
  %v1501 = vpack.c.bf16 %v1063, %v1062
  %v1502 = vpack.c.bf16 %v1065, %v1064
  %v1503 = vpack.c.bf16 %v1067, %v1066
  %v1504 = vpack.c.bf16 %v1069, %v1068
  %v1505 = vpack.c.bf16 %v1071, %v1070
  %v1506 = vpack.c.bf16 %v1073, %v1072
  %v1507 = vpack.c.bf16 %v1075, %v1074
  %v1508 = vpack.c.bf16 %v1081, %v1080
  %v1509 = vpack.c.bf16 %v1083, %v1082
  %v1510 = vpack.c.bf16 %v1085, %v1084
  %v1511 = vpack.c.bf16 %v1087, %v1086
  %v1512 = vpack.c.bf16 %v1089, %v1088
  %v1513 = vpack.c.bf16 %v1091, %v1090
  %v1514 = vpack.c.bf16 %v1093, %v1092
  %v1515 = vpack.c.bf16 %v1095, %v1094
  %v1516 = vpack.c.bf16 %v1097, %v1096
  %v1517 = vpack.c.bf16 %v1099, %v1098
  %v1518 = vpack.c.bf16 %v1101, %v1100
  %v1519 = vpack.c.bf16 %v1103, %v1102
  %v1520 = vpack.c.bf16 %v1105, %v1104
  %v1521 = vpack.c.bf16 %v1107, %v1106
  %v1522 = vpack.c.bf16 %v1109, %v1108
  %v1523 = vpack.c.bf16 %v1111, %v1110
  %v1524 = vpack.c.bf16 %v1113, %v1112
  %v1525 = vpack.c.bf16 %v1115, %v1114
  %v1526 = vpack.c.bf16 %v1117, %v1116
  %v1527 = vpack.c.bf16 %v1119, %v1118
  %v1528 = vpack.c.bf16 %v1121, %v1120
  %v1529 = vpack.c.bf16 %v1123, %v1122
  %v1530 = vpack.c.bf16 %v1125, %v1124
  %v1531 = vpack.c.bf16 %v1127, %v1126
  %v1532 = vpack.c.bf16 %v1129, %v1128
  %v1533 = vpack.c.bf16 %v1131, %v1130
  %v1534 = vpack.c.bf16 %v1133, %v1132
  %v1535 = vpack.c.bf16 %v1135, %v1134
  %v1536 = vpack.c.bf16 %v1137, %v1136
  %v1537 = vpack.c.bf16 %v1139, %v1138
  %v1538 = vpack.c.bf16 %v1141, %v1140
  %v1539 = vpack.c.bf16 %v1143, %v1142
  %v1540 = vpack.c.bf16 %v1149, %v1148
  %v1541 = vpack.c.bf16 %v1151, %v1150
  %v1542 = vpack.c.bf16 %v1153, %v1152
  %v1543 = vpack.c.bf16 %v1155, %v1154
  %v1544 = vpack.c.bf16 %v1157, %v1156
  %v1545 = vpack.c.bf16 %v1159, %v1158
  %v1546 = vpack.c.bf16 %v1161, %v1160
  %v1547 = vpack.c.bf16 %v1163, %v1162
  %v1548 = vpack.c.bf16 %v1165, %v1164
  %v1549 = vpack.c.bf16 %v1167, %v1166
  %v1550 = vpack.c.bf16 %v1169, %v1168
  %v1551 = vpack.c.bf16 %v1171, %v1170
  %v1552 = vpack.c.bf16 %v1173, %v1172
  %v1553 = vpack.c.bf16 %v1175, %v1174
  %v1554 = vpack.c.bf16 %v1177, %v1176
  %v1555 = vpack.c.bf16 %v1179, %v1178
  %v1556 = vpack.c.bf16 %v1181, %v1180
  %v1557 = vpack.c.bf16 %v1183, %v1182
  %v1558 = vpack.c.bf16 %v1185, %v1184
  %v1559 = vpack.c.bf16 %v1187, %v1186
  %v1560 = vpack.c.bf16 %v1189, %v1188
  %v1561 = vpack.c.bf16 %v1191, %v1190
  %v1562 = vpack.c.bf16 %v1193, %v1192
  %v1563 = vpack.c.bf16 %v1195, %v1194
  %v1564 = vpack.c.bf16 %v1197, %v1196
  %v1565 = vpack.c.bf16 %v1199, %v1198
  %v1566 = vpack.c.bf16 %v1201, %v1200
  %v1567 = vpack.c.bf16 %v1203, %v1202
  %v1568 = vpack.c.bf16 %v1205, %v1204
  %v1569 = vpack.c.bf16 %v1207, %v1206
  %v1570 = vpack.c.bf16 %v1209, %v1208
  %v1571 = vpack.c.bf16 %v1211, %v1210
  %v1572 = vpack.c.bf16 %v1217, %v1216
  %v1573 = vpack.c.bf16 %v1219, %v1218
  %v1574 = vpack.c.bf16 %v1221, %v1220
  %v1575 = vpack.c.bf16 %v1223, %v1222
  %v1576 = vpack.c.bf16 %v1225, %v1224
  %v1577 = vpack.c.bf16 %v1227, %v1226
  %v1578 = vpack.c.bf16 %v1229, %v1228
  %v1579 = vpack.c.bf16 %v1231, %v1230
  %v1580 = vpack.c.bf16 %v1233, %v1232
  %v1581 = vpack.c.bf16 %v1235, %v1234
  %v1582 = vpack.c.bf16 %v1237, %v1236
  %v1583 = vpack.c.bf16 %v1239, %v1238
  %v1584 = vpack.c.bf16 %v1241, %v1240
  %v1585 = vpack.c.bf16 %v1243, %v1242
  %v1586 = vpack.c.bf16 %v1245, %v1244
  %v1587 = vpack.c.bf16 %v1247, %v1246
  %v1588 = vpack.c.bf16 %v1249, %v1248
  %v1589 = vpack.c.bf16 %v1251, %v1250
  %v1590 = vpack.c.bf16 %v1253, %v1252
  %v1591 = vpack.c.bf16 %v1255, %v1254
  %v1592 = vpack.c.bf16 %v1257, %v1256
  %v1593 = vpack.c.bf16 %v1259, %v1258
  %v1594 = vpack.c.bf16 %v1261, %v1260
  %v1595 = vpack.c.bf16 %v1263, %v1262
  %v1596 = vpack.c.bf16 %v1265, %v1264
  %v1597 = vpack.c.bf16 %v1267, %v1266
  %v1598 = vpack.c.bf16 %v1269, %v1268
  %v1599 = vpack.c.bf16 %v1271, %v1270
  %v1600 = vpack.c.bf16 %v1273, %v1272
  %v1601 = vpack.c.bf16 %v1275, %v1274
  %v1602 = vpack.c.bf16 %v1277, %v1276
  %v1603 = vpack.c.bf16 %v1279, %v1278
  %v1604 = vpack.c.bf16 %v1285, %v1284
  %v1605 = vpack.c.bf16 %v1287, %v1286
  %v1606 = vpack.c.bf16 %v1289, %v1288
  %v1607 = vpack.c.bf16 %v1291, %v1290
  %v1608 = vpack.c.bf16 %v1293, %v1292
  %v1609 = vpack.c.bf16 %v1295, %v1294
  %v1610 = vpack.c.bf16 %v1297, %v1296
  %v1611 = vpack.c.bf16 %v1299, %v1298
  %v1612 = vpack.c.bf16 %v1301, %v1300
  %v1613 = vpack.c.bf16 %v1303, %v1302
  %v1614 = vpack.c.bf16 %v1305, %v1304
  %v1615 = vpack.c.bf16 %v1307, %v1306
  %v1616 = vpack.c.bf16 %v1309, %v1308
  %v1617 = vpack.c.bf16 %v1311, %v1310
  %v1618 = vpack.c.bf16 %v1313, %v1312
  %v1619 = vpack.c.bf16 %v1315, %v1314
  %v1620 = vpack.c.bf16 %v1317, %v1316
  %v1621 = vpack.c.bf16 %v1319, %v1318
  %v1622 = vpack.c.bf16 %v1321, %v1320
  %v1623 = vpack.c.bf16 %v1323, %v1322
  %v1624 = vpack.c.bf16 %v1325, %v1324
  %v1625 = vpack.c.bf16 %v1327, %v1326
  %v1626 = vpack.c.bf16 %v1329, %v1328
  %v1627 = vpack.c.bf16 %v1331, %v1330
  %v1628 = vpack.c.bf16 %v1333, %v1332
  %v1629 = vpack.c.bf16 %v1335, %v1334
  %v1630 = vpack.c.bf16 %v1337, %v1336
  %v1631 = vpack.c.bf16 %v1339, %v1338
  %v1632 = vpack.c.bf16 %v1341, %v1340
  %v1633 = vpack.c.bf16 %v1343, %v1342
  %v1634 = vpack.c.bf16 %v1345, %v1344
  %v1635 = vpack.c.bf16 %v1347, %v1346
  %v1636 = vld [vmem:[%s1] sm:$0xff]
  %v1637 = vld [vmem:[%s1 + $0x8] sm:$0xff]
  %v1638 = vld [vmem:[%s1 + $0x10] sm:$0xff]
  %v1639 = vld [vmem:[%s1 + $0x18] sm:$0xff]
  %v1640 = vld [vmem:[%s1 + $0x20] sm:$0xff]
  %v1641 = vld [vmem:[%s1 + $0x28] sm:$0xff]
  %v1642 = vld [vmem:[%s1 + $0x30] sm:$0xff]
  %v1643 = vld [vmem:[%s1 + $0x38] sm:$0xff]
  %v1644 = vld [vmem:[%s1 + $0x40] sm:$0xff]
  %v1645 = vld [vmem:[%s1 + $0x48] sm:$0xff]
  %v1646 = vld [vmem:[%s1 + $0x50] sm:$0xff]
  %v1647 = vld [vmem:[%s1 + $0x58] sm:$0xff]
  %v1648 = vld [vmem:[%s1 + $0x60] sm:$0xff]
  %v1649 = vld [vmem:[%s1 + $0x68] sm:$0xff]
  %v1650 = vld [vmem:[%s1 + $0x70] sm:$0xff]
  %v1651 = vld [vmem:[%s1 + $0x78] sm:$0xff]
  %v1652 = vld [vmem:[%s1 + $0x80] sm:$0xff]
  %v1653 = vld [vmem:[%s1 + $0x88] sm:$0xff]
  %v1654 = vld [vmem:[%s1 + $0x90] sm:$0xff]
  %v1655 = vld [vmem:[%s1 + $0x98] sm:$0xff]
  %v1656 = vld [vmem:[%s1 + $0xa0] sm:$0xff]
  %v1657 = vld [vmem:[%s1 + $0xa8] sm:$0xff]
  %v1658 = vld [vmem:[%s1 + $0xb0] sm:$0xff]
  %v1659 = vld [vmem:[%s1 + $0xb8] sm:$0xff]
  %v1660 = vld [vmem:[%s1 + $0xc0] sm:$0xff]
  %v1661 = vld [vmem:[%s1 + $0xc8] sm:$0xff]
  %v1662 = vld [vmem:[%s1 + $0xd0] sm:$0xff]
  %v1663 = vld [vmem:[%s1 + $0xd8] sm:$0xff]
  %v1664 = vld [vmem:[%s1 + $0xe0] sm:$0xff]
  %v1665 = vld [vmem:[%s1 + $0xe8] sm:$0xff]
  %v1666 = vld [vmem:[%s1 + $0xf0] sm:$0xff]
  %v1667 = vld [vmem:[%s1 + $0xf8] sm:$0xff]
  %v1668 = vld [vmem:[%s1 + $0x100] sm:$0xff]
  %v1669 = vld [vmem:[%s1 + $0x108] sm:$0xff]
  %v1670 = vld [vmem:[%s1 + $0x110] sm:$0xff]
  %v1671 = vld [vmem:[%s1 + $0x118] sm:$0xff]
  %v1672 = vld [vmem:[%s1 + $0x120] sm:$0xff]
  %v1673 = vld [vmem:[%s1 + $0x128] sm:$0xff]
  %v1674 = vld [vmem:[%s1 + $0x130] sm:$0xff]
  %v1675 = vld [vmem:[%s1 + $0x138] sm:$0xff]
  %v1676 = vld [vmem:[%s1 + $0x140] sm:$0xff]
  %v1677 = vld [vmem:[%s1 + $0x148] sm:$0xff]
  %v1678 = vld [vmem:[%s1 + $0x150] sm:$0xff]
  %v1679 = vld [vmem:[%s1 + $0x158] sm:$0xff]
  %v1680 = vld [vmem:[%s1 + $0x160] sm:$0xff]
  %v1681 = vld [vmem:[%s1 + $0x168] sm:$0xff]
  %v1682 = vld [vmem:[%s1 + $0x170] sm:$0xff]
  %v1683 = vld [vmem:[%s1 + $0x178] sm:$0xff]
  %v1684 = vld [vmem:[%s1 + $0x180] sm:$0xff]
  %v1685 = vld [vmem:[%s1 + $0x188] sm:$0xff]
  %v1686 = vld [vmem:[%s1 + $0x190] sm:$0xff]
  %v1687 = vld [vmem:[%s1 + $0x198] sm:$0xff]
  %v1688 = vld [vmem:[%s1 + $0x1a0] sm:$0xff]
  %v1689 = vld [vmem:[%s1 + $0x1a8] sm:$0xff]
  %v1690 = vld [vmem:[%s1 + $0x1b0] sm:$0xff]
  %v1691 = vld [vmem:[%s1 + $0x1b8] sm:$0xff]
  %v1692 = vld [vmem:[%s1 + $0x1c0] sm:$0xff]
  %v1693 = vld [vmem:[%s1 + $0x1c8] sm:$0xff]
  %v1694 = vld [vmem:[%s1 + $0x1d0] sm:$0xff]
  %v1695 = vld [vmem:[%s1 + $0x1d8] sm:$0xff]
  %v1696 = vld [vmem:[%s1 + $0x1e0] sm:$0xff]
  %v1697 = vld [vmem:[%s1 + $0x1e8] sm:$0xff]
  %v1698 = vld [vmem:[%s1 + $0x1f0] sm:$0xff]
  %v1699 = vld [vmem:[%s1 + $0x1f8] sm:$0xff]
  %v1700 = vld [vmem:[%s1 + $0x200] sm:$0xff]
  %v1701 = vld [vmem:[%s1 + $0x208] sm:$0xff]
  %v1702 = vld [vmem:[%s1 + $0x210] sm:$0xff]
  %v1703 = vld [vmem:[%s1 + $0x218] sm:$0xff]
  %v1704 = vld [vmem:[%s1 + $0x220] sm:$0xff]
  %v1705 = vld [vmem:[%s1 + $0x228] sm:$0xff]
  %v1706 = vld [vmem:[%s1 + $0x230] sm:$0xff]
  %v1707 = vld [vmem:[%s1 + $0x238] sm:$0xff]
  %v1708 = vld [vmem:[%s1 + $0x240] sm:$0xff]
  %v1709 = vld [vmem:[%s1 + $0x248] sm:$0xff]
  %v1710 = vld [vmem:[%s1 + $0x250] sm:$0xff]
  %v1711 = vld [vmem:[%s1 + $0x258] sm:$0xff]
  %v1712 = vld [vmem:[%s1 + $0x260] sm:$0xff]
  %v1713 = vld [vmem:[%s1 + $0x268] sm:$0xff]
  %v1714 = vld [vmem:[%s1 + $0x270] sm:$0xff]
  %v1715 = vld [vmem:[%s1 + $0x278] sm:$0xff]
  %v1716 = vld [vmem:[%s1 + $0x280] sm:$0xff]
  %v1717 = vld [vmem:[%s1 + $0x288] sm:$0xff]
  %v1718 = vld [vmem:[%s1 + $0x290] sm:$0xff]
  %v1719 = vld [vmem:[%s1 + $0x298] sm:$0xff]
  %v1720 = vld [vmem:[%s1 + $0x2a0] sm:$0xff]
  %v1721 = vld [vmem:[%s1 + $0x2a8] sm:$0xff]
  %v1722 = vld [vmem:[%s1 + $0x2b0] sm:$0xff]
  %v1723 = vld [vmem:[%s1 + $0x2b8] sm:$0xff]
  %v1724 = vld [vmem:[%s1 + $0x2c0] sm:$0xff]
  %v1725 = vld [vmem:[%s1 + $0x2c8] sm:$0xff]
  %v1726 = vld [vmem:[%s1 + $0x2d0] sm:$0xff]
  %v1727 = vld [vmem:[%s1 + $0x2d8] sm:$0xff]
  %v1728 = vld [vmem:[%s1 + $0x2e0] sm:$0xff]
  %v1729 = vld [vmem:[%s1 + $0x2e8] sm:$0xff]
  %v1730 = vld [vmem:[%s1 + $0x2f0] sm:$0xff]
  %v1731 = vld [vmem:[%s1 + $0x2f8] sm:$0xff]
  %v1732 = vld [vmem:[%s1 + $0x300] sm:$0xff]
  %v1733 = vld [vmem:[%s1 + $0x308] sm:$0xff]
  %v1734 = vld [vmem:[%s1 + $0x310] sm:$0xff]
  %v1735 = vld [vmem:[%s1 + $0x318] sm:$0xff]
  %v1736 = vld [vmem:[%s1 + $0x320] sm:$0xff]
  %v1737 = vld [vmem:[%s1 + $0x328] sm:$0xff]
  %v1738 = vld [vmem:[%s1 + $0x330] sm:$0xff]
  %v1739 = vld [vmem:[%s1 + $0x338] sm:$0xff]
  %v1740 = vld [vmem:[%s1 + $0x340] sm:$0xff]
  %v1741 = vld [vmem:[%s1 + $0x348] sm:$0xff]
  %v1742 = vld [vmem:[%s1 + $0x350] sm:$0xff]
  %v1743 = vld [vmem:[%s1 + $0x358] sm:$0xff]
  %v1744 = vld [vmem:[%s1 + $0x360] sm:$0xff]
  %v1745 = vld [vmem:[%s1 + $0x368] sm:$0xff]
  %v1746 = vld [vmem:[%s1 + $0x370] sm:$0xff]
  %v1747 = vld [vmem:[%s1 + $0x378] sm:$0xff]
  %v1748 = vld [vmem:[%s1 + $0x380] sm:$0xff]
  %v1749 = vld [vmem:[%s1 + $0x388] sm:$0xff]
  %v1750 = vld [vmem:[%s1 + $0x390] sm:$0xff]
  %v1751 = vld [vmem:[%s1 + $0x398] sm:$0xff]
  %v1752 = vld [vmem:[%s1 + $0x3a0] sm:$0xff]
  %v1753 = vld [vmem:[%s1 + $0x3a8] sm:$0xff]
  %v1754 = vld [vmem:[%s1 + $0x3b0] sm:$0xff]
  %v1755 = vld [vmem:[%s1 + $0x3b8] sm:$0xff]
  %v1756 = vld [vmem:[%s1 + $0x3c0] sm:$0xff]
  %v1757 = vld [vmem:[%s1 + $0x3c8] sm:$0xff]
  %v1758 = vld [vmem:[%s1 + $0x3d0] sm:$0xff]
  %v1759 = vld [vmem:[%s1 + $0x3d8] sm:$0xff]
  %v1760 = vld [vmem:[%s1 + $0x3e0] sm:$0xff]
  %v1761 = vld [vmem:[%s1 + $0x3e8] sm:$0xff]
  %v1762 = vld [vmem:[%s1 + $0x3f0] sm:$0xff]
  %v1763 = vld [vmem:[%s1 + $0x3f8] sm:$0xff]
  %v1764 = vld [vmem:[%s1 + $0x400] sm:$0xff]
  %v1765 = vld [vmem:[%s1 + $0x408] sm:$0xff]
  %v1766 = vld [vmem:[%s1 + $0x410] sm:$0xff]
  %v1767 = vld [vmem:[%s1 + $0x418] sm:$0xff]
  %v1768 = vld [vmem:[%s1 + $0x420] sm:$0xff]
  %v1769 = vld [vmem:[%s1 + $0x428] sm:$0xff]
  %v1770 = vld [vmem:[%s1 + $0x430] sm:$0xff]
  %v1771 = vld [vmem:[%s1 + $0x438] sm:$0xff]
  %v1772 = vld [vmem:[%s1 + $0x440] sm:$0xff]
  %v1773 = vld [vmem:[%s1 + $0x448] sm:$0xff]
  %v1774 = vld [vmem:[%s1 + $0x450] sm:$0xff]
  %v1775 = vld [vmem:[%s1 + $0x458] sm:$0xff]
  %v1776 = vld [vmem:[%s1 + $0x460] sm:$0xff]
  %v1777 = vld [vmem:[%s1 + $0x468] sm:$0xff]
  %v1778 = vld [vmem:[%s1 + $0x470] sm:$0xff]
  %v1779 = vld [vmem:[%s1 + $0x478] sm:$0xff]
  %v1780 = vld [vmem:[%s1 + $0x480] sm:$0xff]
  %v1781 = vld [vmem:[%s1 + $0x488] sm:$0xff]
  %v1782 = vld [vmem:[%s1 + $0x490] sm:$0xff]
  %v1783 = vld [vmem:[%s1 + $0x498] sm:$0xff]
  %v1784 = vld [vmem:[%s1 + $0x4a0] sm:$0xff]
  %v1785 = vld [vmem:[%s1 + $0x4a8] sm:$0xff]
  %v1786 = vld [vmem:[%s1 + $0x4b0] sm:$0xff]
  %v1787 = vld [vmem:[%s1 + $0x4b8] sm:$0xff]
  %v1788 = vld [vmem:[%s1 + $0x4c0] sm:$0xff]
  %v1789 = vld [vmem:[%s1 + $0x4c8] sm:$0xff]
  %v1790 = vld [vmem:[%s1 + $0x4d0] sm:$0xff]
  %v1791 = vld [vmem:[%s1 + $0x4d8] sm:$0xff]
  %v1792 = vld [vmem:[%s1 + $0x4e0] sm:$0xff]
  %v1793 = vld [vmem:[%s1 + $0x4e8] sm:$0xff]
  %v1794 = vld [vmem:[%s1 + $0x4f0] sm:$0xff]
  %v1795 = vld [vmem:[%s1 + $0x4f8] sm:$0xff]
  %v1796 = vld [vmem:[%s1 + $0x500] sm:$0xff]
  %v1797 = vld [vmem:[%s1 + $0x508] sm:$0xff]
  %v1798 = vld [vmem:[%s1 + $0x510] sm:$0xff]
  %v1799 = vld [vmem:[%s1 + $0x518] sm:$0xff]
  %v1800 = vld [vmem:[%s1 + $0x520] sm:$0xff]
  %v1801 = vld [vmem:[%s1 + $0x528] sm:$0xff]
  %v1802 = vld [vmem:[%s1 + $0x530] sm:$0xff]
  %v1803 = vld [vmem:[%s1 + $0x538] sm:$0xff]
  %v1804 = vld [vmem:[%s1 + $0x540] sm:$0xff]
  %v1805 = vld [vmem:[%s1 + $0x548] sm:$0xff]
  %v1806 = vld [vmem:[%s1 + $0x550] sm:$0xff]
  %v1807 = vld [vmem:[%s1 + $0x558] sm:$0xff]
  %v1808 = vld [vmem:[%s1 + $0x560] sm:$0xff]
  %v1809 = vld [vmem:[%s1 + $0x568] sm:$0xff]
  %v1810 = vld [vmem:[%s1 + $0x570] sm:$0xff]
  %v1811 = vld [vmem:[%s1 + $0x578] sm:$0xff]
  %v1812 = vld [vmem:[%s1 + $0x580] sm:$0xff]
  %v1813 = vld [vmem:[%s1 + $0x588] sm:$0xff]
  %v1814 = vld [vmem:[%s1 + $0x590] sm:$0xff]
  %v1815 = vld [vmem:[%s1 + $0x598] sm:$0xff]
  %v1816 = vld [vmem:[%s1 + $0x5a0] sm:$0xff]
  %v1817 = vld [vmem:[%s1 + $0x5a8] sm:$0xff]
  %v1818 = vld [vmem:[%s1 + $0x5b0] sm:$0xff]
  %v1819 = vld [vmem:[%s1 + $0x5b8] sm:$0xff]
  %v1820 = vld [vmem:[%s1 + $0x5c0] sm:$0xff]
  %v1821 = vld [vmem:[%s1 + $0x5c8] sm:$0xff]
  %v1822 = vld [vmem:[%s1 + $0x5d0] sm:$0xff]
  %v1823 = vld [vmem:[%s1 + $0x5d8] sm:$0xff]
  %v1824 = vld [vmem:[%s1 + $0x5e0] sm:$0xff]
  %v1825 = vld [vmem:[%s1 + $0x5e8] sm:$0xff]
  %v1826 = vld [vmem:[%s1 + $0x5f0] sm:$0xff]
  %v1827 = vld [vmem:[%s1 + $0x5f8] sm:$0xff]
  %v1828 = vld [vmem:[%s1 + $0x600] sm:$0xff]
  %v1829 = vld [vmem:[%s1 + $0x608] sm:$0xff]
  %v1830 = vld [vmem:[%s1 + $0x610] sm:$0xff]
  %v1831 = vld [vmem:[%s1 + $0x618] sm:$0xff]
  %v1832 = vld [vmem:[%s1 + $0x620] sm:$0xff]
  %v1833 = vld [vmem:[%s1 + $0x628] sm:$0xff]
  %v1834 = vld [vmem:[%s1 + $0x630] sm:$0xff]
  %v1835 = vld [vmem:[%s1 + $0x638] sm:$0xff]
  %v1836 = vld [vmem:[%s1 + $0x640] sm:$0xff]
  %v1837 = vld [vmem:[%s1 + $0x648] sm:$0xff]
  %v1838 = vld [vmem:[%s1 + $0x650] sm:$0xff]
  %v1839 = vld [vmem:[%s1 + $0x658] sm:$0xff]
  %v1840 = vld [vmem:[%s1 + $0x660] sm:$0xff]
  %v1841 = vld [vmem:[%s1 + $0x668] sm:$0xff]
  %v1842 = vld [vmem:[%s1 + $0x670] sm:$0xff]
  %v1843 = vld [vmem:[%s1 + $0x678] sm:$0xff]
  %v1844 = vld [vmem:[%s1 + $0x680] sm:$0xff]
  %v1845 = vld [vmem:[%s1 + $0x688] sm:$0xff]
  %v1846 = vld [vmem:[%s1 + $0x690] sm:$0xff]
  %v1847 = vld [vmem:[%s1 + $0x698] sm:$0xff]
  %v1848 = vld [vmem:[%s1 + $0x6a0] sm:$0xff]
  %v1849 = vld [vmem:[%s1 + $0x6a8] sm:$0xff]
  %v1850 = vld [vmem:[%s1 + $0x6b0] sm:$0xff]
  %v1851 = vld [vmem:[%s1 + $0x6b8] sm:$0xff]
  %v1852 = vld [vmem:[%s1 + $0x6c0] sm:$0xff]
  %v1853 = vld [vmem:[%s1 + $0x6c8] sm:$0xff]
  %v1854 = vld [vmem:[%s1 + $0x6d0] sm:$0xff]
  %v1855 = vld [vmem:[%s1 + $0x6d8] sm:$0xff]
  %v1856 = vld [vmem:[%s1 + $0x6e0] sm:$0xff]
  %v1857 = vld [vmem:[%s1 + $0x6e8] sm:$0xff]
  %v1858 = vld [vmem:[%s1 + $0x6f0] sm:$0xff]
  %v1859 = vld [vmem:[%s1 + $0x6f8] sm:$0xff]
  %v1860 = vld [vmem:[%s1 + $0x700] sm:$0xff]
  %v1861 = vld [vmem:[%s1 + $0x708] sm:$0xff]
  %v1862 = vld [vmem:[%s1 + $0x710] sm:$0xff]
  %v1863 = vld [vmem:[%s1 + $0x718] sm:$0xff]
  %v1864 = vld [vmem:[%s1 + $0x720] sm:$0xff]
  %v1865 = vld [vmem:[%s1 + $0x728] sm:$0xff]
  %v1866 = vld [vmem:[%s1 + $0x730] sm:$0xff]
  %v1867 = vld [vmem:[%s1 + $0x738] sm:$0xff]
  %v1868 = vld [vmem:[%s1 + $0x740] sm:$0xff]
  %v1869 = vld [vmem:[%s1 + $0x748] sm:$0xff]
  %v1870 = vld [vmem:[%s1 + $0x750] sm:$0xff]
  %v1871 = vld [vmem:[%s1 + $0x758] sm:$0xff]
  %v1872 = vld [vmem:[%s1 + $0x760] sm:$0xff]
  %v1873 = vld [vmem:[%s1 + $0x768] sm:$0xff]
  %v1874 = vld [vmem:[%s1 + $0x770] sm:$0xff]
  %v1875 = vld [vmem:[%s1 + $0x778] sm:$0xff]
  %v1876 = vld [vmem:[%s1 + $0x780] sm:$0xff]
  %v1877 = vld [vmem:[%s1 + $0x788] sm:$0xff]
  %v1878 = vld [vmem:[%s1 + $0x790] sm:$0xff]
  %v1879 = vld [vmem:[%s1 + $0x798] sm:$0xff]
  %v1880 = vld [vmem:[%s1 + $0x7a0] sm:$0xff]
  %v1881 = vld [vmem:[%s1 + $0x7a8] sm:$0xff]
  %v1882 = vld [vmem:[%s1 + $0x7b0] sm:$0xff]
  %v1883 = vld [vmem:[%s1 + $0x7b8] sm:$0xff]
  %v1884 = vld [vmem:[%s1 + $0x7c0] sm:$0xff]
  %v1885 = vld [vmem:[%s1 + $0x7c8] sm:$0xff]
  %v1886 = vld [vmem:[%s1 + $0x7d0] sm:$0xff]
  %v1887 = vld [vmem:[%s1 + $0x7d8] sm:$0xff]
  %v1888 = vld [vmem:[%s1 + $0x7e0] sm:$0xff]
  %v1889 = vld [vmem:[%s1 + $0x7e8] sm:$0xff]
  %v1890 = vld [vmem:[%s1 + $0x7f0] sm:$0xff]
  %v1891 = vld [vmem:[%s1 + $0x7f8] sm:$0xff]
  %v1892 = vld [vmem:[%s1 + $0x800] sm:$0xff]
  %v1893 = vld [vmem:[%s1 + $0x808] sm:$0xff]
  %v1894 = vld [vmem:[%s1 + $0x810] sm:$0xff]
  %v1895 = vld [vmem:[%s1 + $0x818] sm:$0xff]
  %v1896 = vld [vmem:[%s1 + $0x820] sm:$0xff]
  %v1897 = vld [vmem:[%s1 + $0x828] sm:$0xff]
  %v1898 = vld [vmem:[%s1 + $0x830] sm:$0xff]
  %v1899 = vld [vmem:[%s1 + $0x838] sm:$0xff]
  %v1900 = vld [vmem:[%s1 + $0x840] sm:$0xff]
  %v1901 = vld [vmem:[%s1 + $0x848] sm:$0xff]
  %v1902 = vld [vmem:[%s1 + $0x850] sm:$0xff]
  %v1903 = vld [vmem:[%s1 + $0x858] sm:$0xff]
  %v1904 = vld [vmem:[%s1 + $0x860] sm:$0xff]
  %v1905 = vld [vmem:[%s1 + $0x868] sm:$0xff]
  %v1906 = vld [vmem:[%s1 + $0x870] sm:$0xff]
  %v1907 = vld [vmem:[%s1 + $0x878] sm:$0xff]
  %v1908 = vld [vmem:[%s1 + $0x880] sm:$0xff]
  %v1909 = vld [vmem:[%s1 + $0x888] sm:$0xff]
  %v1910 = vld [vmem:[%s1 + $0x890] sm:$0xff]
  %v1911 = vld [vmem:[%s1 + $0x898] sm:$0xff]
  %v1912 = vld [vmem:[%s1 + $0x8a0] sm:$0xff]
  %v1913 = vld [vmem:[%s1 + $0x8a8] sm:$0xff]
  %v1914 = vld [vmem:[%s1 + $0x8b0] sm:$0xff]
  %v1915 = vld [vmem:[%s1 + $0x8b8] sm:$0xff]
  %v1916 = vld [vmem:[%s1 + $0x8c0] sm:$0xff]
  %v1917 = vld [vmem:[%s1 + $0x8c8] sm:$0xff]
  %v1918 = vld [vmem:[%s1 + $0x8d0] sm:$0xff]
  %v1919 = vld [vmem:[%s1 + $0x8d8] sm:$0xff]
  %v1920 = vld [vmem:[%s1 + $0x8e0] sm:$0xff]
  %v1921 = vld [vmem:[%s1 + $0x8e8] sm:$0xff]
  %v1922 = vld [vmem:[%s1 + $0x8f0] sm:$0xff]
  %v1923 = vld [vmem:[%s1 + $0x8f8] sm:$0xff]
  %v1924 = vld [vmem:[%s2 + $0xe0] sm:$0x1]
  %v1925 = vlaneseq
  %v1926 = vshrl.u32 %v1925, 7
  %v1927 = vsub.s32 0, %v1926
  %v1928 = vrot.slane %v1924, %v1927
  %v2217 = vunpack.c.l.b16 %v1636
  %v2218 = vunpack.c.h.b16 %v1636
  %v2219 = vunpack.c.l.b16 %v1637
  %v2220 = vunpack.c.h.b16 %v1637
  %v2221 = vunpack.c.l.b16 %v1638
  %v2222 = vunpack.c.h.b16 %v1638
  %v2223 = vunpack.c.l.b16 %v1639
  %v2224 = vunpack.c.h.b16 %v1639
  %v2225 = vunpack.c.l.b16 %v1640
  %v2226 = vunpack.c.h.b16 %v1640
  %v2227 = vunpack.c.l.b16 %v1641
  %v2228 = vunpack.c.h.b16 %v1641
  %v2229 = vunpack.c.l.b16 %v1642
  %v2230 = vunpack.c.h.b16 %v1642
  %v2231 = vunpack.c.l.b16 %v1643
  %v2232 = vunpack.c.h.b16 %v1643
  %v2233 = vunpack.c.l.b16 %v1644
  %v2234 = vunpack.c.h.b16 %v1644
  %v2235 = vunpack.c.l.b16 %v1645
  %v2236 = vunpack.c.h.b16 %v1645
  %v2237 = vunpack.c.l.b16 %v1646
  %v2238 = vunpack.c.h.b16 %v1646
  %v2239 = vunpack.c.l.b16 %v1647
  %v2240 = vunpack.c.h.b16 %v1647
  %v2241 = vunpack.c.l.b16 %v1648
  %v2242 = vunpack.c.h.b16 %v1648
  %v2243 = vunpack.c.l.b16 %v1649
  %v2244 = vunpack.c.h.b16 %v1649
  %v2245 = vunpack.c.l.b16 %v1650
  %v2246 = vunpack.c.h.b16 %v1650
  %v2247 = vunpack.c.l.b16 %v1651
  %v2248 = vunpack.c.h.b16 %v1651
  %v2249 = vunpack.c.l.b16 %v1652
  %v2250 = vunpack.c.h.b16 %v1652
  %v2251 = vunpack.c.l.b16 %v1653
  %v2252 = vunpack.c.h.b16 %v1653
  %v2253 = vunpack.c.l.b16 %v1654
  %v2254 = vunpack.c.h.b16 %v1654
  %v2255 = vunpack.c.l.b16 %v1655
  %v2256 = vunpack.c.h.b16 %v1655
  %v2257 = vunpack.c.l.b16 %v1656
  %v2258 = vunpack.c.h.b16 %v1656
  %v2259 = vunpack.c.l.b16 %v1657
  %v2260 = vunpack.c.h.b16 %v1657
  %v2261 = vunpack.c.l.b16 %v1658
  %v2262 = vunpack.c.h.b16 %v1658
  %v2263 = vunpack.c.l.b16 %v1659
  %v2264 = vunpack.c.h.b16 %v1659
  %v2265 = vunpack.c.l.b16 %v1660
  %v2266 = vunpack.c.h.b16 %v1660
  %v2267 = vunpack.c.l.b16 %v1661
  %v2268 = vunpack.c.h.b16 %v1661
  %v2269 = vunpack.c.l.b16 %v1662
  %v2270 = vunpack.c.h.b16 %v1662
  %v2271 = vunpack.c.l.b16 %v1663
  %v2272 = vunpack.c.h.b16 %v1663
  %v2273 = vunpack.c.l.b16 %v1664
  %v2274 = vunpack.c.h.b16 %v1664
  %v2275 = vunpack.c.l.b16 %v1665
  %v2276 = vunpack.c.h.b16 %v1665
  %v2277 = vunpack.c.l.b16 %v1666
  %v2278 = vunpack.c.h.b16 %v1666
  %v2279 = vunpack.c.l.b16 %v1667
  %v2280 = vunpack.c.h.b16 %v1667
  %v2281 = vunpack.c.l.b16 %v1668
  %v2282 = vunpack.c.h.b16 %v1668
  %v2283 = vunpack.c.l.b16 %v1669
  %v2284 = vunpack.c.h.b16 %v1669
  %v2285 = vunpack.c.l.b16 %v1670
  %v2286 = vunpack.c.h.b16 %v1670
  %v2287 = vunpack.c.l.b16 %v1671
  %v2288 = vunpack.c.h.b16 %v1671
  %v2289 = vunpack.c.l.b16 %v1672
  %v2290 = vunpack.c.h.b16 %v1672
  %v2291 = vunpack.c.l.b16 %v1673
  %v2292 = vunpack.c.h.b16 %v1673
  %v2293 = vunpack.c.l.b16 %v1674
  %v2294 = vunpack.c.h.b16 %v1674
  %v2295 = vunpack.c.l.b16 %v1675
  %v2296 = vunpack.c.h.b16 %v1675
  %v2297 = vunpack.c.l.b16 %v1676
  %v2298 = vunpack.c.h.b16 %v1676
  %v2299 = vunpack.c.l.b16 %v1677
  %v2300 = vunpack.c.h.b16 %v1677
  %v2301 = vunpack.c.l.b16 %v1678
  %v2302 = vunpack.c.h.b16 %v1678
  %v2303 = vunpack.c.l.b16 %v1679
  %v2304 = vunpack.c.h.b16 %v1679
  %v2305 = vunpack.c.l.b16 %v1680
  %v2306 = vunpack.c.h.b16 %v1680
  %v2307 = vunpack.c.l.b16 %v1681
  %v2308 = vunpack.c.h.b16 %v1681
  %v2309 = vunpack.c.l.b16 %v1682
  %v2310 = vunpack.c.h.b16 %v1682
  %v2311 = vunpack.c.l.b16 %v1683
  %v2312 = vunpack.c.h.b16 %v1683
  %v2313 = vunpack.c.l.b16 %v1684
  %v2314 = vunpack.c.h.b16 %v1684
  %v2315 = vunpack.c.l.b16 %v1685
  %v2316 = vunpack.c.h.b16 %v1685
  %v2317 = vunpack.c.l.b16 %v1686
  %v2318 = vunpack.c.h.b16 %v1686
  %v2319 = vunpack.c.l.b16 %v1687
  %v2320 = vunpack.c.h.b16 %v1687
  %v2321 = vunpack.c.l.b16 %v1688
  %v2322 = vunpack.c.h.b16 %v1688
  %v2323 = vunpack.c.l.b16 %v1689
  %v2324 = vunpack.c.h.b16 %v1689
  %v2325 = vunpack.c.l.b16 %v1690
  %v2326 = vunpack.c.h.b16 %v1690
  %v2327 = vunpack.c.l.b16 %v1691
  %v2328 = vunpack.c.h.b16 %v1691
  %v2329 = vunpack.c.l.b16 %v1692
  %v2330 = vunpack.c.h.b16 %v1692
  %v2331 = vunpack.c.l.b16 %v1693
  %v2332 = vunpack.c.h.b16 %v1693
  %v2333 = vunpack.c.l.b16 %v1694
  %v2334 = vunpack.c.h.b16 %v1694
  %v2335 = vunpack.c.l.b16 %v1695
  %v2336 = vunpack.c.h.b16 %v1695
  %v2337 = vunpack.c.l.b16 %v1696
  %v2338 = vunpack.c.h.b16 %v1696
  %v2339 = vunpack.c.l.b16 %v1697
  %v2340 = vunpack.c.h.b16 %v1697
  %v2341 = vunpack.c.l.b16 %v1698
  %v2342 = vunpack.c.h.b16 %v1698
  %v2343 = vunpack.c.l.b16 %v1699
  %v2344 = vunpack.c.h.b16 %v1699
  %v2345 = vunpack.c.l.b16 %v1700
  %v2346 = vunpack.c.h.b16 %v1700
  %v2347 = vunpack.c.l.b16 %v1701
  %v2348 = vunpack.c.h.b16 %v1701
  %v2349 = vunpack.c.l.b16 %v1702
  %v2350 = vunpack.c.h.b16 %v1702
  %v2351 = vunpack.c.l.b16 %v1703
  %v2352 = vunpack.c.h.b16 %v1703
  %v2353 = vunpack.c.l.b16 %v1704
  %v2354 = vunpack.c.h.b16 %v1704
  %v2355 = vunpack.c.l.b16 %v1705
  %v2356 = vunpack.c.h.b16 %v1705
  %v2357 = vunpack.c.l.b16 %v1706
  %v2358 = vunpack.c.h.b16 %v1706
  %v2359 = vunpack.c.l.b16 %v1707
  %v2360 = vunpack.c.h.b16 %v1707
  %v2361 = vunpack.c.l.b16 %v1708
  %v2362 = vunpack.c.h.b16 %v1708
  %v2363 = vunpack.c.l.b16 %v1709
  %v2364 = vunpack.c.h.b16 %v1709
  %v2365 = vunpack.c.l.b16 %v1710
  %v2366 = vunpack.c.h.b16 %v1710
  %v2367 = vunpack.c.l.b16 %v1711
  %v2368 = vunpack.c.h.b16 %v1711
  %v2369 = vunpack.c.l.b16 %v1712
  %v2370 = vunpack.c.h.b16 %v1712
  %v2371 = vunpack.c.l.b16 %v1713
  %v2372 = vunpack.c.h.b16 %v1713
  %v2373 = vunpack.c.l.b16 %v1714
  %v2374 = vunpack.c.h.b16 %v1714
  %v2375 = vunpack.c.l.b16 %v1715
  %v2376 = vunpack.c.h.b16 %v1715
  %v2377 = vunpack.c.l.b16 %v1716
  %v2378 = vunpack.c.h.b16 %v1716
  %v2379 = vunpack.c.l.b16 %v1717
  %v2380 = vunpack.c.h.b16 %v1717
  %v2381 = vunpack.c.l.b16 %v1718
  %v2382 = vunpack.c.h.b16 %v1718
  %v2383 = vunpack.c.l.b16 %v1719
  %v2384 = vunpack.c.h.b16 %v1719
  %v2385 = vunpack.c.l.b16 %v1720
  %v2386 = vunpack.c.h.b16 %v1720
  %v2387 = vunpack.c.l.b16 %v1721
  %v2388 = vunpack.c.h.b16 %v1721
  %v2389 = vunpack.c.l.b16 %v1722
  %v2390 = vunpack.c.h.b16 %v1722
  %v2391 = vunpack.c.l.b16 %v1723
  %v2392 = vunpack.c.h.b16 %v1723
  %v2393 = vunpack.c.l.b16 %v1724
  %v2394 = vunpack.c.h.b16 %v1724
  %v2395 = vunpack.c.l.b16 %v1725
  %v2396 = vunpack.c.h.b16 %v1725
  %v2397 = vunpack.c.l.b16 %v1726
  %v2398 = vunpack.c.h.b16 %v1726
  %v2399 = vunpack.c.l.b16 %v1727
  %v2400 = vunpack.c.h.b16 %v1727
  %v2401 = vunpack.c.l.b16 %v1728
  %v2402 = vunpack.c.h.b16 %v1728
  %v2403 = vunpack.c.l.b16 %v1729
  %v2404 = vunpack.c.h.b16 %v1729
  %v2405 = vunpack.c.l.b16 %v1730
  %v2406 = vunpack.c.h.b16 %v1730
  %v2407 = vunpack.c.l.b16 %v1731
  %v2408 = vunpack.c.h.b16 %v1731
  %v2409 = vunpack.c.l.b16 %v1732
  %v2410 = vunpack.c.h.b16 %v1732
  %v2411 = vunpack.c.l.b16 %v1733
  %v2412 = vunpack.c.h.b16 %v1733
  %v2413 = vunpack.c.l.b16 %v1734
  %v2414 = vunpack.c.h.b16 %v1734
  %v2415 = vunpack.c.l.b16 %v1735
  %v2416 = vunpack.c.h.b16 %v1735
  %v2417 = vunpack.c.l.b16 %v1736
  %v2418 = vunpack.c.h.b16 %v1736
  %v2419 = vunpack.c.l.b16 %v1737
  %v2420 = vunpack.c.h.b16 %v1737
  %v2421 = vunpack.c.l.b16 %v1738
  %v2422 = vunpack.c.h.b16 %v1738
  %v2423 = vunpack.c.l.b16 %v1739
  %v2424 = vunpack.c.h.b16 %v1739
  %v2425 = vunpack.c.l.b16 %v1740
  %v2426 = vunpack.c.h.b16 %v1740
  %v2427 = vunpack.c.l.b16 %v1741
  %v2428 = vunpack.c.h.b16 %v1741
  %v2429 = vunpack.c.l.b16 %v1742
  %v2430 = vunpack.c.h.b16 %v1742
  %v2431 = vunpack.c.l.b16 %v1743
  %v2432 = vunpack.c.h.b16 %v1743
  %v2433 = vunpack.c.l.b16 %v1744
  %v2434 = vunpack.c.h.b16 %v1744
  %v2435 = vunpack.c.l.b16 %v1745
  %v2436 = vunpack.c.h.b16 %v1745
  %v2437 = vunpack.c.l.b16 %v1746
  %v2438 = vunpack.c.h.b16 %v1746
  %v2439 = vunpack.c.l.b16 %v1747
  %v2440 = vunpack.c.h.b16 %v1747
  %v2441 = vunpack.c.l.b16 %v1748
  %v2442 = vunpack.c.h.b16 %v1748
  %v2443 = vunpack.c.l.b16 %v1749
  %v2444 = vunpack.c.h.b16 %v1749
  %v2445 = vunpack.c.l.b16 %v1750
  %v2446 = vunpack.c.h.b16 %v1750
  %v2447 = vunpack.c.l.b16 %v1751
  %v2448 = vunpack.c.h.b16 %v1751
  %v2449 = vunpack.c.l.b16 %v1752
  %v2450 = vunpack.c.h.b16 %v1752
  %v2451 = vunpack.c.l.b16 %v1753
  %v2452 = vunpack.c.h.b16 %v1753
  %v2453 = vunpack.c.l.b16 %v1754
  %v2454 = vunpack.c.h.b16 %v1754
  %v2455 = vunpack.c.l.b16 %v1755
  %v2456 = vunpack.c.h.b16 %v1755
  %v2457 = vunpack.c.l.b16 %v1756
  %v2458 = vunpack.c.h.b16 %v1756
  %v2459 = vunpack.c.l.b16 %v1757
  %v2460 = vunpack.c.h.b16 %v1757
  %v2461 = vunpack.c.l.b16 %v1758
  %v2462 = vunpack.c.h.b16 %v1758
  %v2463 = vunpack.c.l.b16 %v1759
  %v2464 = vunpack.c.h.b16 %v1759
  %v2465 = vunpack.c.l.b16 %v1760
  %v2466 = vunpack.c.h.b16 %v1760
  %v2467 = vunpack.c.l.b16 %v1761
  %v2468 = vunpack.c.h.b16 %v1761
  %v2469 = vunpack.c.l.b16 %v1762
  %v2470 = vunpack.c.h.b16 %v1762
  %v2471 = vunpack.c.l.b16 %v1763
  %v2472 = vunpack.c.h.b16 %v1763
  %v2473 = vunpack.c.l.b16 %v1764
  %v2474 = vunpack.c.h.b16 %v1764
  %v2475 = vunpack.c.l.b16 %v1765
  %v2476 = vunpack.c.h.b16 %v1765
  %v2477 = vunpack.c.l.b16 %v1766
  %v2478 = vunpack.c.h.b16 %v1766
  %v2479 = vunpack.c.l.b16 %v1767
  %v2480 = vunpack.c.h.b16 %v1767
  %v2481 = vunpack.c.l.b16 %v1768
  %v2482 = vunpack.c.h.b16 %v1768
  %v2483 = vunpack.c.l.b16 %v1769
  %v2484 = vunpack.c.h.b16 %v1769
  %v2485 = vunpack.c.l.b16 %v1770
  %v2486 = vunpack.c.h.b16 %v1770
  %v2487 = vunpack.c.l.b16 %v1771
  %v2488 = vunpack.c.h.b16 %v1771
  %v2489 = vunpack.c.l.b16 %v1772
  %v2490 = vunpack.c.h.b16 %v1772
  %v2491 = vunpack.c.l.b16 %v1773
  %v2492 = vunpack.c.h.b16 %v1773
  %v2493 = vunpack.c.l.b16 %v1774
  %v2494 = vunpack.c.h.b16 %v1774
  %v2495 = vunpack.c.l.b16 %v1775
  %v2496 = vunpack.c.h.b16 %v1775
  %v2497 = vunpack.c.l.b16 %v1776
  %v2498 = vunpack.c.h.b16 %v1776
  %v2499 = vunpack.c.l.b16 %v1777
  %v2500 = vunpack.c.h.b16 %v1777
  %v2501 = vunpack.c.l.b16 %v1778
  %v2502 = vunpack.c.h.b16 %v1778
  %v2503 = vunpack.c.l.b16 %v1779
  %v2504 = vunpack.c.h.b16 %v1779
  %v2505 = vunpack.c.l.b16 %v1780
  %v2506 = vunpack.c.h.b16 %v1780
  %v2507 = vunpack.c.l.b16 %v1781
  %v2508 = vunpack.c.h.b16 %v1781
  %v2509 = vunpack.c.l.b16 %v1782
  %v2510 = vunpack.c.h.b16 %v1782
  %v2511 = vunpack.c.l.b16 %v1783
  %v2512 = vunpack.c.h.b16 %v1783
  %v2513 = vunpack.c.l.b16 %v1784
  %v2514 = vunpack.c.h.b16 %v1784
  %v2515 = vunpack.c.l.b16 %v1785
  %v2516 = vunpack.c.h.b16 %v1785
  %v2517 = vunpack.c.l.b16 %v1786
  %v2518 = vunpack.c.h.b16 %v1786
  %v2519 = vunpack.c.l.b16 %v1787
  %v2520 = vunpack.c.h.b16 %v1787
  %v2521 = vunpack.c.l.b16 %v1788
  %v2522 = vunpack.c.h.b16 %v1788
  %v2523 = vunpack.c.l.b16 %v1789
  %v2524 = vunpack.c.h.b16 %v1789
  %v2525 = vunpack.c.l.b16 %v1790
  %v2526 = vunpack.c.h.b16 %v1790
  %v2527 = vunpack.c.l.b16 %v1791
  %v2528 = vunpack.c.h.b16 %v1791
  %v2529 = vunpack.c.l.b16 %v1792
  %v2530 = vunpack.c.h.b16 %v1792
  %v2531 = vunpack.c.l.b16 %v1793
  %v2532 = vunpack.c.h.b16 %v1793
  %v2533 = vunpack.c.l.b16 %v1794
  %v2534 = vunpack.c.h.b16 %v1794
  %v2535 = vunpack.c.l.b16 %v1795
  %v2536 = vunpack.c.h.b16 %v1795
  %v2537 = vunpack.c.l.b16 %v1796
  %v2538 = vunpack.c.h.b16 %v1796
  %v2539 = vunpack.c.l.b16 %v1797
  %v2540 = vunpack.c.h.b16 %v1797
  %v2541 = vunpack.c.l.b16 %v1798
  %v2542 = vunpack.c.h.b16 %v1798
  %v2543 = vunpack.c.l.b16 %v1799
  %v2544 = vunpack.c.h.b16 %v1799
  %v2545 = vunpack.c.l.b16 %v1800
  %v2546 = vunpack.c.h.b16 %v1800
  %v2547 = vunpack.c.l.b16 %v1801
  %v2548 = vunpack.c.h.b16 %v1801
  %v2549 = vunpack.c.l.b16 %v1802
  %v2550 = vunpack.c.h.b16 %v1802
  %v2551 = vunpack.c.l.b16 %v1803
  %v2552 = vunpack.c.h.b16 %v1803
  %v2553 = vunpack.c.l.b16 %v1804
  %v2554 = vunpack.c.h.b16 %v1804
  %v2555 = vunpack.c.l.b16 %v1805
  %v2556 = vunpack.c.h.b16 %v1805
  %v2557 = vunpack.c.l.b16 %v1806
  %v2558 = vunpack.c.h.b16 %v1806
  %v2559 = vunpack.c.l.b16 %v1807
  %v2560 = vunpack.c.h.b16 %v1807
  %v2561 = vunpack.c.l.b16 %v1808
  %v2562 = vunpack.c.h.b16 %v1808
  %v2563 = vunpack.c.l.b16 %v1809
  %v2564 = vunpack.c.h.b16 %v1809
  %v2565 = vunpack.c.l.b16 %v1810
  %v2566 = vunpack.c.h.b16 %v1810
  %v2567 = vunpack.c.l.b16 %v1811
  %v2568 = vunpack.c.h.b16 %v1811
  %v2569 = vunpack.c.l.b16 %v1812
  %v2570 = vunpack.c.h.b16 %v1812
  %v2571 = vunpack.c.l.b16 %v1813
  %v2572 = vunpack.c.h.b16 %v1813
  %v2573 = vunpack.c.l.b16 %v1814
  %v2574 = vunpack.c.h.b16 %v1814
  %v2575 = vunpack.c.l.b16 %v1815
  %v2576 = vunpack.c.h.b16 %v1815
  %v2577 = vunpack.c.l.b16 %v1816
  %v2578 = vunpack.c.h.b16 %v1816
  %v2579 = vunpack.c.l.b16 %v1817
  %v2580 = vunpack.c.h.b16 %v1817
  %v2581 = vunpack.c.l.b16 %v1818
  %v2582 = vunpack.c.h.b16 %v1818
  %v2583 = vunpack.c.l.b16 %v1819
  %v2584 = vunpack.c.h.b16 %v1819
  %v2585 = vunpack.c.l.b16 %v1820
  %v2586 = vunpack.c.h.b16 %v1820
  %v2587 = vunpack.c.l.b16 %v1821
  %v2588 = vunpack.c.h.b16 %v1821
  %v2589 = vunpack.c.l.b16 %v1822
  %v2590 = vunpack.c.h.b16 %v1822
  %v2591 = vunpack.c.l.b16 %v1823
  %v2592 = vunpack.c.h.b16 %v1823
  %v2593 = vunpack.c.l.b16 %v1824
  %v2594 = vunpack.c.h.b16 %v1824
  %v2595 = vunpack.c.l.b16 %v1825
  %v2596 = vunpack.c.h.b16 %v1825
  %v2597 = vunpack.c.l.b16 %v1826
  %v2598 = vunpack.c.h.b16 %v1826
  %v2599 = vunpack.c.l.b16 %v1827
  %v2600 = vunpack.c.h.b16 %v1827
  %v2601 = vunpack.c.l.b16 %v1828
  %v2602 = vunpack.c.h.b16 %v1828
  %v2603 = vunpack.c.l.b16 %v1829
  %v2604 = vunpack.c.h.b16 %v1829
  %v2605 = vunpack.c.l.b16 %v1830
  %v2606 = vunpack.c.h.b16 %v1830
  %v2607 = vunpack.c.l.b16 %v1831
  %v2608 = vunpack.c.h.b16 %v1831
  %v2609 = vunpack.c.l.b16 %v1832
  %v2610 = vunpack.c.h.b16 %v1832
  %v2611 = vunpack.c.l.b16 %v1833
  %v2612 = vunpack.c.h.b16 %v1833
  %v2613 = vunpack.c.l.b16 %v1834
  %v2614 = vunpack.c.h.b16 %v1834
  %v2615 = vunpack.c.l.b16 %v1835
  %v2616 = vunpack.c.h.b16 %v1835
  %v2617 = vunpack.c.l.b16 %v1836
  %v2618 = vunpack.c.h.b16 %v1836
  %v2619 = vunpack.c.l.b16 %v1837
  %v2620 = vunpack.c.h.b16 %v1837
  %v2621 = vunpack.c.l.b16 %v1838
  %v2622 = vunpack.c.h.b16 %v1838
  %v2623 = vunpack.c.l.b16 %v1839
  %v2624 = vunpack.c.h.b16 %v1839
  %v2625 = vunpack.c.l.b16 %v1840
  %v2626 = vunpack.c.h.b16 %v1840
  %v2627 = vunpack.c.l.b16 %v1841
  %v2628 = vunpack.c.h.b16 %v1841
  %v2629 = vunpack.c.l.b16 %v1842
  %v2630 = vunpack.c.h.b16 %v1842
  %v2631 = vunpack.c.l.b16 %v1843
  %v2632 = vunpack.c.h.b16 %v1843
  %v2633 = vunpack.c.l.b16 %v1844
  %v2634 = vunpack.c.h.b16 %v1844
  %v2635 = vunpack.c.l.b16 %v1845
  %v2636 = vunpack.c.h.b16 %v1845
  %v2637 = vunpack.c.l.b16 %v1846
  %v2638 = vunpack.c.h.b16 %v1846
  %v2639 = vunpack.c.l.b16 %v1847
  %v2640 = vunpack.c.h.b16 %v1847
  %v2641 = vunpack.c.l.b16 %v1848
  %v2642 = vunpack.c.h.b16 %v1848
  %v2643 = vunpack.c.l.b16 %v1849
  %v2644 = vunpack.c.h.b16 %v1849
  %v2645 = vunpack.c.l.b16 %v1850
  %v2646 = vunpack.c.h.b16 %v1850
  %v2647 = vunpack.c.l.b16 %v1851
  %v2648 = vunpack.c.h.b16 %v1851
  %v2649 = vunpack.c.l.b16 %v1852
  %v2650 = vunpack.c.h.b16 %v1852
  %v2651 = vunpack.c.l.b16 %v1853
  %v2652 = vunpack.c.h.b16 %v1853
  %v2653 = vunpack.c.l.b16 %v1854
  %v2654 = vunpack.c.h.b16 %v1854
  %v2655 = vunpack.c.l.b16 %v1855
  %v2656 = vunpack.c.h.b16 %v1855
  %v2657 = vunpack.c.l.b16 %v1856
  %v2658 = vunpack.c.h.b16 %v1856
  %v2659 = vunpack.c.l.b16 %v1857
  %v2660 = vunpack.c.h.b16 %v1857
  %v2661 = vunpack.c.l.b16 %v1858
  %v2662 = vunpack.c.h.b16 %v1858
  %v2663 = vunpack.c.l.b16 %v1859
  %v2664 = vunpack.c.h.b16 %v1859
  %v2665 = vunpack.c.l.b16 %v1860
  %v2666 = vunpack.c.h.b16 %v1860
  %v2667 = vunpack.c.l.b16 %v1861
  %v2668 = vunpack.c.h.b16 %v1861
  %v2669 = vunpack.c.l.b16 %v1862
  %v2670 = vunpack.c.h.b16 %v1862
  %v2671 = vunpack.c.l.b16 %v1863
  %v2672 = vunpack.c.h.b16 %v1863
  %v2673 = vunpack.c.l.b16 %v1864
  %v2674 = vunpack.c.h.b16 %v1864
  %v2675 = vunpack.c.l.b16 %v1865
  %v2676 = vunpack.c.h.b16 %v1865
  %v2677 = vunpack.c.l.b16 %v1866
  %v2678 = vunpack.c.h.b16 %v1866
  %v2679 = vunpack.c.l.b16 %v1867
  %v2680 = vunpack.c.h.b16 %v1867
  %v2681 = vunpack.c.l.b16 %v1868
  %v2682 = vunpack.c.h.b16 %v1868
  %v2683 = vunpack.c.l.b16 %v1869
  %v2684 = vunpack.c.h.b16 %v1869
  %v2685 = vunpack.c.l.b16 %v1870
  %v2686 = vunpack.c.h.b16 %v1870
  %v2687 = vunpack.c.l.b16 %v1871
  %v2688 = vunpack.c.h.b16 %v1871
  %v2689 = vunpack.c.l.b16 %v1872
  %v2690 = vunpack.c.h.b16 %v1872
  %v2691 = vunpack.c.l.b16 %v1873
  %v2692 = vunpack.c.h.b16 %v1873
  %v2693 = vunpack.c.l.b16 %v1874
  %v2694 = vunpack.c.h.b16 %v1874
  %v2695 = vunpack.c.l.b16 %v1875
  %v2696 = vunpack.c.h.b16 %v1875
  %v2697 = vunpack.c.l.b16 %v1876
  %v2698 = vunpack.c.h.b16 %v1876
  %v2699 = vunpack.c.l.b16 %v1877
  %v2700 = vunpack.c.h.b16 %v1877
  %v2701 = vunpack.c.l.b16 %v1878
  %v2702 = vunpack.c.h.b16 %v1878
  %v2703 = vunpack.c.l.b16 %v1879
  %v2704 = vunpack.c.h.b16 %v1879
  %v2705 = vunpack.c.l.b16 %v1880
  %v2706 = vunpack.c.h.b16 %v1880
  %v2707 = vunpack.c.l.b16 %v1881
  %v2708 = vunpack.c.h.b16 %v1881
  %v2709 = vunpack.c.l.b16 %v1882
  %v2710 = vunpack.c.h.b16 %v1882
  %v2711 = vunpack.c.l.b16 %v1883
  %v2712 = vunpack.c.h.b16 %v1883
  %v2713 = vunpack.c.l.b16 %v1884
  %v2714 = vunpack.c.h.b16 %v1884
  %v2715 = vunpack.c.l.b16 %v1885
  %v2716 = vunpack.c.h.b16 %v1885
  %v2717 = vunpack.c.l.b16 %v1886
  %v2718 = vunpack.c.h.b16 %v1886
  %v2719 = vunpack.c.l.b16 %v1887
  %v2720 = vunpack.c.h.b16 %v1887
  %v2721 = vunpack.c.l.b16 %v1888
  %v2722 = vunpack.c.h.b16 %v1888
  %v2723 = vunpack.c.l.b16 %v1889
  %v2724 = vunpack.c.h.b16 %v1889
  %v2725 = vunpack.c.l.b16 %v1890
  %v2726 = vunpack.c.h.b16 %v1890
  %v2727 = vunpack.c.l.b16 %v1891
  %v2728 = vunpack.c.h.b16 %v1891
  %v2729 = vunpack.c.l.b16 %v1892
  %v2730 = vunpack.c.h.b16 %v1892
  %v2731 = vunpack.c.l.b16 %v1893
  %v2732 = vunpack.c.h.b16 %v1893
  %v2733 = vunpack.c.l.b16 %v1894
  %v2734 = vunpack.c.h.b16 %v1894
  %v2735 = vunpack.c.l.b16 %v1895
  %v2736 = vunpack.c.h.b16 %v1895
  %v2737 = vunpack.c.l.b16 %v1896
  %v2738 = vunpack.c.h.b16 %v1896
  %v2739 = vunpack.c.l.b16 %v1897
  %v2740 = vunpack.c.h.b16 %v1897
  %v2741 = vunpack.c.l.b16 %v1898
  %v2742 = vunpack.c.h.b16 %v1898
  %v2743 = vunpack.c.l.b16 %v1899
  %v2744 = vunpack.c.h.b16 %v1899
  %v2745 = vunpack.c.l.b16 %v1900
  %v2746 = vunpack.c.h.b16 %v1900
  %v2747 = vunpack.c.l.b16 %v1901
  %v2748 = vunpack.c.h.b16 %v1901
  %v2749 = vunpack.c.l.b16 %v1902
  %v2750 = vunpack.c.h.b16 %v1902
  %v2751 = vunpack.c.l.b16 %v1903
  %v2752 = vunpack.c.h.b16 %v1903
  %v2753 = vunpack.c.l.b16 %v1904
  %v2754 = vunpack.c.h.b16 %v1904
  %v2755 = vunpack.c.l.b16 %v1905
  %v2756 = vunpack.c.h.b16 %v1905
  %v2757 = vunpack.c.l.b16 %v1906
  %v2758 = vunpack.c.h.b16 %v1906
  %v2759 = vunpack.c.l.b16 %v1907
  %v2760 = vunpack.c.h.b16 %v1907
  %v2761 = vunpack.c.l.b16 %v1908
  %v2762 = vunpack.c.h.b16 %v1908
  %v2763 = vunpack.c.l.b16 %v1909
  %v2764 = vunpack.c.h.b16 %v1909
  %v2765 = vunpack.c.l.b16 %v1910
  %v2766 = vunpack.c.h.b16 %v1910
  %v2767 = vunpack.c.l.b16 %v1911
  %v2768 = vunpack.c.h.b16 %v1911
  %v2769 = vunpack.c.l.b16 %v1912
  %v2770 = vunpack.c.h.b16 %v1912
  %v2771 = vunpack.c.l.b16 %v1913
  %v2772 = vunpack.c.h.b16 %v1913
  %v2773 = vunpack.c.l.b16 %v1914
  %v2774 = vunpack.c.h.b16 %v1914
  %v2775 = vunpack.c.l.b16 %v1915
  %v2776 = vunpack.c.h.b16 %v1915
  %v2777 = vunpack.c.l.b16 %v1916
  %v2778 = vunpack.c.h.b16 %v1916
  %v2779 = vunpack.c.l.b16 %v1917
  %v2780 = vunpack.c.h.b16 %v1917
  %v2781 = vunpack.c.l.b16 %v1918
  %v2782 = vunpack.c.h.b16 %v1918
  %v2783 = vunpack.c.l.b16 %v1919
  %v2784 = vunpack.c.h.b16 %v1919
  %v2785 = vunpack.c.l.b16 %v1920
  %v2786 = vunpack.c.h.b16 %v1920
  %v2787 = vunpack.c.l.b16 %v1921
  %v2788 = vunpack.c.h.b16 %v1921
  %v2789 = vunpack.c.l.b16 %v1922
  %v2790 = vunpack.c.h.b16 %v1922
  %v2791 = vunpack.c.l.b16 %v1923
  %v2792 = vunpack.c.h.b16 %v1923
  %v2793 = vpack.c.b16 %v2253, %v2217
  %v2794 = vpack.c.b16 %v2254, %v2218
  %v2795 = vpack.c.b16 %v2255, %v2219
  %v2796 = vpack.c.b16 %v2256, %v2220
  %v2797 = vpack.c.b16 %v2257, %v2221
  %v2798 = vpack.c.b16 %v2258, %v2222
  %v2799 = vpack.c.b16 %v2259, %v2223
  %v2800 = vpack.c.b16 %v2260, %v2224
  %v2801 = vpack.c.b16 %v2261, %v2225
  %v2802 = vpack.c.b16 %v2262, %v2226
  %v2803 = vpack.c.b16 %v2263, %v2227
  %v2804 = vpack.c.b16 %v2264, %v2228
  %v2805 = vpack.c.b16 %v2265, %v2229
  %v2806 = vpack.c.b16 %v2266, %v2230
  %v2807 = vpack.c.b16 %v2267, %v2231
  %v2808 = vpack.c.b16 %v2268, %v2232
  %v2809 = vpack.c.b16 %v2269, %v2233
  %v2810 = vpack.c.b16 %v2270, %v2234
  %v2811 = vpack.c.b16 %v2271, %v2235
  %v2812 = vpack.c.b16 %v2272, %v2236
  %v2813 = vpack.c.b16 %v2273, %v2237
  %v2814 = vpack.c.b16 %v2274, %v2238
  %v2815 = vpack.c.b16 %v2275, %v2239
  %v2816 = vpack.c.b16 %v2276, %v2240
  %v2817 = vpack.c.b16 %v2277, %v2241
  %v2818 = vpack.c.b16 %v2278, %v2242
  %v2819 = vpack.c.b16 %v2279, %v2243
  %v2820 = vpack.c.b16 %v2280, %v2244
  %v2821 = vpack.c.b16 %v2281, %v2245
  %v2822 = vpack.c.b16 %v2282, %v2246
  %v2823 = vpack.c.b16 %v2283, %v2247
  %v2824 = vpack.c.b16 %v2284, %v2248
  %v2825 = vpack.c.b16 %v2285, %v2249
  %v2826 = vpack.c.b16 %v2286, %v2250
  %v2827 = vpack.c.b16 %v2287, %v2251
  %v2828 = vpack.c.b16 %v2288, %v2252
  %v2829 = vpack.c.b16 %v2325, %v2289
  %v2830 = vpack.c.b16 %v2326, %v2290
  %v2831 = vpack.c.b16 %v2327, %v2291
  %v2832 = vpack.c.b16 %v2328, %v2292
  %v2833 = vpack.c.b16 %v2329, %v2293
  %v2834 = vpack.c.b16 %v2330, %v2294
  %v2835 = vpack.c.b16 %v2331, %v2295
  %v2836 = vpack.c.b16 %v2332, %v2296
  %v2837 = vpack.c.b16 %v2333, %v2297
  %v2838 = vpack.c.b16 %v2334, %v2298
  %v2839 = vpack.c.b16 %v2335, %v2299
  %v2840 = vpack.c.b16 %v2336, %v2300
  %v2841 = vpack.c.b16 %v2337, %v2301
  %v2842 = vpack.c.b16 %v2338, %v2302
  %v2843 = vpack.c.b16 %v2339, %v2303
  %v2844 = vpack.c.b16 %v2340, %v2304
  %v2845 = vpack.c.b16 %v2341, %v2305
  %v2846 = vpack.c.b16 %v2342, %v2306
  %v2847 = vpack.c.b16 %v2343, %v2307
  %v2848 = vpack.c.b16 %v2344, %v2308
  %v2849 = vpack.c.b16 %v2345, %v2309
  %v2850 = vpack.c.b16 %v2346, %v2310
  %v2851 = vpack.c.b16 %v2347, %v2311
  %v2852 = vpack.c.b16 %v2348, %v2312
  %v2853 = vpack.c.b16 %v2349, %v2313
  %v2854 = vpack.c.b16 %v2350, %v2314
  %v2855 = vpack.c.b16 %v2351, %v2315
  %v2856 = vpack.c.b16 %v2352, %v2316
  %v2857 = vpack.c.b16 %v2353, %v2317
  %v2858 = vpack.c.b16 %v2354, %v2318
  %v2859 = vpack.c.b16 %v2355, %v2319
  %v2860 = vpack.c.b16 %v2356, %v2320
  %v2861 = vpack.c.b16 %v2357, %v2321
  %v2862 = vpack.c.b16 %v2358, %v2322
  %v2863 = vpack.c.b16 %v2359, %v2323
  %v2864 = vpack.c.b16 %v2360, %v2324
  %v2865 = vpack.c.b16 %v2397, %v2361
  %v2866 = vpack.c.b16 %v2398, %v2362
  %v2867 = vpack.c.b16 %v2399, %v2363
  %v2868 = vpack.c.b16 %v2400, %v2364
  %v2869 = vpack.c.b16 %v2401, %v2365
  %v2870 = vpack.c.b16 %v2402, %v2366
  %v2871 = vpack.c.b16 %v2403, %v2367
  %v2872 = vpack.c.b16 %v2404, %v2368
  %v2873 = vpack.c.b16 %v2405, %v2369
  %v2874 = vpack.c.b16 %v2406, %v2370
  %v2875 = vpack.c.b16 %v2407, %v2371
  %v2876 = vpack.c.b16 %v2408, %v2372
  %v2877 = vpack.c.b16 %v2409, %v2373
  %v2878 = vpack.c.b16 %v2410, %v2374
  %v2879 = vpack.c.b16 %v2411, %v2375
  %v2880 = vpack.c.b16 %v2412, %v2376
  %v2881 = vpack.c.b16 %v2413, %v2377
  %v2882 = vpack.c.b16 %v2414, %v2378
  %v2883 = vpack.c.b16 %v2415, %v2379
  %v2884 = vpack.c.b16 %v2416, %v2380
  %v2885 = vpack.c.b16 %v2417, %v2381
  %v2886 = vpack.c.b16 %v2418, %v2382
  %v2887 = vpack.c.b16 %v2419, %v2383
  %v2888 = vpack.c.b16 %v2420, %v2384
  %v2889 = vpack.c.b16 %v2421, %v2385
  %v2890 = vpack.c.b16 %v2422, %v2386
  %v2891 = vpack.c.b16 %v2423, %v2387
  %v2892 = vpack.c.b16 %v2424, %v2388
  %v2893 = vpack.c.b16 %v2425, %v2389
  %v2894 = vpack.c.b16 %v2426, %v2390
  %v2895 = vpack.c.b16 %v2427, %v2391
  %v2896 = vpack.c.b16 %v2428, %v2392
  %v2897 = vpack.c.b16 %v2429, %v2393
  %v2898 = vpack.c.b16 %v2430, %v2394
  %v2899 = vpack.c.b16 %v2431, %v2395
  %v2900 = vpack.c.b16 %v2432, %v2396
  %v2901 = vpack.c.b16 %v2469, %v2433
  %v2902 = vpack.c.b16 %v2470, %v2434
  %v2903 = vpack.c.b16 %v2471, %v2435
  %v2904 = vpack.c.b16 %v2472, %v2436
  %v2905 = vpack.c.b16 %v2473, %v2437
  %v2906 = vpack.c.b16 %v2474, %v2438
  %v2907 = vpack.c.b16 %v2475, %v2439
  %v2908 = vpack.c.b16 %v2476, %v2440
  %v2909 = vpack.c.b16 %v2477, %v2441
  %v2910 = vpack.c.b16 %v2478, %v2442
  %v2911 = vpack.c.b16 %v2479, %v2443
  %v2912 = vpack.c.b16 %v2480, %v2444
  %v2913 = vpack.c.b16 %v2481, %v2445
  %v2914 = vpack.c.b16 %v2482, %v2446
  %v2915 = vpack.c.b16 %v2483, %v2447
  %v2916 = vpack.c.b16 %v2484, %v2448
  %v2917 = vpack.c.b16 %v2485, %v2449
  %v2918 = vpack.c.b16 %v2486, %v2450
  %v2919 = vpack.c.b16 %v2487, %v2451
  %v2920 = vpack.c.b16 %v2488, %v2452
  %v2921 = vpack.c.b16 %v2489, %v2453
  %v2922 = vpack.c.b16 %v2490, %v2454
  %v2923 = vpack.c.b16 %v2491, %v2455
  %v2924 = vpack.c.b16 %v2492, %v2456
  %v2925 = vpack.c.b16 %v2493, %v2457
  %v2926 = vpack.c.b16 %v2494, %v2458
  %v2927 = vpack.c.b16 %v2495, %v2459
  %v2928 = vpack.c.b16 %v2496, %v2460
  %v2929 = vpack.c.b16 %v2497, %v2461
  %v2930 = vpack.c.b16 %v2498, %v2462
  %v2931 = vpack.c.b16 %v2499, %v2463
  %v2932 = vpack.c.b16 %v2500, %v2464
  %v2933 = vpack.c.b16 %v2501, %v2465
  %v2934 = vpack.c.b16 %v2502, %v2466
  %v2935 = vpack.c.b16 %v2503, %v2467
  %v2936 = vpack.c.b16 %v2504, %v2468
  %v2937 = vpack.c.b16 %v2541, %v2505
  %v2938 = vpack.c.b16 %v2542, %v2506
  %v2939 = vpack.c.b16 %v2543, %v2507
  %v2940 = vpack.c.b16 %v2544, %v2508
  %v2941 = vpack.c.b16 %v2545, %v2509
  %v2942 = vpack.c.b16 %v2546, %v2510
  %v2943 = vpack.c.b16 %v2547, %v2511
  %v2944 = vpack.c.b16 %v2548, %v2512
  %v2945 = vpack.c.b16 %v2549, %v2513
  %v2946 = vpack.c.b16 %v2550, %v2514
  %v2947 = vpack.c.b16 %v2551, %v2515
  %v2948 = vpack.c.b16 %v2552, %v2516
  %v2949 = vpack.c.b16 %v2553, %v2517
  %v2950 = vpack.c.b16 %v2554, %v2518
  %v2951 = vpack.c.b16 %v2555, %v2519
  %v2952 = vpack.c.b16 %v2556, %v2520
  %v2953 = vpack.c.b16 %v2557, %v2521
  %v2954 = vpack.c.b16 %v2558, %v2522
  %v2955 = vpack.c.b16 %v2559, %v2523
  %v2956 = vpack.c.b16 %v2560, %v2524
  %v2957 = vpack.c.b16 %v2561, %v2525
  %v2958 = vpack.c.b16 %v2562, %v2526
  %v2959 = vpack.c.b16 %v2563, %v2527
  %v2960 = vpack.c.b16 %v2564, %v2528
  %v2961 = vpack.c.b16 %v2565, %v2529
  %v2962 = vpack.c.b16 %v2566, %v2530
  %v2963 = vpack.c.b16 %v2567, %v2531
  %v2964 = vpack.c.b16 %v2568, %v2532
  %v2965 = vpack.c.b16 %v2569, %v2533
  %v2966 = vpack.c.b16 %v2570, %v2534
  %v2967 = vpack.c.b16 %v2571, %v2535
  %v2968 = vpack.c.b16 %v2572, %v2536
  %v2969 = vpack.c.b16 %v2573, %v2537
  %v2970 = vpack.c.b16 %v2574, %v2538
  %v2971 = vpack.c.b16 %v2575, %v2539
  %v2972 = vpack.c.b16 %v2576, %v2540
  %v2973 = vpack.c.b16 %v2613, %v2577
  %v2974 = vpack.c.b16 %v2614, %v2578
  %v2975 = vpack.c.b16 %v2615, %v2579
  %v2976 = vpack.c.b16 %v2616, %v2580
  %v2977 = vpack.c.b16 %v2617, %v2581
  %v2978 = vpack.c.b16 %v2618, %v2582
  %v2979 = vpack.c.b16 %v2619, %v2583
  %v2980 = vpack.c.b16 %v2620, %v2584
  %v2981 = vpack.c.b16 %v2621, %v2585
  %v2982 = vpack.c.b16 %v2622, %v2586
  %v2983 = vpack.c.b16 %v2623, %v2587
  %v2984 = vpack.c.b16 %v2624, %v2588
  %v2985 = vpack.c.b16 %v2625, %v2589
  %v2986 = vpack.c.b16 %v2626, %v2590
  %v2987 = vpack.c.b16 %v2627, %v2591
  %v2988 = vpack.c.b16 %v2628, %v2592
  %v2989 = vpack.c.b16 %v2629, %v2593
  %v2990 = vpack.c.b16 %v2630, %v2594
  %v2991 = vpack.c.b16 %v2631, %v2595
  %v2992 = vpack.c.b16 %v2632, %v2596
  %v2993 = vpack.c.b16 %v2633, %v2597
  %v2994 = vpack.c.b16 %v2634, %v2598
  %v2995 = vpack.c.b16 %v2635, %v2599
  %v2996 = vpack.c.b16 %v2636, %v2600
  %v2997 = vpack.c.b16 %v2637, %v2601
  %v2998 = vpack.c.b16 %v2638, %v2602
  %v2999 = vpack.c.b16 %v2639, %v2603
  %v3000 = vpack.c.b16 %v2640, %v2604
  %v3001 = vpack.c.b16 %v2641, %v2605
  %v3002 = vpack.c.b16 %v2642, %v2606
  %v3003 = vpack.c.b16 %v2643, %v2607
  %v3004 = vpack.c.b16 %v2644, %v2608
  %v3005 = vpack.c.b16 %v2645, %v2609
  %v3006 = vpack.c.b16 %v2646, %v2610
  %v3007 = vpack.c.b16 %v2647, %v2611
  %v3008 = vpack.c.b16 %v2648, %v2612
  %v3009 = vpack.c.b16 %v2685, %v2649
  %v3010 = vpack.c.b16 %v2686, %v2650
  %v3011 = vpack.c.b16 %v2687, %v2651
  %v3012 = vpack.c.b16 %v2688, %v2652
  %v3013 = vpack.c.b16 %v2689, %v2653
  %v3014 = vpack.c.b16 %v2690, %v2654
  %v3015 = vpack.c.b16 %v2691, %v2655
  %v3016 = vpack.c.b16 %v2692, %v2656
  %v3017 = vpack.c.b16 %v2693, %v2657
  %v3018 = vpack.c.b16 %v2694, %v2658
  %v3019 = vpack.c.b16 %v2695, %v2659
  %v3020 = vpack.c.b16 %v2696, %v2660
  %v3021 = vpack.c.b16 %v2697, %v2661
  %v3022 = vpack.c.b16 %v2698, %v2662
  %v3023 = vpack.c.b16 %v2699, %v2663
  %v3024 = vpack.c.b16 %v2700, %v2664
  %v3025 = vpack.c.b16 %v2701, %v2665
  %v3026 = vpack.c.b16 %v2702, %v2666
  %v3027 = vpack.c.b16 %v2703, %v2667
  %v3028 = vpack.c.b16 %v2704, %v2668
  %v3029 = vpack.c.b16 %v2705, %v2669
  %v3030 = vpack.c.b16 %v2706, %v2670
  %v3031 = vpack.c.b16 %v2707, %v2671
  %v3032 = vpack.c.b16 %v2708, %v2672
  %v3033 = vpack.c.b16 %v2709, %v2673
  %v3034 = vpack.c.b16 %v2710, %v2674
  %v3035 = vpack.c.b16 %v2711, %v2675
  %v3036 = vpack.c.b16 %v2712, %v2676
  %v3037 = vpack.c.b16 %v2713, %v2677
  %v3038 = vpack.c.b16 %v2714, %v2678
  %v3039 = vpack.c.b16 %v2715, %v2679
  %v3040 = vpack.c.b16 %v2716, %v2680
  %v3041 = vpack.c.b16 %v2717, %v2681
  %v3042 = vpack.c.b16 %v2718, %v2682
  %v3043 = vpack.c.b16 %v2719, %v2683
  %v3044 = vpack.c.b16 %v2720, %v2684
  %v3045 = vpack.c.b16 %v2757, %v2721
  %v3046 = vpack.c.b16 %v2758, %v2722
  %v3047 = vpack.c.b16 %v2759, %v2723
  %v3048 = vpack.c.b16 %v2760, %v2724
  %v3049 = vpack.c.b16 %v2761, %v2725
  %v3050 = vpack.c.b16 %v2762, %v2726
  %v3051 = vpack.c.b16 %v2763, %v2727
  %v3052 = vpack.c.b16 %v2764, %v2728
  %v3053 = vpack.c.b16 %v2765, %v2729
  %v3054 = vpack.c.b16 %v2766, %v2730
  %v3055 = vpack.c.b16 %v2767, %v2731
  %v3056 = vpack.c.b16 %v2768, %v2732
  %v3057 = vpack.c.b16 %v2769, %v2733
  %v3058 = vpack.c.b16 %v2770, %v2734
  %v3059 = vpack.c.b16 %v2771, %v2735
  %v3060 = vpack.c.b16 %v2772, %v2736
  %v3061 = vpack.c.b16 %v2773, %v2737
  %v3062 = vpack.c.b16 %v2774, %v2738
  %v3063 = vpack.c.b16 %v2775, %v2739
  %v3064 = vpack.c.b16 %v2776, %v2740
  %v3065 = vpack.c.b16 %v2777, %v2741
  %v3066 = vpack.c.b16 %v2778, %v2742
  %v3067 = vpack.c.b16 %v2779, %v2743
  %v3068 = vpack.c.b16 %v2780, %v2744
  %v3069 = vpack.c.b16 %v2781, %v2745
  %v3070 = vpack.c.b16 %v2782, %v2746
  %v3071 = vpack.c.b16 %v2783, %v2747
  %v3072 = vpack.c.b16 %v2784, %v2748
  %v3073 = vpack.c.b16 %v2785, %v2749
  %v3074 = vpack.c.b16 %v2786, %v2750
  %v3075 = vpack.c.b16 %v2787, %v2751
  %v3076 = vpack.c.b16 %v2788, %v2752
  %v3077 = vpack.c.b16 %v2789, %v2753
  %v3078 = vpack.c.b16 %v2790, %v2754
  %v3079 = vpack.c.b16 %v2791, %v2755
  %v3080 = vpack.c.b16 %v2792, %v2756
  %3369 = vmatprep.subr.bf16.mxu0 0
  %3370 = vmatpush1.bf16.msra.mxu0 %v1348
  %3371 = vmatprep.subr.bf16.mxu0 0
  %3372 = vmatpush1.bf16.msra.mxu0 %v1349
  %3373 = vmatprep.subr.bf16.mxu0 0
  %3374 = vmatpush1.bf16.msra.mxu0 %v1350
  %3375 = vmatprep.subr.bf16.mxu0 0
  %3376 = vmatpush1.bf16.msra.mxu0 %v1351
  %3377 = vmatprep.subr.bf16.mxu0 0
  %3378 = vmatpush1.bf16.msra.mxu0 %v1352
  %3379 = vmatprep.subr.bf16.mxu0 0
  %3380 = vmatpush1.bf16.msra.mxu0 %v1353
  %3381 = vmatprep.subr.bf16.mxu0 0
  %3382 = vmatpush1.bf16.msra.mxu0 %v1354
  %3383 = vmatprep.subr.bf16.mxu0 0
  %3384 = vmatpush1.bf16.msra.mxu0 %v1355
  %3385 = vmatprep.subr.bf16.mxu0 0
  %3386 = vmatpush1.bf16.msra.mxu0 %v1356
  %3387 = vmatprep.subr.bf16.mxu0 0
  %3388 = vmatpush1.bf16.msra.mxu0 %v1357
  %3389 = vmatprep.subr.bf16.mxu0 0
  %3390 = vmatpush1.bf16.msra.mxu0 %v1358
  %3391 = vmatprep.subr.bf16.mxu0 0
  %3392 = vmatpush1.bf16.msra.mxu0 %v1359
  %3393 = vmatprep.subr.bf16.mxu0 0
  %3394 = vmatpush1.bf16.msra.mxu0 %v1360
  %3395 = vmatprep.subr.bf16.mxu0 0
  %3396 = vmatpush1.bf16.msra.mxu0 %v1361
  %3397 = vmatprep.subr.bf16.mxu0 0
  %3398 = vmatpush1.bf16.msra.mxu0 %v1362
  %3399 = vmatprep.subr.bf16.mxu0 0
  %3400 = vmatpush1.bf16.msra.mxu0 %v1363
  %3401 = vmatprep.mubr.bf16.mxu0 %v2794
  %3402 = vmatmul.mubr.bf16.gmra.mrb[0].mxu0 %v2793
  %v3403 = vpop.f32.mrb[0].mxu0
  %v3404 = vadd.f32 %v1928, %v3403
  %v3405 = vpop.f32.mrb[0].mxu0
  %v3406 = vpop.f32.mrb[0].mxu0
  %v3407 = vadd.f32 %v1928, %v3406
  %v3408 = vpop.f32.mrb[0].mxu0
  %3409 = vmatprep.mubr.bf16.mxu0 %v2830
  %3410 = vmatmul.mubr.bf16.gmra.mrb[0].mxu0 %v2829
  %v3411 = vpop.f32.mrb[0].mxu0
  %v3412 = vadd.f32 %v1928, %v3411
  %v3413 = vpop.f32.mrb[0].mxu0
  %v3414 = vpop.f32.mrb[0].mxu0
  %v3415 = vadd.f32 %v1928, %v3414
  %v3416 = vpop.f32.mrb[0].mxu0
  %3417 = vmatprep.mubr.bf16.mxu0 %v2866
  %3418 = vmatmul.mubr.bf16.gmra.mrb[0].mxu0 %v2865
  %v3419 = vpop.f32.mrb[0].mxu0
  %v3420 = vadd.f32 %v1928, %v3419
  %v3421 = vpop.f32.mrb[0].mxu0
  %v3422 = vpop.f32.mrb[0].mxu0
  %v3423 = vadd.f32 %v1928, %v3422
  %v3424 = vpop.f32.mrb[0].mxu0
  %3425 = vmatprep.mubr.bf16.mxu0 %v2902
  %3426 = vmatmul.mubr.bf16.gmra.mrb[0].mxu0 %v2901
  %v3427 = vpop.f32.mrb[0].mxu0
  %v3428 = vadd.f32 %v1928, %v3427
  %v3429 = vpop.f32.mrb[0].mxu0
  %v3430 = vpop.f32.mrb[0].mxu0
  %v3431 = vadd.f32 %v1928, %v3430
  %v3432 = vpop.f32.mrb[0].mxu0
  %3433 = vmatprep.mubr.bf16.mxu0 %v2938
  %3434 = vmatmul.mubr.bf16.gmra.mrb[0].mxu0 %v2937
  %v3435 = vpop.f32.mrb[0].mxu0
  %v3436 = vadd.f32 %v1928, %v3435
  %v3437 = vpop.f32.mrb[0].mxu0
  %v3438 = vpop.f32.mrb[0].mxu0
  %v3439 = vadd.f32 %v1928, %v3438
  %v3440 = vpop.f32.mrb[0].mxu0
  %3441 = vmatprep.mubr.bf16.mxu0 %v2974
  %3442 = vmatmul.mubr.bf16.gmra.mrb[0].mxu0 %v2973
  %v3443 = vpop.f32.mrb[0].mxu0
  %v3444 = vadd.f32 %v1928, %v3443
  %v3445 = vpop.f32.mrb[0].mxu0
  %v3446 = vpop.f32.mrb[0].mxu0
  %v3447 = vadd.f32 %v1928, %v3446
  %v3448 = vpop.f32.mrb[0].mxu0
  %3449 = vmatprep.mubr.bf16.mxu0 %v3010
  %3450 = vmatmul.mubr.bf16.gmra.mrb[0].mxu0 %v3009
  %v3451 = vpop.f32.mrb[0].mxu0
  %v3452 = vadd.f32 %v1928, %v3451
  %v3453 = vpop.f32.mrb[0].mxu0
  %v3454 = vpop.f32.mrb[0].mxu0
  %v3455 = vadd.f32 %v1928, %v3454
  %v3456 = vpop.f32.mrb[0].mxu0
  %3457 = vmatprep.mubr.bf16.mxu0 %v3046
  %3458 = vmatmul.mubr.bf16.gmra.mrb[0].mxu0 %v3045
  %v3459 = vpop.f32.mrb[0].mxu0
  %v3460 = vadd.f32 %v1928, %v3459
  %v3461 = vpop.f32.mrb[0].mxu0
  %v3462 = vpop.f32.mrb[0].mxu0
  %v3463 = vadd.f32 %v1928, %v3462
  %v3464 = vpop.f32.mrb[0].mxu0
  %3465 = vdwg.mxu0
  %3466 = vmatprep.subr.bf16.mxu0 0
  %3467 = vmatpush1.bf16.msra.mxu0 %v1364
  %3468 = vmatprep.subr.bf16.mxu0 0
  %3469 = vmatpush1.bf16.msra.mxu0 %v1365
  %3470 = vmatprep.subr.bf16.mxu0 0
  %3471 = vmatpush1.bf16.msra.mxu0 %v1366
  %3472 = vmatprep.subr.bf16.mxu0 0
  %3473 = vmatpush1.bf16.msra.mxu0 %v1367
  %3474 = vmatprep.subr.bf16.mxu0 0
  %3475 = vmatpush1.bf16.msra.mxu0 %v1368
  %3476 = vmatprep.subr.bf16.mxu0 0
  %3477 = vmatpush1.bf16.msra.mxu0 %v1369
  %3478 = vmatprep.subr.bf16.mxu0 0
  %3479 = vmatpush1.bf16.msra.mxu0 %v1370
  %3480 = vmatprep.subr.bf16.mxu0 0
  %3481 = vmatpush1.bf16.msra.mxu0 %v1371
  %3482 = vmatprep.subr.bf16.mxu0 0
  %3483 = vmatpush1.bf16.msra.mxu0 %v1372
  %3484 = vmatprep.subr.bf16.mxu0 0
  %3485 = vmatpush1.bf16.msra.mxu0 %v1373
  %3486 = vmatprep.subr.bf16.mxu0 0
  %3487 = vmatpush1.bf16.msra.mxu0 %v1374
  %3488 = vmatprep.subr.bf16.mxu0 0
  %3489 = vmatpush1.bf16.msra.mxu0 %v1375
  %3490 = vmatprep.subr.bf16.mxu0 0
  %3491 = vmatpush1.bf16.msra.mxu0 %v1376
  %3492 = vmatprep.subr.bf16.mxu0 0
  %3493 = vmatpush1.bf16.msra.mxu0 %v1377
  %3494 = vmatprep.subr.bf16.mxu0 0
  %3495 = vmatpush1.bf16.msra.mxu0 %v1378
  %3496 = vmatprep.subr.bf16.mxu0 0
  %3497 = vmatpush1.bf16.msra.mxu0 %v1379
  %3498 = vmatprep.mubr.bf16.mxu0 %v2796
  %3499 = vmatmul.mubr.bf16.gmra.mrb[0].mxu0 %v2795
  %v3500 = vpop.f32.mrb[0].mxu0
  %v3501 = vadd.f32 %v3404, %v3500
  %v3502 = vpop.f32.mrb[0].mxu0
  %v3503 = vpop.f32.mrb[0].mxu0
  %v3504 = vadd.f32 %v3407, %v3503
  %v3505 = vpop.f32.mrb[0].mxu0
  %3506 = vmatprep.mubr.bf16.mxu0 %v2832
  %3507 = vmatmul.mubr.bf16.gmra.mrb[0].mxu0 %v2831
  %v3508 = vpop.f32.mrb[0].mxu0
  %v3509 = vadd.f32 %v3412, %v3508
  %v3510 = vpop.f32.mrb[0].mxu0
  %v3511 = vpop.f32.mrb[0].mxu0
  %v3512 = vadd.f32 %v3415, %v3511
  %v3513 = vpop.f32.mrb[0].mxu0
  %3514 = vmatprep.mubr.bf16.mxu0 %v2868
  %3515 = vmatmul.mubr.bf16.gmra.mrb[0].mxu0 %v2867
  %v3516 = vpop.f32.mrb[0].mxu0
  %v3517 = vadd.f32 %v3420, %v3516
  %v3518 = vpop.f32.mrb[0].mxu0
  %v3519 = vpop.f32.mrb[0].mxu0
  %v3520 = vadd.f32 %v3423, %v3519
  %v3521 = vpop.f32.mrb[0].mxu0
  %3522 = vmatprep.mubr.bf16.mxu0 %v2904
  %3523 = vmatmul.mubr.bf16.gmra.mrb[0].mxu0 %v2903
  %v3524 = vpop.f32.mrb[0].mxu0
  %v3525 = vadd.f32 %v3428, %v3524
  %v3526 = vpop.f32.mrb[0].mxu0
  %v3527 = vpop.f32.mrb[0].mxu0
  %v3528 = vadd.f32 %v3431, %v3527
  %v3529 = vpop.f32.mrb[0].mxu0
  %3530 = vmatprep.mubr.bf16.mxu0 %v2940
  %3531 = vmatmul.mubr.bf16.gmra.mrb[0].mxu0 %v2939
  %v3532 = vpop.f32.mrb[0].mxu0
  %v3533 = vadd.f32 %v3436, %v3532
  %v3534 = vpop.f32.mrb[0].mxu0
  %v3535 = vpop.f32.mrb[0].mxu0
  %v3536 = vadd.f32 %v3439, %v3535
  %v3537 = vpop.f32.mrb[0].mxu0
  %3538 = vmatprep.mubr.bf16.mxu0 %v2976
  %3539 = vmatmul.mubr.bf16.gmra.mrb[0].mxu0 %v2975
  %v3540 = vpop.f32.mrb[0].mxu0
  %v3541 = vadd.f32 %v3444, %v3540
  %v3542 = vpop.f32.mrb[0].mxu0
  %v3543 = vpop.f32.mrb[0].mxu0
  %v3544 = vadd.f32 %v3447, %v3543
  %v3545 = vpop.f32.mrb[0].mxu0
  %3546 = vmatprep.mubr.bf16.mxu0 %v3012
  %3547 = vmatmul.mubr.bf16.gmra.mrb[0].mxu0 %v3011
  %v3548 = vpop.f32.mrb[0].mxu0
  %v3549 = vadd.f32 %v3452, %v3548
  %v3550 = vpop.f32.mrb[0].mxu0
  %v3551 = vpop.f32.mrb[0].mxu0
  %v3552 = vadd.f32 %v3455, %v3551
  %v3553 = vpop.f32.mrb[0].mxu0
  %3554 = vmatprep.mubr.bf16.mxu0 %v3048
  %3555 = vmatmul.mubr.bf16.gmra.mrb[0].mxu0 %v3047
  %v3556 = vpop.f32.mrb[0].mxu0
  %v3557 = vadd.f32 %v3460, %v3556
  %v3558 = vpop.f32.mrb[0].mxu0
  %v3559 = vpop.f32.mrb[0].mxu0
  %v3560 = vadd.f32 %v3463, %v3559
  %v3561 = vpop.f32.mrb[0].mxu0
  %3562 = vdwg.mxu0
  %3563 = vmatprep.subr.bf16.mxu0 0
  %3564 = vmatpush1.bf16.msra.mxu0 %v1380
  %3565 = vmatprep.subr.bf16.mxu0 0
  %3566 = vmatpush1.bf16.msra.mxu0 %v1381
  %3567 = vmatprep.subr.bf16.mxu0 0
  %3568 = vmatpush1.bf16.msra.mxu0 %v1382
  %3569 = vmatprep.subr.bf16.mxu0 0
  %3570 = vmatpush1.bf16.msra.mxu0 %v1383
  %3571 = vmatprep.subr.bf16.mxu0 0
  %3572 = vmatpush1.bf16.msra.mxu0 %v1384
  %3573 = vmatprep.subr.bf16.mxu0 0
  %3574 = vmatpush1.bf16.msra.mxu0 %v1385
  %3575 = vmatprep.subr.bf16.mxu0 0
  %3576 = vmatpush1.bf16.msra.mxu0 %v1386
  %3577 = vmatprep.subr.bf16.mxu0 0
  %3578 = vmatpush1.bf16.msra.mxu0 %v1387
  %3579 = vmatprep.subr.bf16.mxu0 0
  %3580 = vmatpush1.bf16.msra.mxu0 %v1388
  %3581 = vmatprep.subr.bf16.mxu0 0
  %3582 = vmatpush1.bf16.msra.mxu0 %v1389
  %3583 = vmatprep.subr.bf16.mxu0 0
  %3584 = vmatpush1.bf16.msra.mxu0 %v1390
  %3585 = vmatprep.subr.bf16.mxu0 0
  %3586 = vmatpush1.bf16.msra.mxu0 %v1391
  %3587 = vmatprep.subr.bf16.mxu0 0
  %3588 = vmatpush1.bf16.msra.mxu0 %v1392
  %3589 = vmatprep.subr.bf16.mxu0 0
  %3590 = vmatpush1.bf16.msra.mxu0 %v1393
  %3591 = vmatprep.subr.bf16.mxu0 0
  %3592 = vmatpush1.bf16.msra.mxu0 %v1394
  %3593 = vmatprep.subr.bf16.mxu0 0
  %3594 = vmatpush1.bf16.msra.mxu0 %v1395
  %3595 = vmatprep.mubr.bf16.mxu0 %v2798
  %3596 = vmatmul.mubr.bf16.gmra.mrb[0].mxu0 %v2797
  %v3597 = vpop.f32.mrb[0].mxu0
  %v3598 = vadd.f32 %v3501, %v3597
  %v3599 = vpop.f32.mrb[0].mxu0
  %v3600 = vpop.f32.mrb[0].mxu0
  %v3601 = vadd.f32 %v3504, %v3600
  %v3602 = vpop.f32.mrb[0].mxu0
  %3603 = vmatprep.mubr.bf16.mxu0 %v2834
  %3604 = vmatmul.mubr.bf16.gmra.mrb[0].mxu0 %v2833
  %v3605 = vpop.f32.mrb[0].mxu0
  %v3606 = vadd.f32 %v3509, %v3605
  %v3607 = vpop.f32.mrb[0].mxu0
  %v3608 = vpop.f32.mrb[0].mxu0
  %v3609 = vadd.f32 %v3512, %v3608
  %v3610 = vpop.f32.mrb[0].mxu0
  %3611 = vmatprep.mubr.bf16.mxu0 %v2870
  %3612 = vmatmul.mubr.bf16.gmra.mrb[0].mxu0 %v2869
  %v3613 = vpop.f32.mrb[0].mxu0
  %v3614 = vadd.f32 %v3517, %v3613
  %v3615 = vpop.f32.mrb[0].mxu0
  %v3616 = vpop.f32.mrb[0].mxu0
  %v3617 = vadd.f32 %v3520, %v3616
  %v3618 = vpop.f32.mrb[0].mxu0
  %3619 = vmatprep.mubr.bf16.mxu0 %v2906
  %3620 = vmatmul.mubr.bf16.gmra.mrb[0].mxu0 %v2905
  %v3621 = vpop.f32.mrb[0].mxu0
  %v3622 = vadd.f32 %v3525, %v3621
  %v3623 = vpop.f32.mrb[0].mxu0
  %v3624 = vpop.f32.mrb[0].mxu0
  %v3625 = vadd.f32 %v3528, %v3624
  %v3626 = vpop.f32.mrb[0].mxu0
  %3627 = vmatprep.mubr.bf16.mxu0 %v2942
  %3628 = vmatmul.mubr.bf16.gmra.mrb[0].mxu0 %v2941
  %v3629 = vpop.f32.mrb[0].mxu0
  %v3630 = vadd.f32 %v3533, %v3629
  %v3631 = vpop.f32.mrb[0].mxu0
  %v3632 = vpop.f32.mrb[0].mxu0
  %v3633 = vadd.f32 %v3536, %v3632
  %v3634 = vpop.f32.mrb[0].mxu0
  %3635 = vmatprep.mubr.bf16.mxu0 %v2978
  %3636 = vmatmul.mubr.bf16.gmra.mrb[0].mxu0 %v2977
  %v3637 = vpop.f32.mrb[0].mxu0
  %v3638 = vadd.f32 %v3541, %v3637
  %v3639 = vpop.f32.mrb[0].mxu0
  %v3640 = vpop.f32.mrb[0].mxu0
  %v3641 = vadd.f32 %v3544, %v3640
  %v3642 = vpop.f32.mrb[0].mxu0
  %3643 = vmatprep.mubr.bf16.mxu0 %v3014
  %3644 = vmatmul.mubr.bf16.gmra.mrb[0].mxu0 %v3013
  %v3645 = vpop.f32.mrb[0].mxu0
  %v3646 = vadd.f32 %v3549, %v3645
  %v3647 = vpop.f32.mrb[0].mxu0
  %v3648 = vpop.f32.mrb[0].mxu0
  %v3649 = vadd.f32 %v3552, %v3648
  %v3650 = vpop.f32.mrb[0].mxu0
  %3651 = vmatprep.mubr.bf16.mxu0 %v3050
  %3652 = vmatmul.mubr.bf16.gmra.mrb[0].mxu0 %v3049
  %v3653 = vpop.f32.mrb[0].mxu0
  %v3654 = vadd.f32 %v3557, %v3653
  %v3655 = vpop.f32.mrb[0].mxu0
  %v3656 = vpop.f32.mrb[0].mxu0
  %v3657 = vadd.f32 %v3560, %v3656
  %v3658 = vpop.f32.mrb[0].mxu0
  %3659 = vdwg.mxu0
  %3660 = vmatprep.subr.bf16.mxu0 0
  %3661 = vmatpush1.bf16.msra.mxu0 %v1396
  %3662 = vmatprep.subr.bf16.mxu0 0
  %3663 = vmatpush1.bf16.msra.mxu0 %v1397
  %3664 = vmatprep.subr.bf16.mxu0 0
  %3665 = vmatpush1.bf16.msra.mxu0 %v1398
  %3666 = vmatprep.subr.bf16.mxu0 0
  %3667 = vmatpush1.bf16.msra.mxu0 %v1399
  %3668 = vmatprep.subr.bf16.mxu0 0
  %3669 = vmatpush1.bf16.msra.mxu0 %v1400
  %3670 = vmatprep.subr.bf16.mxu0 0
  %3671 = vmatpush1.bf16.msra.mxu0 %v1401
  %3672 = vmatprep.subr.bf16.mxu0 0
  %3673 = vmatpush1.bf16.msra.mxu0 %v1402
  %3674 = vmatprep.subr.bf16.mxu0 0
  %3675 = vmatpush1.bf16.msra.mxu0 %v1403
  %3676 = vmatprep.subr.bf16.mxu0 0
  %3677 = vmatpush1.bf16.msra.mxu0 %v1404
  %3678 = vmatprep.subr.bf16.mxu0 0
  %3679 = vmatpush1.bf16.msra.mxu0 %v1405
  %3680 = vmatprep.subr.bf16.mxu0 0
  %3681 = vmatpush1.bf16.msra.mxu0 %v1406
  %3682 = vmatprep.subr.bf16.mxu0 0
  %3683 = vmatpush1.bf16.msra.mxu0 %v1407
  %3684 = vmatprep.subr.bf16.mxu0 0
  %3685 = vmatpush1.bf16.msra.mxu0 %v1408
  %3686 = vmatprep.subr.bf16.mxu0 0
  %3687 = vmatpush1.bf16.msra.mxu0 %v1409
  %3688 = vmatprep.subr.bf16.mxu0 0
  %3689 = vmatpush1.bf16.msra.mxu0 %v1410
  %3690 = vmatprep.subr.bf16.mxu0 0
  %3691 = vmatpush1.bf16.msra.mxu0 %v1411
  %3692 = vmatprep.mubr.bf16.mxu0 %v2800
  %3693 = vmatmul.mubr.bf16.gmra.mrb[0].mxu0 %v2799
  %v3694 = vpop.f32.mrb[0].mxu0
  %v3695 = vadd.f32 %v3598, %v3694
  %v3696 = vpop.f32.mrb[0].mxu0
  %v3697 = vpop.f32.mrb[0].mxu0
  %v3698 = vadd.f32 %v3601, %v3697
  %v3699 = vpop.f32.mrb[0].mxu0
  %3700 = vmatprep.mubr.bf16.mxu0 %v2836
  %3701 = vmatmul.mubr.bf16.gmra.mrb[0].mxu0 %v2835
  %v3702 = vpop.f32.mrb[0].mxu0
  %v3703 = vadd.f32 %v3606, %v3702
  %v3704 = vpop.f32.mrb[0].mxu0
  %v3705 = vpop.f32.mrb[0].mxu0
  %v3706 = vadd.f32 %v3609, %v3705
  %v3707 = vpop.f32.mrb[0].mxu0
  %3708 = vmatprep.mubr.bf16.mxu0 %v2872
  %3709 = vmatmul.mubr.bf16.gmra.mrb[0].mxu0 %v2871
  %v3710 = vpop.f32.mrb[0].mxu0
  %v3711 = vadd.f32 %v3614, %v3710
  %v3712 = vpop.f32.mrb[0].mxu0
  %v3713 = vpop.f32.mrb[0].mxu0
  %v3714 = vadd.f32 %v3617, %v3713
  %v3715 = vpop.f32.mrb[0].mxu0
  %3716 = vmatprep.mubr.bf16.mxu0 %v2908
  %3717 = vmatmul.mubr.bf16.gmra.mrb[0].mxu0 %v2907
  %v3718 = vpop.f32.mrb[0].mxu0
  %v3719 = vadd.f32 %v3622, %v3718
  %v3720 = vpop.f32.mrb[0].mxu0
  %v3721 = vpop.f32.mrb[0].mxu0
  %v3722 = vadd.f32 %v3625, %v3721
  %v3723 = vpop.f32.mrb[0].mxu0
  %3724 = vmatprep.mubr.bf16.mxu0 %v2944
  %3725 = vmatmul.mubr.bf16.gmra.mrb[0].mxu0 %v2943
  %v3726 = vpop.f32.mrb[0].mxu0
  %v3727 = vadd.f32 %v3630, %v3726
  %v3728 = vpop.f32.mrb[0].mxu0
  %v3729 = vpop.f32.mrb[0].mxu0
  %v3730 = vadd.f32 %v3633, %v3729
  %v3731 = vpop.f32.mrb[0].mxu0
  %3732 = vmatprep.mubr.bf16.mxu0 %v2980
  %3733 = vmatmul.mubr.bf16.gmra.mrb[0].mxu0 %v2979
  %v3734 = vpop.f32.mrb[0].mxu0
  %v3735 = vadd.f32 %v3638, %v3734
  %v3736 = vpop.f32.mrb[0].mxu0
  %v3737 = vpop.f32.mrb[0].mxu0
  %v3738 = vadd.f32 %v3641, %v3737
  %v3739 = vpop.f32.mrb[0].mxu0
  %3740 = vmatprep.mubr.bf16.mxu0 %v3016
  %3741 = vmatmul.mubr.bf16.gmra.mrb[0].mxu0 %v3015
  %v3742 = vpop.f32.mrb[0].mxu0
  %v3743 = vadd.f32 %v3646, %v3742
  %v3744 = vpop.f32.mrb[0].mxu0
  %v3745 = vpop.f32.mrb[0].mxu0
  %v3746 = vadd.f32 %v3649, %v3745
  %v3747 = vpop.f32.mrb[0].mxu0
  %3748 = vmatprep.mubr.bf16.mxu0 %v3052
  %3749 = vmatmul.mubr.bf16.gmra.mrb[0].mxu0 %v3051
  %v3750 = vpop.f32.mrb[0].mxu0
  %v3751 = vadd.f32 %v3654, %v3750
  %v3752 = vpop.f32.mrb[0].mxu0
  %v3753 = vpop.f32.mrb[0].mxu0
  %v3754 = vadd.f32 %v3657, %v3753
  %v3755 = vpop.f32.mrb[0].mxu0
  %3756 = vdwg.mxu0
  %3757 = vmatprep.subr.bf16.mxu0 0
  %3758 = vmatpush1.bf16.msra.mxu0 %v1412
  %3759 = vmatprep.subr.bf16.mxu0 0
  %3760 = vmatpush1.bf16.msra.mxu0 %v1413
  %3761 = vmatprep.subr.bf16.mxu0 0
  %3762 = vmatpush1.bf16.msra.mxu0 %v1414
  %3763 = vmatprep.subr.bf16.mxu0 0
  %3764 = vmatpush1.bf16.msra.mxu0 %v1415
  %3765 = vmatprep.subr.bf16.mxu0 0
  %3766 = vmatpush1.bf16.msra.mxu0 %v1416
  %3767 = vmatprep.subr.bf16.mxu0 0
  %3768 = vmatpush1.bf16.msra.mxu0 %v1417
  %3769 = vmatprep.subr.bf16.mxu0 0
  %3770 = vmatpush1.bf16.msra.mxu0 %v1418
  %3771 = vmatprep.subr.bf16.mxu0 0
  %3772 = vmatpush1.bf16.msra.mxu0 %v1419
  %3773 = vmatprep.subr.bf16.mxu0 0
  %3774 = vmatpush1.bf16.msra.mxu0 %v1420
  %3775 = vmatprep.subr.bf16.mxu0 0
  %3776 = vmatpush1.bf16.msra.mxu0 %v1421
  %3777 = vmatprep.subr.bf16.mxu0 0
  %3778 = vmatpush1.bf16.msra.mxu0 %v1422
  %3779 = vmatprep.subr.bf16.mxu0 0
  %3780 = vmatpush1.bf16.msra.mxu0 %v1423
  %3781 = vmatprep.subr.bf16.mxu0 0
  %3782 = vmatpush1.bf16.msra.mxu0 %v1424
  %3783 = vmatprep.subr.bf16.mxu0 0
  %3784 = vmatpush1.bf16.msra.mxu0 %v1425
  %3785 = vmatprep.subr.bf16.mxu0 0
  %3786 = vmatpush1.bf16.msra.mxu0 %v1426
  %3787 = vmatprep.subr.bf16.mxu0 0
  %3788 = vmatpush1.bf16.msra.mxu0 %v1427
  %3789 = vmatprep.mubr.bf16.mxu0 %v2802
  %3790 = vmatmul.mubr.bf16.gmra.mrb[0].mxu0 %v2801
  %v3791 = vpop.f32.mrb[0].mxu0
  %v3792 = vadd.f32 %v3695, %v3791
  %v3793 = vpop.f32.mrb[0].mxu0
  %v3794 = vpop.f32.mrb[0].mxu0
  %v3795 = vadd.f32 %v3698, %v3794
  %v3796 = vpop.f32.mrb[0].mxu0
  %3797 = vmatprep.mubr.bf16.mxu0 %v2838
  %3798 = vmatmul.mubr.bf16.gmra.mrb[0].mxu0 %v2837
  %v3799 = vpop.f32.mrb[0].mxu0
  %v3800 = vadd.f32 %v3703, %v3799
  %v3801 = vpop.f32.mrb[0].mxu0
  %v3802 = vpop.f32.mrb[0].mxu0
  %v3803 = vadd.f32 %v3706, %v3802
  %v3804 = vpop.f32.mrb[0].mxu0
  %3805 = vmatprep.mubr.bf16.mxu0 %v2874
  %3806 = vmatmul.mubr.bf16.gmra.mrb[0].mxu0 %v2873
  %v3807 = vpop.f32.mrb[0].mxu0
  %v3808 = vadd.f32 %v3711, %v3807
  %v3809 = vpop.f32.mrb[0].mxu0
  %v3810 = vpop.f32.mrb[0].mxu0
  %v3811 = vadd.f32 %v3714, %v3810
  %v3812 = vpop.f32.mrb[0].mxu0
  %3813 = vmatprep.mubr.bf16.mxu0 %v2910
  %3814 = vmatmul.mubr.bf16.gmra.mrb[0].mxu0 %v2909
  %v3815 = vpop.f32.mrb[0].mxu0
  %v3816 = vadd.f32 %v3719, %v3815
  %v3817 = vpop.f32.mrb[0].mxu0
  %v3818 = vpop.f32.mrb[0].mxu0
  %v3819 = vadd.f32 %v3722, %v3818
  %v3820 = vpop.f32.mrb[0].mxu0
  %3821 = vmatprep.mubr.bf16.mxu0 %v2946
  %3822 = vmatmul.mubr.bf16.gmra.mrb[0].mxu0 %v2945
  %v3823 = vpop.f32.mrb[0].mxu0
  %v3824 = vadd.f32 %v3727, %v3823
  %v3825 = vpop.f32.mrb[0].mxu0
  %v3826 = vpop.f32.mrb[0].mxu0
  %v3827 = vadd.f32 %v3730, %v3826
  %v3828 = vpop.f32.mrb[0].mxu0
  %3829 = vmatprep.mubr.bf16.mxu0 %v2982
  %3830 = vmatmul.mubr.bf16.gmra.mrb[0].mxu0 %v2981
  %v3831 = vpop.f32.mrb[0].mxu0
  %v3832 = vadd.f32 %v3735, %v3831
  %v3833 = vpop.f32.mrb[0].mxu0
  %v3834 = vpop.f32.mrb[0].mxu0
  %v3835 = vadd.f32 %v3738, %v3834
  %v3836 = vpop.f32.mrb[0].mxu0
  %3837 = vmatprep.mubr.bf16.mxu0 %v3018
  %3838 = vmatmul.mubr.bf16.gmra.mrb[0].mxu0 %v3017
  %v3839 = vpop.f32.mrb[0].mxu0
  %v3840 = vadd.f32 %v3743, %v3839
  %v3841 = vpop.f32.mrb[0].mxu0
  %v3842 = vpop.f32.mrb[0].mxu0
  %v3843 = vadd.f32 %v3746, %v3842
  %v3844 = vpop.f32.mrb[0].mxu0
  %3845 = vmatprep.mubr.bf16.mxu0 %v3054
  %3846 = vmatmul.mubr.bf16.gmra.mrb[0].mxu0 %v3053
  %v3847 = vpop.f32.mrb[0].mxu0
  %v3848 = vadd.f32 %v3751, %v3847
  %v3849 = vpop.f32.mrb[0].mxu0
  %v3850 = vpop.f32.mrb[0].mxu0
  %v3851 = vadd.f32 %v3754, %v3850
  %v3852 = vpop.f32.mrb[0].mxu0
  %3853 = vdwg.mxu0
  %3854 = vmatprep.subr.bf16.mxu0 0
  %3855 = vmatpush1.bf16.msra.mxu0 %v1428
  %3856 = vmatprep.subr.bf16.mxu0 0
  %3857 = vmatpush1.bf16.msra.mxu0 %v1429
  %3858 = vmatprep.subr.bf16.mxu0 0
  %3859 = vmatpush1.bf16.msra.mxu0 %v1430
  %3860 = vmatprep.subr.bf16.mxu0 0
  %3861 = vmatpush1.bf16.msra.mxu0 %v1431
  %3862 = vmatprep.subr.bf16.mxu0 0
  %3863 = vmatpush1.bf16.msra.mxu0 %v1432
  %3864 = vmatprep.subr.bf16.mxu0 0
  %3865 = vmatpush1.bf16.msra.mxu0 %v1433
  %3866 = vmatprep.subr.bf16.mxu0 0
  %3867 = vmatpush1.bf16.msra.mxu0 %v1434
  %3868 = vmatprep.subr.bf16.mxu0 0
  %3869 = vmatpush1.bf16.msra.mxu0 %v1435
  %3870 = vmatprep.subr.bf16.mxu0 0
  %3871 = vmatpush1.bf16.msra.mxu0 %v1436
  %3872 = vmatprep.subr.bf16.mxu0 0
  %3873 = vmatpush1.bf16.msra.mxu0 %v1437
  %3874 = vmatprep.subr.bf16.mxu0 0
  %3875 = vmatpush1.bf16.msra.mxu0 %v1438
  %3876 = vmatprep.subr.bf16.mxu0 0
  %3877 = vmatpush1.bf16.msra.mxu0 %v1439
  %3878 = vmatprep.subr.bf16.mxu0 0
  %3879 = vmatpush1.bf16.msra.mxu0 %v1440
  %3880 = vmatprep.subr.bf16.mxu0 0
  %3881 = vmatpush1.bf16.msra.mxu0 %v1441
  %3882 = vmatprep.subr.bf16.mxu0 0
  %3883 = vmatpush1.bf16.msra.mxu0 %v1442
  %3884 = vmatprep.subr.bf16.mxu0 0
  %3885 = vmatpush1.bf16.msra.mxu0 %v1443
  %3886 = vmatprep.mubr.bf16.mxu0 %v2804
  %3887 = vmatmul.mubr.bf16.gmra.mrb[0].mxu0 %v2803
  %v3888 = vpop.f32.mrb[0].mxu0
  %v3889 = vadd.f32 %v3792, %v3888
  %v3890 = vpop.f32.mrb[0].mxu0
  %v3891 = vpop.f32.mrb[0].mxu0
  %v3892 = vadd.f32 %v3795, %v3891
  %v3893 = vpop.f32.mrb[0].mxu0
  %3894 = vmatprep.mubr.bf16.mxu0 %v2840
  %3895 = vmatmul.mubr.bf16.gmra.mrb[0].mxu0 %v2839
  %v3896 = vpop.f32.mrb[0].mxu0
  %v3897 = vadd.f32 %v3800, %v3896
  %v3898 = vpop.f32.mrb[0].mxu0
  %v3899 = vpop.f32.mrb[0].mxu0
  %v3900 = vadd.f32 %v3803, %v3899
  %v3901 = vpop.f32.mrb[0].mxu0
  %3902 = vmatprep.mubr.bf16.mxu0 %v2876
  %3903 = vmatmul.mubr.bf16.gmra.mrb[0].mxu0 %v2875
  %v3904 = vpop.f32.mrb[0].mxu0
  %v3905 = vadd.f32 %v3808, %v3904
  %v3906 = vpop.f32.mrb[0].mxu0
  %v3907 = vpop.f32.mrb[0].mxu0
  %v3908 = vadd.f32 %v3811, %v3907
  %v3909 = vpop.f32.mrb[0].mxu0
  %3910 = vmatprep.mubr.bf16.mxu0 %v2912
  %3911 = vmatmul.mubr.bf16.gmra.mrb[0].mxu0 %v2911
  %v3912 = vpop.f32.mrb[0].mxu0
  %v3913 = vadd.f32 %v3816, %v3912
  %v3914 = vpop.f32.mrb[0].mxu0
  %v3915 = vpop.f32.mrb[0].mxu0
  %v3916 = vadd.f32 %v3819, %v3915
  %v3917 = vpop.f32.mrb[0].mxu0
  %3918 = vmatprep.mubr.bf16.mxu0 %v2948
  %3919 = vmatmul.mubr.bf16.gmra.mrb[0].mxu0 %v2947
  %v3920 = vpop.f32.mrb[0].mxu0
  %v3921 = vadd.f32 %v3824, %v3920
  %v3922 = vpop.f32.mrb[0].mxu0
  %v3923 = vpop.f32.mrb[0].mxu0
  %v3924 = vadd.f32 %v3827, %v3923
  %v3925 = vpop.f32.mrb[0].mxu0
  %3926 = vmatprep.mubr.bf16.mxu0 %v2984
  %3927 = vmatmul.mubr.bf16.gmra.mrb[0].mxu0 %v2983
  %v3928 = vpop.f32.mrb[0].mxu0
  %v3929 = vadd.f32 %v3832, %v3928
  %v3930 = vpop.f32.mrb[0].mxu0
  %v3931 = vpop.f32.mrb[0].mxu0
  %v3932 = vadd.f32 %v3835, %v3931
  %v3933 = vpop.f32.mrb[0].mxu0
  %3934 = vmatprep.mubr.bf16.mxu0 %v3020
  %3935 = vmatmul.mubr.bf16.gmra.mrb[0].mxu0 %v3019
  %v3936 = vpop.f32.mrb[0].mxu0
  %v3937 = vadd.f32 %v3840, %v3936
  %v3938 = vpop.f32.mrb[0].mxu0
  %v3939 = vpop.f32.mrb[0].mxu0
  %v3940 = vadd.f32 %v3843, %v3939
  %v3941 = vpop.f32.mrb[0].mxu0
  %3942 = vmatprep.mubr.bf16.mxu0 %v3056
  %3943 = vmatmul.mubr.bf16.gmra.mrb[0].mxu0 %v3055
  %v3944 = vpop.f32.mrb[0].mxu0
  %v3945 = vadd.f32 %v3848, %v3944
  %v3946 = vpop.f32.mrb[0].mxu0
  %v3947 = vpop.f32.mrb[0].mxu0
  %v3948 = vadd.f32 %v3851, %v3947
  %v3949 = vpop.f32.mrb[0].mxu0
  %3950 = vdwg.mxu0
  %3951 = vmatprep.subr.bf16.mxu0 0
  %3952 = vmatpush1.bf16.msra.mxu0 %v1444
  %3953 = vmatprep.subr.bf16.mxu0 0
  %3954 = vmatpush1.bf16.msra.mxu0 %v1445
  %3955 = vmatprep.subr.bf16.mxu0 0
  %3956 = vmatpush1.bf16.msra.mxu0 %v1446
  %3957 = vmatprep.subr.bf16.mxu0 0
  %3958 = vmatpush1.bf16.msra.mxu0 %v1447
  %3959 = vmatprep.subr.bf16.mxu0 0
  %3960 = vmatpush1.bf16.msra.mxu0 %v1448
  %3961 = vmatprep.subr.bf16.mxu0 0
  %3962 = vmatpush1.bf16.msra.mxu0 %v1449
  %3963 = vmatprep.subr.bf16.mxu0 0
  %3964 = vmatpush1.bf16.msra.mxu0 %v1450
  %3965 = vmatprep.subr.bf16.mxu0 0
  %3966 = vmatpush1.bf16.msra.mxu0 %v1451
  %3967 = vmatprep.subr.bf16.mxu0 0
  %3968 = vmatpush1.bf16.msra.mxu0 %v1452
  %3969 = vmatprep.subr.bf16.mxu0 0
  %3970 = vmatpush1.bf16.msra.mxu0 %v1453
  %3971 = vmatprep.subr.bf16.mxu0 0
  %3972 = vmatpush1.bf16.msra.mxu0 %v1454
  %3973 = vmatprep.subr.bf16.mxu0 0
  %3974 = vmatpush1.bf16.msra.mxu0 %v1455
  %3975 = vmatprep.subr.bf16.mxu0 0
  %3976 = vmatpush1.bf16.msra.mxu0 %v1456
  %3977 = vmatprep.subr.bf16.mxu0 0
  %3978 = vmatpush1.bf16.msra.mxu0 %v1457
  %3979 = vmatprep.subr.bf16.mxu0 0
  %3980 = vmatpush1.bf16.msra.mxu0 %v1458
  %3981 = vmatprep.subr.bf16.mxu0 0
  %3982 = vmatpush1.bf16.msra.mxu0 %v1459
  %3983 = vmatprep.mubr.bf16.mxu0 %v2806
  %3984 = vmatmul.mubr.bf16.gmra.mrb[0].mxu0 %v2805
  %v3985 = vpop.f32.mrb[0].mxu0
  %v3986 = vadd.f32 %v3889, %v3985
  %v3987 = vpop.f32.mrb[0].mxu0
  %v3988 = vpop.f32.mrb[0].mxu0
  %v3989 = vadd.f32 %v3892, %v3988
  %v3990 = vpop.f32.mrb[0].mxu0
  %3991 = vmatprep.mubr.bf16.mxu0 %v2842
  %3992 = vmatmul.mubr.bf16.gmra.mrb[0].mxu0 %v2841
  %v3993 = vpop.f32.mrb[0].mxu0
  %v3994 = vadd.f32 %v3897, %v3993
  %v3995 = vpop.f32.mrb[0].mxu0
  %v3996 = vpop.f32.mrb[0].mxu0
  %v3997 = vadd.f32 %v3900, %v3996
  %v3998 = vpop.f32.mrb[0].mxu0
  %3999 = vmatprep.mubr.bf16.mxu0 %v2878
  %4000 = vmatmul.mubr.bf16.gmra.mrb[0].mxu0 %v2877
  %v4001 = vpop.f32.mrb[0].mxu0
  %v4002 = vadd.f32 %v3905, %v4001
  %v4003 = vpop.f32.mrb[0].mxu0
  %v4004 = vpop.f32.mrb[0].mxu0
  %v4005 = vadd.f32 %v3908, %v4004
  %v4006 = vpop.f32.mrb[0].mxu0
  %4007 = vmatprep.mubr.bf16.mxu0 %v2914
  %4008 = vmatmul.mubr.bf16.gmra.mrb[0].mxu0 %v2913
  %v4009 = vpop.f32.mrb[0].mxu0
  %v4010 = vadd.f32 %v3913, %v4009
  %v4011 = vpop.f32.mrb[0].mxu0
  %v4012 = vpop.f32.mrb[0].mxu0
  %v4013 = vadd.f32 %v3916, %v4012
  %v4014 = vpop.f32.mrb[0].mxu0
  %4015 = vmatprep.mubr.bf16.mxu0 %v2950
  %4016 = vmatmul.mubr.bf16.gmra.mrb[0].mxu0 %v2949
  %v4017 = vpop.f32.mrb[0].mxu0
  %v4018 = vadd.f32 %v3921, %v4017
  %v4019 = vpop.f32.mrb[0].mxu0
  %v4020 = vpop.f32.mrb[0].mxu0
  %v4021 = vadd.f32 %v3924, %v4020
  %v4022 = vpop.f32.mrb[0].mxu0
  %4023 = vmatprep.mubr.bf16.mxu0 %v2986
  %4024 = vmatmul.mubr.bf16.gmra.mrb[0].mxu0 %v2985
  %v4025 = vpop.f32.mrb[0].mxu0
  %v4026 = vadd.f32 %v3929, %v4025
  %v4027 = vpop.f32.mrb[0].mxu0
  %v4028 = vpop.f32.mrb[0].mxu0
  %v4029 = vadd.f32 %v3932, %v4028
  %v4030 = vpop.f32.mrb[0].mxu0
  %4031 = vmatprep.mubr.bf16.mxu0 %v3022
  %4032 = vmatmul.mubr.bf16.gmra.mrb[0].mxu0 %v3021
  %v4033 = vpop.f32.mrb[0].mxu0
  %v4034 = vadd.f32 %v3937, %v4033
  %v4035 = vpop.f32.mrb[0].mxu0
  %v4036 = vpop.f32.mrb[0].mxu0
  %v4037 = vadd.f32 %v3940, %v4036
  %v4038 = vpop.f32.mrb[0].mxu0
  %4039 = vmatprep.mubr.bf16.mxu0 %v3058
  %4040 = vmatmul.mubr.bf16.gmra.mrb[0].mxu0 %v3057
  %v4041 = vpop.f32.mrb[0].mxu0
  %v4042 = vadd.f32 %v3945, %v4041
  %v4043 = vpop.f32.mrb[0].mxu0
  %v4044 = vpop.f32.mrb[0].mxu0
  %v4045 = vadd.f32 %v3948, %v4044
  %v4046 = vpop.f32.mrb[0].mxu0
  %4047 = vdwg.mxu0
  %4048 = vmatprep.subr.bf16.mxu0 0
  %4049 = vmatpush1.bf16.msra.mxu0 %v1460
  %4050 = vmatprep.subr.bf16.mxu0 0
  %4051 = vmatpush1.bf16.msra.mxu0 %v1461
  %4052 = vmatprep.subr.bf16.mxu0 0
  %4053 = vmatpush1.bf16.msra.mxu0 %v1462
  %4054 = vmatprep.subr.bf16.mxu0 0
  %4055 = vmatpush1.bf16.msra.mxu0 %v1463
  %4056 = vmatprep.subr.bf16.mxu0 0
  %4057 = vmatpush1.bf16.msra.mxu0 %v1464
  %4058 = vmatprep.subr.bf16.mxu0 0
  %4059 = vmatpush1.bf16.msra.mxu0 %v1465
  %4060 = vmatprep.subr.bf16.mxu0 0
  %4061 = vmatpush1.bf16.msra.mxu0 %v1466
  %4062 = vmatprep.subr.bf16.mxu0 0
  %4063 = vmatpush1.bf16.msra.mxu0 %v1467
  %4064 = vmatprep.subr.bf16.mxu0 0
  %4065 = vmatpush1.bf16.msra.mxu0 %v1468
  %4066 = vmatprep.subr.bf16.mxu0 0
  %4067 = vmatpush1.bf16.msra.mxu0 %v1469
  %4068 = vmatprep.subr.bf16.mxu0 0
  %4069 = vmatpush1.bf16.msra.mxu0 %v1470
  %4070 = vmatprep.subr.bf16.mxu0 0
  %4071 = vmatpush1.bf16.msra.mxu0 %v1471
  %4072 = vmatprep.subr.bf16.mxu0 0
  %4073 = vmatpush1.bf16.msra.mxu0 %v1472
  %4074 = vmatprep.subr.bf16.mxu0 0
  %4075 = vmatpush1.bf16.msra.mxu0 %v1473
  %4076 = vmatprep.subr.bf16.mxu0 0
  %4077 = vmatpush1.bf16.msra.mxu0 %v1474
  %4078 = vmatprep.subr.bf16.mxu0 0
  %4079 = vmatpush1.bf16.msra.mxu0 %v1475
  %4080 = vmatprep.mubr.bf16.mxu0 %v2808
  %4081 = vmatmul.mubr.bf16.gmra.mrb[0].mxu0 %v2807
  %v4082 = vpop.f32.mrb[0].mxu0
  %v4083 = vadd.f32 %v3986, %v4082
  %v4084 = vpop.f32.mrb[0].mxu0
  %v4085 = vpop.f32.mrb[0].mxu0
  %v4086 = vadd.f32 %v3989, %v4085
  %v4087 = vpop.f32.mrb[0].mxu0
  %4088 = vmatprep.mubr.bf16.mxu0 %v2844
  %4089 = vmatmul.mubr.bf16.gmra.mrb[0].mxu0 %v2843
  %v4090 = vpop.f32.mrb[0].mxu0
  %v4091 = vadd.f32 %v3994, %v4090
  %v4092 = vpop.f32.mrb[0].mxu0
  %v4093 = vpop.f32.mrb[0].mxu0
  %v4094 = vadd.f32 %v3997, %v4093
  %v4095 = vpop.f32.mrb[0].mxu0
  %4096 = vmatprep.mubr.bf16.mxu0 %v2880
  %4097 = vmatmul.mubr.bf16.gmra.mrb[0].mxu0 %v2879
  %v4098 = vpop.f32.mrb[0].mxu0
  %v4099 = vadd.f32 %v4002, %v4098
  %v4100 = vpop.f32.mrb[0].mxu0
  %v4101 = vpop.f32.mrb[0].mxu0
  %v4102 = vadd.f32 %v4005, %v4101
  %v4103 = vpop.f32.mrb[0].mxu0
  %4104 = vmatprep.mubr.bf16.mxu0 %v2916
  %4105 = vmatmul.mubr.bf16.gmra.mrb[0].mxu0 %v2915
  %v4106 = vpop.f32.mrb[0].mxu0
  %v4107 = vadd.f32 %v4010, %v4106
  %v4108 = vpop.f32.mrb[0].mxu0
  %v4109 = vpop.f32.mrb[0].mxu0
  %v4110 = vadd.f32 %v4013, %v4109
  %v4111 = vpop.f32.mrb[0].mxu0
  %4112 = vmatprep.mubr.bf16.mxu0 %v2952
  %4113 = vmatmul.mubr.bf16.gmra.mrb[0].mxu0 %v2951
  %v4114 = vpop.f32.mrb[0].mxu0
  %v4115 = vadd.f32 %v4018, %v4114
  %v4116 = vpop.f32.mrb[0].mxu0
  %v4117 = vpop.f32.mrb[0].mxu0
  %v4118 = vadd.f32 %v4021, %v4117
  %v4119 = vpop.f32.mrb[0].mxu0
  %4120 = vmatprep.mubr.bf16.mxu0 %v2988
  %4121 = vmatmul.mubr.bf16.gmra.mrb[0].mxu0 %v2987
  %v4122 = vpop.f32.mrb[0].mxu0
  %v4123 = vadd.f32 %v4026, %v4122
  %v4124 = vpop.f32.mrb[0].mxu0
  %v4125 = vpop.f32.mrb[0].mxu0
  %v4126 = vadd.f32 %v4029, %v4125
  %v4127 = vpop.f32.mrb[0].mxu0
  %4128 = vmatprep.mubr.bf16.mxu0 %v3024
  %4129 = vmatmul.mubr.bf16.gmra.mrb[0].mxu0 %v3023
  %v4130 = vpop.f32.mrb[0].mxu0
  %v4131 = vadd.f32 %v4034, %v4130
  %v4132 = vpop.f32.mrb[0].mxu0
  %v4133 = vpop.f32.mrb[0].mxu0
  %v4134 = vadd.f32 %v4037, %v4133
  %v4135 = vpop.f32.mrb[0].mxu0
  %4136 = vmatprep.mubr.bf16.mxu0 %v3060
  %4137 = vmatmul.mubr.bf16.gmra.mrb[0].mxu0 %v3059
  %v4138 = vpop.f32.mrb[0].mxu0
  %v4139 = vadd.f32 %v4042, %v4138
  %v4140 = vpop.f32.mrb[0].mxu0
  %v4141 = vpop.f32.mrb[0].mxu0
  %v4142 = vadd.f32 %v4045, %v4141
  %v4143 = vpop.f32.mrb[0].mxu0
  %4144 = vdwg.mxu0
  %4145 = vmatprep.subr.bf16.mxu0 0
  %4146 = vmatpush1.bf16.msra.mxu0 %v1476
  %4147 = vmatprep.subr.bf16.mxu0 0
  %4148 = vmatpush1.bf16.msra.mxu0 %v1477
  %4149 = vmatprep.subr.bf16.mxu0 0
  %4150 = vmatpush1.bf16.msra.mxu0 %v1478
  %4151 = vmatprep.subr.bf16.mxu0 0
  %4152 = vmatpush1.bf16.msra.mxu0 %v1479
  %4153 = vmatprep.subr.bf16.mxu0 0
  %4154 = vmatpush1.bf16.msra.mxu0 %v1480
  %4155 = vmatprep.subr.bf16.mxu0 0
  %4156 = vmatpush1.bf16.msra.mxu0 %v1481
  %4157 = vmatprep.subr.bf16.mxu0 0
  %4158 = vmatpush1.bf16.msra.mxu0 %v1482
  %4159 = vmatprep.subr.bf16.mxu0 0
  %4160 = vmatpush1.bf16.msra.mxu0 %v1483
  %4161 = vmatprep.subr.bf16.mxu0 0
  %4162 = vmatpush1.bf16.msra.mxu0 %v1484
  %4163 = vmatprep.subr.bf16.mxu0 0
  %4164 = vmatpush1.bf16.msra.mxu0 %v1485
  %4165 = vmatprep.subr.bf16.mxu0 0
  %4166 = vmatpush1.bf16.msra.mxu0 %v1486
  %4167 = vmatprep.subr.bf16.mxu0 0
  %4168 = vmatpush1.bf16.msra.mxu0 %v1487
  %4169 = vmatprep.subr.bf16.mxu0 0
  %4170 = vmatpush1.bf16.msra.mxu0 %v1488
  %4171 = vmatprep.subr.bf16.mxu0 0
  %4172 = vmatpush1.bf16.msra.mxu0 %v1489
  %4173 = vmatprep.subr.bf16.mxu0 0
  %4174 = vmatpush1.bf16.msra.mxu0 %v1490
  %4175 = vmatprep.subr.bf16.mxu0 0
  %4176 = vmatpush1.bf16.msra.mxu0 %v1491
  %4177 = vmatprep.mubr.bf16.mxu0 %v2810
  %4178 = vmatmul.mubr.bf16.gmra.mrb[0].mxu0 %v2809
  %v4179 = vpop.f32.mrb[0].mxu0
  %v4180 = vadd.f32 %v4083, %v4179
  %v4181 = vpop.f32.mrb[0].mxu0
  %v4182 = vpop.f32.mrb[0].mxu0
  %v4183 = vadd.f32 %v4086, %v4182
  %v4184 = vpop.f32.mrb[0].mxu0
  %4185 = vmatprep.mubr.bf16.mxu0 %v2846
  %4186 = vmatmul.mubr.bf16.gmra.mrb[0].mxu0 %v2845
  %v4187 = vpop.f32.mrb[0].mxu0
  %v4188 = vadd.f32 %v4091, %v4187
  %v4189 = vpop.f32.mrb[0].mxu0
  %v4190 = vpop.f32.mrb[0].mxu0
  %v4191 = vadd.f32 %v4094, %v4190
  %v4192 = vpop.f32.mrb[0].mxu0
  %4193 = vmatprep.mubr.bf16.mxu0 %v2882
  %4194 = vmatmul.mubr.bf16.gmra.mrb[0].mxu0 %v2881
  %v4195 = vpop.f32.mrb[0].mxu0
  %v4196 = vadd.f32 %v4099, %v4195
  %v4197 = vpop.f32.mrb[0].mxu0
  %v4198 = vpop.f32.mrb[0].mxu0
  %v4199 = vadd.f32 %v4102, %v4198
  %v4200 = vpop.f32.mrb[0].mxu0
  %4201 = vmatprep.mubr.bf16.mxu0 %v2918
  %4202 = vmatmul.mubr.bf16.gmra.mrb[0].mxu0 %v2917
  %v4203 = vpop.f32.mrb[0].mxu0
  %v4204 = vadd.f32 %v4107, %v4203
  %v4205 = vpop.f32.mrb[0].mxu0
  %v4206 = vpop.f32.mrb[0].mxu0
  %v4207 = vadd.f32 %v4110, %v4206
  %v4208 = vpop.f32.mrb[0].mxu0
  %4209 = vmatprep.mubr.bf16.mxu0 %v2954
  %4210 = vmatmul.mubr.bf16.gmra.mrb[0].mxu0 %v2953
  %v4211 = vpop.f32.mrb[0].mxu0
  %v4212 = vadd.f32 %v4115, %v4211
  %v4213 = vpop.f32.mrb[0].mxu0
  %v4214 = vpop.f32.mrb[0].mxu0
  %v4215 = vadd.f32 %v4118, %v4214
  %v4216 = vpop.f32.mrb[0].mxu0
  %4217 = vmatprep.mubr.bf16.mxu0 %v2990
  %4218 = vmatmul.mubr.bf16.gmra.mrb[0].mxu0 %v2989
  %v4219 = vpop.f32.mrb[0].mxu0
  %v4220 = vadd.f32 %v4123, %v4219
  %v4221 = vpop.f32.mrb[0].mxu0
  %v4222 = vpop.f32.mrb[0].mxu0
  %v4223 = vadd.f32 %v4126, %v4222
  %v4224 = vpop.f32.mrb[0].mxu0
  %4225 = vmatprep.mubr.bf16.mxu0 %v3026
  %4226 = vmatmul.mubr.bf16.gmra.mrb[0].mxu0 %v3025
  %v4227 = vpop.f32.mrb[0].mxu0
  %v4228 = vadd.f32 %v4131, %v4227
  %v4229 = vpop.f32.mrb[0].mxu0
  %v4230 = vpop.f32.mrb[0].mxu0
  %v4231 = vadd.f32 %v4134, %v4230
  %v4232 = vpop.f32.mrb[0].mxu0
  %4233 = vmatprep.mubr.bf16.mxu0 %v3062
  %4234 = vmatmul.mubr.bf16.gmra.mrb[0].mxu0 %v3061
  %v4235 = vpop.f32.mrb[0].mxu0
  %v4236 = vadd.f32 %v4139, %v4235
  %v4237 = vpop.f32.mrb[0].mxu0
  %v4238 = vpop.f32.mrb[0].mxu0
  %v4239 = vadd.f32 %v4142, %v4238
  %v4240 = vpop.f32.mrb[0].mxu0
  %4241 = vdwg.mxu0
  %4242 = vmatprep.subr.bf16.mxu0 0
  %4243 = vmatpush1.bf16.msra.mxu0 %v1492
  %4244 = vmatprep.subr.bf16.mxu0 0
  %4245 = vmatpush1.bf16.msra.mxu0 %v1493
  %4246 = vmatprep.subr.bf16.mxu0 0
  %4247 = vmatpush1.bf16.msra.mxu0 %v1494
  %4248 = vmatprep.subr.bf16.mxu0 0
  %4249 = vmatpush1.bf16.msra.mxu0 %v1495
  %4250 = vmatprep.subr.bf16.mxu0 0
  %4251 = vmatpush1.bf16.msra.mxu0 %v1496
  %4252 = vmatprep.subr.bf16.mxu0 0
  %4253 = vmatpush1.bf16.msra.mxu0 %v1497
  %4254 = vmatprep.subr.bf16.mxu0 0
  %4255 = vmatpush1.bf16.msra.mxu0 %v1498
  %4256 = vmatprep.subr.bf16.mxu0 0
  %4257 = vmatpush1.bf16.msra.mxu0 %v1499
  %4258 = vmatprep.subr.bf16.mxu0 0
  %4259 = vmatpush1.bf16.msra.mxu0 %v1500
  %4260 = vmatprep.subr.bf16.mxu0 0
  %4261 = vmatpush1.bf16.msra.mxu0 %v1501
  %4262 = vmatprep.subr.bf16.mxu0 0
  %4263 = vmatpush1.bf16.msra.mxu0 %v1502
  %4264 = vmatprep.subr.bf16.mxu0 0
  %4265 = vmatpush1.bf16.msra.mxu0 %v1503
  %4266 = vmatprep.subr.bf16.mxu0 0
  %4267 = vmatpush1.bf16.msra.mxu0 %v1504
  %4268 = vmatprep.subr.bf16.mxu0 0
  %4269 = vmatpush1.bf16.msra.mxu0 %v1505
  %4270 = vmatprep.subr.bf16.mxu0 0
  %4271 = vmatpush1.bf16.msra.mxu0 %v1506
  %4272 = vmatprep.subr.bf16.mxu0 0
  %4273 = vmatpush1.bf16.msra.mxu0 %v1507
  %4274 = vmatprep.mubr.bf16.mxu0 %v2812
  %4275 = vmatmul.mubr.bf16.gmra.mrb[0].mxu0 %v2811
  %v4276 = vpop.f32.mrb[0].mxu0
  %v4277 = vadd.f32 %v4180, %v4276
  %v4278 = vpop.f32.mrb[0].mxu0
  %v4279 = vpop.f32.mrb[0].mxu0
  %v4280 = vadd.f32 %v4183, %v4279
  %v4281 = vpop.f32.mrb[0].mxu0
  %4282 = vmatprep.mubr.bf16.mxu0 %v2848
  %4283 = vmatmul.mubr.bf16.gmra.mrb[0].mxu0 %v2847
  %v4284 = vpop.f32.mrb[0].mxu0
  %v4285 = vadd.f32 %v4188, %v4284
  %v4286 = vpop.f32.mrb[0].mxu0
  %v4287 = vpop.f32.mrb[0].mxu0
  %v4288 = vadd.f32 %v4191, %v4287
  %v4289 = vpop.f32.mrb[0].mxu0
  %4290 = vmatprep.mubr.bf16.mxu0 %v2884
  %4291 = vmatmul.mubr.bf16.gmra.mrb[0].mxu0 %v2883
  %v4292 = vpop.f32.mrb[0].mxu0
  %v4293 = vadd.f32 %v4196, %v4292
  %v4294 = vpop.f32.mrb[0].mxu0
  %v4295 = vpop.f32.mrb[0].mxu0
  %v4296 = vadd.f32 %v4199, %v4295
  %v4297 = vpop.f32.mrb[0].mxu0
  %4298 = vmatprep.mubr.bf16.mxu0 %v2920
  %4299 = vmatmul.mubr.bf16.gmra.mrb[0].mxu0 %v2919
  %v4300 = vpop.f32.mrb[0].mxu0
  %v4301 = vadd.f32 %v4204, %v4300
  %v4302 = vpop.f32.mrb[0].mxu0
  %v4303 = vpop.f32.mrb[0].mxu0
  %v4304 = vadd.f32 %v4207, %v4303
  %v4305 = vpop.f32.mrb[0].mxu0
  %4306 = vmatprep.mubr.bf16.mxu0 %v2956
  %4307 = vmatmul.mubr.bf16.gmra.mrb[0].mxu0 %v2955
  %v4308 = vpop.f32.mrb[0].mxu0
  %v4309 = vadd.f32 %v4212, %v4308
  %v4310 = vpop.f32.mrb[0].mxu0
  %v4311 = vpop.f32.mrb[0].mxu0
  %v4312 = vadd.f32 %v4215, %v4311
  %v4313 = vpop.f32.mrb[0].mxu0
  %4314 = vmatprep.mubr.bf16.mxu0 %v2992
  %4315 = vmatmul.mubr.bf16.gmra.mrb[0].mxu0 %v2991
  %v4316 = vpop.f32.mrb[0].mxu0
  %v4317 = vadd.f32 %v4220, %v4316
  %v4318 = vpop.f32.mrb[0].mxu0
  %v4319 = vpop.f32.mrb[0].mxu0
  %v4320 = vadd.f32 %v4223, %v4319
  %v4321 = vpop.f32.mrb[0].mxu0
  %4322 = vmatprep.mubr.bf16.mxu0 %v3028
  %4323 = vmatmul.mubr.bf16.gmra.mrb[0].mxu0 %v3027
  %v4324 = vpop.f32.mrb[0].mxu0
  %v4325 = vadd.f32 %v4228, %v4324
  %v4326 = vpop.f32.mrb[0].mxu0
  %v4327 = vpop.f32.mrb[0].mxu0
  %v4328 = vadd.f32 %v4231, %v4327
  %v4329 = vpop.f32.mrb[0].mxu0
  %4330 = vmatprep.mubr.bf16.mxu0 %v3064
  %4331 = vmatmul.mubr.bf16.gmra.mrb[0].mxu0 %v3063
  %v4332 = vpop.f32.mrb[0].mxu0
  %v4333 = vadd.f32 %v4236, %v4332
  %v4334 = vpop.f32.mrb[0].mxu0
  %v4335 = vpop.f32.mrb[0].mxu0
  %v4336 = vadd.f32 %v4239, %v4335
  %v4337 = vpop.f32.mrb[0].mxu0
  %4338 = vdwg.mxu0
  %4339 = vmatprep.subr.bf16.mxu0 0
  %4340 = vmatpush1.bf16.msra.mxu0 %v1508
  %4341 = vmatprep.subr.bf16.mxu0 0
  %4342 = vmatpush1.bf16.msra.mxu0 %v1509
  %4343 = vmatprep.subr.bf16.mxu0 0
  %4344 = vmatpush1.bf16.msra.mxu0 %v1510
  %4345 = vmatprep.subr.bf16.mxu0 0
  %4346 = vmatpush1.bf16.msra.mxu0 %v1511
  %4347 = vmatprep.subr.bf16.mxu0 0
  %4348 = vmatpush1.bf16.msra.mxu0 %v1512
  %4349 = vmatprep.subr.bf16.mxu0 0
  %4350 = vmatpush1.bf16.msra.mxu0 %v1513
  %4351 = vmatprep.subr.bf16.mxu0 0
  %4352 = vmatpush1.bf16.msra.mxu0 %v1514
  %4353 = vmatprep.subr.bf16.mxu0 0
  %4354 = vmatpush1.bf16.msra.mxu0 %v1515
  %4355 = vmatprep.subr.bf16.mxu0 0
  %4356 = vmatpush1.bf16.msra.mxu0 %v1516
  %4357 = vmatprep.subr.bf16.mxu0 0
  %4358 = vmatpush1.bf16.msra.mxu0 %v1517
  %4359 = vmatprep.subr.bf16.mxu0 0
  %4360 = vmatpush1.bf16.msra.mxu0 %v1518
  %4361 = vmatprep.subr.bf16.mxu0 0
  %4362 = vmatpush1.bf16.msra.mxu0 %v1519
  %4363 = vmatprep.subr.bf16.mxu0 0
  %4364 = vmatpush1.bf16.msra.mxu0 %v1520
  %4365 = vmatprep.subr.bf16.mxu0 0
  %4366 = vmatpush1.bf16.msra.mxu0 %v1521
  %4367 = vmatprep.subr.bf16.mxu0 0
  %4368 = vmatpush1.bf16.msra.mxu0 %v1522
  %4369 = vmatprep.subr.bf16.mxu0 0
  %4370 = vmatpush1.bf16.msra.mxu0 %v1523
  %4371 = vmatprep.mubr.bf16.mxu0 %v2814
  %4372 = vmatmul.mubr.bf16.gmra.mrb[0].mxu0 %v2813
  %v4373 = vpop.f32.mrb[0].mxu0
  %v4374 = vadd.f32 %v4277, %v4373
  %v4375 = vpop.f32.mrb[0].mxu0
  %v4376 = vpop.f32.mrb[0].mxu0
  %v4377 = vadd.f32 %v4280, %v4376
  %v4378 = vpop.f32.mrb[0].mxu0
  %4379 = vmatprep.mubr.bf16.mxu0 %v2850
  %4380 = vmatmul.mubr.bf16.gmra.mrb[0].mxu0 %v2849
  %v4381 = vpop.f32.mrb[0].mxu0
  %v4382 = vadd.f32 %v4285, %v4381
  %v4383 = vpop.f32.mrb[0].mxu0
  %v4384 = vpop.f32.mrb[0].mxu0
  %v4385 = vadd.f32 %v4288, %v4384
  %v4386 = vpop.f32.mrb[0].mxu0
  %4387 = vmatprep.mubr.bf16.mxu0 %v2886
  %4388 = vmatmul.mubr.bf16.gmra.mrb[0].mxu0 %v2885
  %v4389 = vpop.f32.mrb[0].mxu0
  %v4390 = vadd.f32 %v4293, %v4389
  %v4391 = vpop.f32.mrb[0].mxu0
  %v4392 = vpop.f32.mrb[0].mxu0
  %v4393 = vadd.f32 %v4296, %v4392
  %v4394 = vpop.f32.mrb[0].mxu0
  %4395 = vmatprep.mubr.bf16.mxu0 %v2922
  %4396 = vmatmul.mubr.bf16.gmra.mrb[0].mxu0 %v2921
  %v4397 = vpop.f32.mrb[0].mxu0
  %v4398 = vadd.f32 %v4301, %v4397
  %v4399 = vpop.f32.mrb[0].mxu0
  %v4400 = vpop.f32.mrb[0].mxu0
  %v4401 = vadd.f32 %v4304, %v4400
  %v4402 = vpop.f32.mrb[0].mxu0
  %4403 = vmatprep.mubr.bf16.mxu0 %v2958
  %4404 = vmatmul.mubr.bf16.gmra.mrb[0].mxu0 %v2957
  %v4405 = vpop.f32.mrb[0].mxu0
  %v4406 = vadd.f32 %v4309, %v4405
  %v4407 = vpop.f32.mrb[0].mxu0
  %v4408 = vpop.f32.mrb[0].mxu0
  %v4409 = vadd.f32 %v4312, %v4408
  %v4410 = vpop.f32.mrb[0].mxu0
  %4411 = vmatprep.mubr.bf16.mxu0 %v2994
  %4412 = vmatmul.mubr.bf16.gmra.mrb[0].mxu0 %v2993
  %v4413 = vpop.f32.mrb[0].mxu0
  %v4414 = vadd.f32 %v4317, %v4413
  %v4415 = vpop.f32.mrb[0].mxu0
  %v4416 = vpop.f32.mrb[0].mxu0
  %v4417 = vadd.f32 %v4320, %v4416
  %v4418 = vpop.f32.mrb[0].mxu0
  %4419 = vmatprep.mubr.bf16.mxu0 %v3030
  %4420 = vmatmul.mubr.bf16.gmra.mrb[0].mxu0 %v3029
  %v4421 = vpop.f32.mrb[0].mxu0
  %v4422 = vadd.f32 %v4325, %v4421
  %v4423 = vpop.f32.mrb[0].mxu0
  %v4424 = vpop.f32.mrb[0].mxu0
  %v4425 = vadd.f32 %v4328, %v4424
  %v4426 = vpop.f32.mrb[0].mxu0
  %4427 = vmatprep.mubr.bf16.mxu0 %v3066
  %4428 = vmatmul.mubr.bf16.gmra.mrb[0].mxu0 %v3065
  %v4429 = vpop.f32.mrb[0].mxu0
  %v4430 = vadd.f32 %v4333, %v4429
  %v4431 = vpop.f32.mrb[0].mxu0
  %v4432 = vpop.f32.mrb[0].mxu0
  %v4433 = vadd.f32 %v4336, %v4432
  %v4434 = vpop.f32.mrb[0].mxu0
  %4435 = vdwg.mxu0
  %4436 = vmatprep.subr.bf16.mxu0 0
  %4437 = vmatpush1.bf16.msra.mxu0 %v1524
  %4438 = vmatprep.subr.bf16.mxu0 0
  %4439 = vmatpush1.bf16.msra.mxu0 %v1525
  %4440 = vmatprep.subr.bf16.mxu0 0
  %4441 = vmatpush1.bf16.msra.mxu0 %v1526
  %4442 = vmatprep.subr.bf16.mxu0 0
  %4443 = vmatpush1.bf16.msra.mxu0 %v1527
  %4444 = vmatprep.subr.bf16.mxu0 0
  %4445 = vmatpush1.bf16.msra.mxu0 %v1528
  %4446 = vmatprep.subr.bf16.mxu0 0
  %4447 = vmatpush1.bf16.msra.mxu0 %v1529
  %4448 = vmatprep.subr.bf16.mxu0 0
  %4449 = vmatpush1.bf16.msra.mxu0 %v1530
  %4450 = vmatprep.subr.bf16.mxu0 0
  %4451 = vmatpush1.bf16.msra.mxu0 %v1531
  %4452 = vmatprep.subr.bf16.mxu0 0
  %4453 = vmatpush1.bf16.msra.mxu0 %v1532
  %4454 = vmatprep.subr.bf16.mxu0 0
  %4455 = vmatpush1.bf16.msra.mxu0 %v1533
  %4456 = vmatprep.subr.bf16.mxu0 0
  %4457 = vmatpush1.bf16.msra.mxu0 %v1534
  %4458 = vmatprep.subr.bf16.mxu0 0
  %4459 = vmatpush1.bf16.msra.mxu0 %v1535
  %4460 = vmatprep.subr.bf16.mxu0 0
  %4461 = vmatpush1.bf16.msra.mxu0 %v1536
  %4462 = vmatprep.subr.bf16.mxu0 0
  %4463 = vmatpush1.bf16.msra.mxu0 %v1537
  %4464 = vmatprep.subr.bf16.mxu0 0
  %4465 = vmatpush1.bf16.msra.mxu0 %v1538
  %4466 = vmatprep.subr.bf16.mxu0 0
  %4467 = vmatpush1.bf16.msra.mxu0 %v1539
  %4468 = vmatprep.mubr.bf16.mxu0 %v2816
  %4469 = vmatmul.mubr.bf16.gmra.mrb[0].mxu0 %v2815
  %v4470 = vpop.f32.mrb[0].mxu0
  %v4471 = vadd.f32 %v4374, %v4470
  %v4472 = vpop.f32.mrb[0].mxu0
  %v4473 = vpop.f32.mrb[0].mxu0
  %v4474 = vadd.f32 %v4377, %v4473
  %v4475 = vpop.f32.mrb[0].mxu0
  %4476 = vmatprep.mubr.bf16.mxu0 %v2852
  %4477 = vmatmul.mubr.bf16.gmra.mrb[0].mxu0 %v2851
  %v4478 = vpop.f32.mrb[0].mxu0
  %v4479 = vadd.f32 %v4382, %v4478
  %v4480 = vpop.f32.mrb[0].mxu0
  %v4481 = vpop.f32.mrb[0].mxu0
  %v4482 = vadd.f32 %v4385, %v4481
  %v4483 = vpop.f32.mrb[0].mxu0
  %4484 = vmatprep.mubr.bf16.mxu0 %v2888
  %4485 = vmatmul.mubr.bf16.gmra.mrb[0].mxu0 %v2887
  %v4486 = vpop.f32.mrb[0].mxu0
  %v4487 = vadd.f32 %v4390, %v4486
  %v4488 = vpop.f32.mrb[0].mxu0
  %v4489 = vpop.f32.mrb[0].mxu0
  %v4490 = vadd.f32 %v4393, %v4489
  %v4491 = vpop.f32.mrb[0].mxu0
  %4492 = vmatprep.mubr.bf16.mxu0 %v2924
  %4493 = vmatmul.mubr.bf16.gmra.mrb[0].mxu0 %v2923
  %v4494 = vpop.f32.mrb[0].mxu0
  %v4495 = vadd.f32 %v4398, %v4494
  %v4496 = vpop.f32.mrb[0].mxu0
  %v4497 = vpop.f32.mrb[0].mxu0
  %v4498 = vadd.f32 %v4401, %v4497
  %v4499 = vpop.f32.mrb[0].mxu0
  %4500 = vmatprep.mubr.bf16.mxu0 %v2960
  %4501 = vmatmul.mubr.bf16.gmra.mrb[0].mxu0 %v2959
  %v4502 = vpop.f32.mrb[0].mxu0
  %v4503 = vadd.f32 %v4406, %v4502
  %v4504 = vpop.f32.mrb[0].mxu0
  %v4505 = vpop.f32.mrb[0].mxu0
  %v4506 = vadd.f32 %v4409, %v4505
  %v4507 = vpop.f32.mrb[0].mxu0
  %4508 = vmatprep.mubr.bf16.mxu0 %v2996
  %4509 = vmatmul.mubr.bf16.gmra.mrb[0].mxu0 %v2995
  %v4510 = vpop.f32.mrb[0].mxu0
  %v4511 = vadd.f32 %v4414, %v4510
  %v4512 = vpop.f32.mrb[0].mxu0
  %v4513 = vpop.f32.mrb[0].mxu0
  %v4514 = vadd.f32 %v4417, %v4513
  %v4515 = vpop.f32.mrb[0].mxu0
  %4516 = vmatprep.mubr.bf16.mxu0 %v3032
  %4517 = vmatmul.mubr.bf16.gmra.mrb[0].mxu0 %v3031
  %v4518 = vpop.f32.mrb[0].mxu0
  %v4519 = vadd.f32 %v4422, %v4518
  %v4520 = vpop.f32.mrb[0].mxu0
  %v4521 = vpop.f32.mrb[0].mxu0
  %v4522 = vadd.f32 %v4425, %v4521
  %v4523 = vpop.f32.mrb[0].mxu0
  %4524 = vmatprep.mubr.bf16.mxu0 %v3068
  %4525 = vmatmul.mubr.bf16.gmra.mrb[0].mxu0 %v3067
  %v4526 = vpop.f32.mrb[0].mxu0
  %v4527 = vadd.f32 %v4430, %v4526
  %v4528 = vpop.f32.mrb[0].mxu0
  %v4529 = vpop.f32.mrb[0].mxu0
  %v4530 = vadd.f32 %v4433, %v4529
  %v4531 = vpop.f32.mrb[0].mxu0
  %4532 = vdwg.mxu0
  %4533 = vmatprep.subr.bf16.mxu0 0
  %4534 = vmatpush1.bf16.msra.mxu0 %v1540
  %4535 = vmatprep.subr.bf16.mxu0 0
  %4536 = vmatpush1.bf16.msra.mxu0 %v1541
  %4537 = vmatprep.subr.bf16.mxu0 0
  %4538 = vmatpush1.bf16.msra.mxu0 %v1542
  %4539 = vmatprep.subr.bf16.mxu0 0
  %4540 = vmatpush1.bf16.msra.mxu0 %v1543
  %4541 = vmatprep.subr.bf16.mxu0 0
  %4542 = vmatpush1.bf16.msra.mxu0 %v1544
  %4543 = vmatprep.subr.bf16.mxu0 0
  %4544 = vmatpush1.bf16.msra.mxu0 %v1545
  %4545 = vmatprep.subr.bf16.mxu0 0
  %4546 = vmatpush1.bf16.msra.mxu0 %v1546
  %4547 = vmatprep.subr.bf16.mxu0 0
  %4548 = vmatpush1.bf16.msra.mxu0 %v1547
  %4549 = vmatprep.subr.bf16.mxu0 0
  %4550 = vmatpush1.bf16.msra.mxu0 %v1548
  %4551 = vmatprep.subr.bf16.mxu0 0
  %4552 = vmatpush1.bf16.msra.mxu0 %v1549
  %4553 = vmatprep.subr.bf16.mxu0 0
  %4554 = vmatpush1.bf16.msra.mxu0 %v1550
  %4555 = vmatprep.subr.bf16.mxu0 0
  %4556 = vmatpush1.bf16.msra.mxu0 %v1551
  %4557 = vmatprep.subr.bf16.mxu0 0
  %4558 = vmatpush1.bf16.msra.mxu0 %v1552
  %4559 = vmatprep.subr.bf16.mxu0 0
  %4560 = vmatpush1.bf16.msra.mxu0 %v1553
  %4561 = vmatprep.subr.bf16.mxu0 0
  %4562 = vmatpush1.bf16.msra.mxu0 %v1554
  %4563 = vmatprep.subr.bf16.mxu0 0
  %4564 = vmatpush1.bf16.msra.mxu0 %v1555
  %4565 = vmatprep.mubr.bf16.mxu0 %v2818
  %4566 = vmatmul.mubr.bf16.gmra.mrb[0].mxu0 %v2817
  %v4567 = vpop.f32.mrb[0].mxu0
  %v4568 = vadd.f32 %v4471, %v4567
  %v4569 = vpop.f32.mrb[0].mxu0
  %v4570 = vpop.f32.mrb[0].mxu0
  %v4571 = vadd.f32 %v4474, %v4570
  %v4572 = vpop.f32.mrb[0].mxu0
  %4573 = vmatprep.mubr.bf16.mxu0 %v2854
  %4574 = vmatmul.mubr.bf16.gmra.mrb[0].mxu0 %v2853
  %v4575 = vpop.f32.mrb[0].mxu0
  %v4576 = vadd.f32 %v4479, %v4575
  %v4577 = vpop.f32.mrb[0].mxu0
  %v4578 = vpop.f32.mrb[0].mxu0
  %v4579 = vadd.f32 %v4482, %v4578
  %v4580 = vpop.f32.mrb[0].mxu0
  %4581 = vmatprep.mubr.bf16.mxu0 %v2890
  %4582 = vmatmul.mubr.bf16.gmra.mrb[0].mxu0 %v2889
  %v4583 = vpop.f32.mrb[0].mxu0
  %v4584 = vadd.f32 %v4487, %v4583
  %v4585 = vpop.f32.mrb[0].mxu0
  %v4586 = vpop.f32.mrb[0].mxu0
  %v4587 = vadd.f32 %v4490, %v4586
  %v4588 = vpop.f32.mrb[0].mxu0
  %4589 = vmatprep.mubr.bf16.mxu0 %v2926
  %4590 = vmatmul.mubr.bf16.gmra.mrb[0].mxu0 %v2925
  %v4591 = vpop.f32.mrb[0].mxu0
  %v4592 = vadd.f32 %v4495, %v4591
  %v4593 = vpop.f32.mrb[0].mxu0
  %v4594 = vpop.f32.mrb[0].mxu0
  %v4595 = vadd.f32 %v4498, %v4594
  %v4596 = vpop.f32.mrb[0].mxu0
  %4597 = vmatprep.mubr.bf16.mxu0 %v2962
  %4598 = vmatmul.mubr.bf16.gmra.mrb[0].mxu0 %v2961
  %v4599 = vpop.f32.mrb[0].mxu0
  %v4600 = vadd.f32 %v4503, %v4599
  %v4601 = vpop.f32.mrb[0].mxu0
  %v4602 = vpop.f32.mrb[0].mxu0
  %v4603 = vadd.f32 %v4506, %v4602
  %v4604 = vpop.f32.mrb[0].mxu0
  %4605 = vmatprep.mubr.bf16.mxu0 %v2998
  %4606 = vmatmul.mubr.bf16.gmra.mrb[0].mxu0 %v2997
  %v4607 = vpop.f32.mrb[0].mxu0
  %v4608 = vadd.f32 %v4511, %v4607
  %v4609 = vpop.f32.mrb[0].mxu0
  %v4610 = vpop.f32.mrb[0].mxu0
  %v4611 = vadd.f32 %v4514, %v4610
  %v4612 = vpop.f32.mrb[0].mxu0
  %4613 = vmatprep.mubr.bf16.mxu0 %v3034
  %4614 = vmatmul.mubr.bf16.gmra.mrb[0].mxu0 %v3033
  %v4615 = vpop.f32.mrb[0].mxu0
  %v4616 = vadd.f32 %v4519, %v4615
  %v4617 = vpop.f32.mrb[0].mxu0
  %v4618 = vpop.f32.mrb[0].mxu0
  %v4619 = vadd.f32 %v4522, %v4618
  %v4620 = vpop.f32.mrb[0].mxu0
  %4621 = vmatprep.mubr.bf16.mxu0 %v3070
  %4622 = vmatmul.mubr.bf16.gmra.mrb[0].mxu0 %v3069
  %v4623 = vpop.f32.mrb[0].mxu0
  %v4624 = vadd.f32 %v4527, %v4623
  %v4625 = vpop.f32.mrb[0].mxu0
  %v4626 = vpop.f32.mrb[0].mxu0
  %v4627 = vadd.f32 %v4530, %v4626
  %v4628 = vpop.f32.mrb[0].mxu0
  %4629 = vdwg.mxu0
  %4630 = vmatprep.subr.bf16.mxu0 0
  %4631 = vmatpush1.bf16.msra.mxu0 %v1556
  %4632 = vmatprep.subr.bf16.mxu0 0
  %4633 = vmatpush1.bf16.msra.mxu0 %v1557
  %4634 = vmatprep.subr.bf16.mxu0 0
  %4635 = vmatpush1.bf16.msra.mxu0 %v1558
  %4636 = vmatprep.subr.bf16.mxu0 0
  %4637 = vmatpush1.bf16.msra.mxu0 %v1559
  %4638 = vmatprep.subr.bf16.mxu0 0
  %4639 = vmatpush1.bf16.msra.mxu0 %v1560
  %4640 = vmatprep.subr.bf16.mxu0 0
  %4641 = vmatpush1.bf16.msra.mxu0 %v1561
  %4642 = vmatprep.subr.bf16.mxu0 0
  %4643 = vmatpush1.bf16.msra.mxu0 %v1562
  %4644 = vmatprep.subr.bf16.mxu0 0
  %4645 = vmatpush1.bf16.msra.mxu0 %v1563
  %4646 = vmatprep.subr.bf16.mxu0 0
  %4647 = vmatpush1.bf16.msra.mxu0 %v1564
  %4648 = vmatprep.subr.bf16.mxu0 0
  %4649 = vmatpush1.bf16.msra.mxu0 %v1565
  %4650 = vmatprep.subr.bf16.mxu0 0
  %4651 = vmatpush1.bf16.msra.mxu0 %v1566
  %4652 = vmatprep.subr.bf16.mxu0 0
  %4653 = vmatpush1.bf16.msra.mxu0 %v1567
  %4654 = vmatprep.subr.bf16.mxu0 0
  %4655 = vmatpush1.bf16.msra.mxu0 %v1568
  %4656 = vmatprep.subr.bf16.mxu0 0
  %4657 = vmatpush1.bf16.msra.mxu0 %v1569
  %4658 = vmatprep.subr.bf16.mxu0 0
  %4659 = vmatpush1.bf16.msra.mxu0 %v1570
  %4660 = vmatprep.subr.bf16.mxu0 0
  %4661 = vmatpush1.bf16.msra.mxu0 %v1571
  %4662 = vmatprep.mubr.bf16.mxu0 %v2820
  %4663 = vmatmul.mubr.bf16.gmra.mrb[0].mxu0 %v2819
  %v4664 = vpop.f32.mrb[0].mxu0
  %v4665 = vadd.f32 %v4568, %v4664
  %v4666 = vpop.f32.mrb[0].mxu0
  %v4667 = vpop.f32.mrb[0].mxu0
  %v4668 = vadd.f32 %v4571, %v4667
  %v4669 = vpop.f32.mrb[0].mxu0
  %4670 = vmatprep.mubr.bf16.mxu0 %v2856
  %4671 = vmatmul.mubr.bf16.gmra.mrb[0].mxu0 %v2855
  %v4672 = vpop.f32.mrb[0].mxu0
  %v4673 = vadd.f32 %v4576, %v4672
  %v4674 = vpop.f32.mrb[0].mxu0
  %v4675 = vpop.f32.mrb[0].mxu0
  %v4676 = vadd.f32 %v4579, %v4675
  %v4677 = vpop.f32.mrb[0].mxu0
  %4678 = vmatprep.mubr.bf16.mxu0 %v2892
  %4679 = vmatmul.mubr.bf16.gmra.mrb[0].mxu0 %v2891
  %v4680 = vpop.f32.mrb[0].mxu0
  %v4681 = vadd.f32 %v4584, %v4680
  %v4682 = vpop.f32.mrb[0].mxu0
  %v4683 = vpop.f32.mrb[0].mxu0
  %v4684 = vadd.f32 %v4587, %v4683
  %v4685 = vpop.f32.mrb[0].mxu0
  %4686 = vmatprep.mubr.bf16.mxu0 %v2928
  %4687 = vmatmul.mubr.bf16.gmra.mrb[0].mxu0 %v2927
  %v4688 = vpop.f32.mrb[0].mxu0
  %v4689 = vadd.f32 %v4592, %v4688
  %v4690 = vpop.f32.mrb[0].mxu0
  %v4691 = vpop.f32.mrb[0].mxu0
  %v4692 = vadd.f32 %v4595, %v4691
  %v4693 = vpop.f32.mrb[0].mxu0
  %4694 = vmatprep.mubr.bf16.mxu0 %v2964
  %4695 = vmatmul.mubr.bf16.gmra.mrb[0].mxu0 %v2963
  %v4696 = vpop.f32.mrb[0].mxu0
  %v4697 = vadd.f32 %v4600, %v4696
  %v4698 = vpop.f32.mrb[0].mxu0
  %v4699 = vpop.f32.mrb[0].mxu0
  %v4700 = vadd.f32 %v4603, %v4699
  %v4701 = vpop.f32.mrb[0].mxu0
  %4702 = vmatprep.mubr.bf16.mxu0 %v3000
  %4703 = vmatmul.mubr.bf16.gmra.mrb[0].mxu0 %v2999
  %v4704 = vpop.f32.mrb[0].mxu0
  %v4705 = vadd.f32 %v4608, %v4704
  %v4706 = vpop.f32.mrb[0].mxu0
  %v4707 = vpop.f32.mrb[0].mxu0
  %v4708 = vadd.f32 %v4611, %v4707
  %v4709 = vpop.f32.mrb[0].mxu0
  %4710 = vmatprep.mubr.bf16.mxu0 %v3036
  %4711 = vmatmul.mubr.bf16.gmra.mrb[0].mxu0 %v3035
  %v4712 = vpop.f32.mrb[0].mxu0
  %v4713 = vadd.f32 %v4616, %v4712
  %v4714 = vpop.f32.mrb[0].mxu0
  %v4715 = vpop.f32.mrb[0].mxu0
  %v4716 = vadd.f32 %v4619, %v4715
  %v4717 = vpop.f32.mrb[0].mxu0
  %4718 = vmatprep.mubr.bf16.mxu0 %v3072
  %4719 = vmatmul.mubr.bf16.gmra.mrb[0].mxu0 %v3071
  %v4720 = vpop.f32.mrb[0].mxu0
  %v4721 = vadd.f32 %v4624, %v4720
  %v4722 = vpop.f32.mrb[0].mxu0
  %v4723 = vpop.f32.mrb[0].mxu0
  %v4724 = vadd.f32 %v4627, %v4723
  %v4725 = vpop.f32.mrb[0].mxu0
  %4726 = vdwg.mxu0
  %4727 = vmatprep.subr.bf16.mxu0 0
  %4728 = vmatpush1.bf16.msra.mxu0 %v1572
  %4729 = vmatprep.subr.bf16.mxu0 0
  %4730 = vmatpush1.bf16.msra.mxu0 %v1573
  %4731 = vmatprep.subr.bf16.mxu0 0
  %4732 = vmatpush1.bf16.msra.mxu0 %v1574
  %4733 = vmatprep.subr.bf16.mxu0 0
  %4734 = vmatpush1.bf16.msra.mxu0 %v1575
  %4735 = vmatprep.subr.bf16.mxu0 0
  %4736 = vmatpush1.bf16.msra.mxu0 %v1576
  %4737 = vmatprep.subr.bf16.mxu0 0
  %4738 = vmatpush1.bf16.msra.mxu0 %v1577
  %4739 = vmatprep.subr.bf16.mxu0 0
  %4740 = vmatpush1.bf16.msra.mxu0 %v1578
  %4741 = vmatprep.subr.bf16.mxu0 0
  %4742 = vmatpush1.bf16.msra.mxu0 %v1579
  %4743 = vmatprep.subr.bf16.mxu0 0
  %4744 = vmatpush1.bf16.msra.mxu0 %v1580
  %4745 = vmatprep.subr.bf16.mxu0 0
  %4746 = vmatpush1.bf16.msra.mxu0 %v1581
  %4747 = vmatprep.subr.bf16.mxu0 0
  %4748 = vmatpush1.bf16.msra.mxu0 %v1582
  %4749 = vmatprep.subr.bf16.mxu0 0
  %4750 = vmatpush1.bf16.msra.mxu0 %v1583
  %4751 = vmatprep.subr.bf16.mxu0 0
  %4752 = vmatpush1.bf16.msra.mxu0 %v1584
  %4753 = vmatprep.subr.bf16.mxu0 0
  %4754 = vmatpush1.bf16.msra.mxu0 %v1585
  %4755 = vmatprep.subr.bf16.mxu0 0
  %4756 = vmatpush1.bf16.msra.mxu0 %v1586
  %4757 = vmatprep.subr.bf16.mxu0 0
  %4758 = vmatpush1.bf16.msra.mxu0 %v1587
  %4759 = vmatprep.mubr.bf16.mxu0 %v2822
  %4760 = vmatmul.mubr.bf16.gmra.mrb[0].mxu0 %v2821
  %v4761 = vpop.f32.mrb[0].mxu0
  %v4762 = vadd.f32 %v4665, %v4761
  %v4763 = vpop.f32.mrb[0].mxu0
  %v4764 = vpop.f32.mrb[0].mxu0
  %v4765 = vadd.f32 %v4668, %v4764
  %v4766 = vpop.f32.mrb[0].mxu0
  %4767 = vmatprep.mubr.bf16.mxu0 %v2858
  %4768 = vmatmul.mubr.bf16.gmra.mrb[0].mxu0 %v2857
  %v4769 = vpop.f32.mrb[0].mxu0
  %v4770 = vadd.f32 %v4673, %v4769
  %v4771 = vpop.f32.mrb[0].mxu0
  %v4772 = vpop.f32.mrb[0].mxu0
  %v4773 = vadd.f32 %v4676, %v4772
  %v4774 = vpop.f32.mrb[0].mxu0
  %4775 = vmatprep.mubr.bf16.mxu0 %v2894
  %4776 = vmatmul.mubr.bf16.gmra.mrb[0].mxu0 %v2893
  %v4777 = vpop.f32.mrb[0].mxu0
  %v4778 = vadd.f32 %v4681, %v4777
  %v4779 = vpop.f32.mrb[0].mxu0
  %v4780 = vpop.f32.mrb[0].mxu0
  %v4781 = vadd.f32 %v4684, %v4780
  %v4782 = vpop.f32.mrb[0].mxu0
  %4783 = vmatprep.mubr.bf16.mxu0 %v2930
  %4784 = vmatmul.mubr.bf16.gmra.mrb[0].mxu0 %v2929
  %v4785 = vpop.f32.mrb[0].mxu0
  %v4786 = vadd.f32 %v4689, %v4785
  %v4787 = vpop.f32.mrb[0].mxu0
  %v4788 = vpop.f32.mrb[0].mxu0
  %v4789 = vadd.f32 %v4692, %v4788
  %v4790 = vpop.f32.mrb[0].mxu0
  %4791 = vmatprep.mubr.bf16.mxu0 %v2966
  %4792 = vmatmul.mubr.bf16.gmra.mrb[0].mxu0 %v2965
  %v4793 = vpop.f32.mrb[0].mxu0
  %v4794 = vadd.f32 %v4697, %v4793
  %v4795 = vpop.f32.mrb[0].mxu0
  %v4796 = vpop.f32.mrb[0].mxu0
  %v4797 = vadd.f32 %v4700, %v4796
  %v4798 = vpop.f32.mrb[0].mxu0
  %4799 = vmatprep.mubr.bf16.mxu0 %v3002
  %4800 = vmatmul.mubr.bf16.gmra.mrb[0].mxu0 %v3001
  %v4801 = vpop.f32.mrb[0].mxu0
  %v4802 = vadd.f32 %v4705, %v4801
  %v4803 = vpop.f32.mrb[0].mxu0
  %v4804 = vpop.f32.mrb[0].mxu0
  %v4805 = vadd.f32 %v4708, %v4804
  %v4806 = vpop.f32.mrb[0].mxu0
  %4807 = vmatprep.mubr.bf16.mxu0 %v3038
  %4808 = vmatmul.mubr.bf16.gmra.mrb[0].mxu0 %v3037
  %v4809 = vpop.f32.mrb[0].mxu0
  %v4810 = vadd.f32 %v4713, %v4809
  %v4811 = vpop.f32.mrb[0].mxu0
  %v4812 = vpop.f32.mrb[0].mxu0
  %v4813 = vadd.f32 %v4716, %v4812
  %v4814 = vpop.f32.mrb[0].mxu0
  %4815 = vmatprep.mubr.bf16.mxu0 %v3074
  %4816 = vmatmul.mubr.bf16.gmra.mrb[0].mxu0 %v3073
  %v4817 = vpop.f32.mrb[0].mxu0
  %v4818 = vadd.f32 %v4721, %v4817
  %v4819 = vpop.f32.mrb[0].mxu0
  %v4820 = vpop.f32.mrb[0].mxu0
  %v4821 = vadd.f32 %v4724, %v4820
  %v4822 = vpop.f32.mrb[0].mxu0
  %4823 = vdwg.mxu0
  %4824 = vmatprep.subr.bf16.mxu0 0
  %4825 = vmatpush1.bf16.msra.mxu0 %v1588
  %4826 = vmatprep.subr.bf16.mxu0 0
  %4827 = vmatpush1.bf16.msra.mxu0 %v1589
  %4828 = vmatprep.subr.bf16.mxu0 0
  %4829 = vmatpush1.bf16.msra.mxu0 %v1590
  %4830 = vmatprep.subr.bf16.mxu0 0
  %4831 = vmatpush1.bf16.msra.mxu0 %v1591
  %4832 = vmatprep.subr.bf16.mxu0 0
  %4833 = vmatpush1.bf16.msra.mxu0 %v1592
  %4834 = vmatprep.subr.bf16.mxu0 0
  %4835 = vmatpush1.bf16.msra.mxu0 %v1593
  %4836 = vmatprep.subr.bf16.mxu0 0
  %4837 = vmatpush1.bf16.msra.mxu0 %v1594
  %4838 = vmatprep.subr.bf16.mxu0 0
  %4839 = vmatpush1.bf16.msra.mxu0 %v1595
  %4840 = vmatprep.subr.bf16.mxu0 0
  %4841 = vmatpush1.bf16.msra.mxu0 %v1596
  %4842 = vmatprep.subr.bf16.mxu0 0
  %4843 = vmatpush1.bf16.msra.mxu0 %v1597
  %4844 = vmatprep.subr.bf16.mxu0 0
  %4845 = vmatpush1.bf16.msra.mxu0 %v1598
  %4846 = vmatprep.subr.bf16.mxu0 0
  %4847 = vmatpush1.bf16.msra.mxu0 %v1599
  %4848 = vmatprep.subr.bf16.mxu0 0
  %4849 = vmatpush1.bf16.msra.mxu0 %v1600
  %4850 = vmatprep.subr.bf16.mxu0 0
  %4851 = vmatpush1.bf16.msra.mxu0 %v1601
  %4852 = vmatprep.subr.bf16.mxu0 0
  %4853 = vmatpush1.bf16.msra.mxu0 %v1602
  %4854 = vmatprep.subr.bf16.mxu0 0
  %4855 = vmatpush1.bf16.msra.mxu0 %v1603
  %4856 = vmatprep.mubr.bf16.mxu0 %v2824
  %4857 = vmatmul.mubr.bf16.gmra.mrb[0].mxu0 %v2823
  %v4858 = vpop.f32.mrb[0].mxu0
  %v4859 = vadd.f32 %v4762, %v4858
  %v4860 = vpop.f32.mrb[0].mxu0
  %v4861 = vpop.f32.mrb[0].mxu0
  %v4862 = vadd.f32 %v4765, %v4861
  %v4863 = vpop.f32.mrb[0].mxu0
  %4864 = vmatprep.mubr.bf16.mxu0 %v2860
  %4865 = vmatmul.mubr.bf16.gmra.mrb[0].mxu0 %v2859
  %v4866 = vpop.f32.mrb[0].mxu0
  %v4867 = vadd.f32 %v4770, %v4866
  %v4868 = vpop.f32.mrb[0].mxu0
  %v4869 = vpop.f32.mrb[0].mxu0
  %v4870 = vadd.f32 %v4773, %v4869
  %v4871 = vpop.f32.mrb[0].mxu0
  %4872 = vmatprep.mubr.bf16.mxu0 %v2896
  %4873 = vmatmul.mubr.bf16.gmra.mrb[0].mxu0 %v2895
  %v4874 = vpop.f32.mrb[0].mxu0
  %v4875 = vadd.f32 %v4778, %v4874
  %v4876 = vpop.f32.mrb[0].mxu0
  %v4877 = vpop.f32.mrb[0].mxu0
  %v4878 = vadd.f32 %v4781, %v4877
  %v4879 = vpop.f32.mrb[0].mxu0
  %4880 = vmatprep.mubr.bf16.mxu0 %v2932
  %4881 = vmatmul.mubr.bf16.gmra.mrb[0].mxu0 %v2931
  %v4882 = vpop.f32.mrb[0].mxu0
  %v4883 = vadd.f32 %v4786, %v4882
  %v4884 = vpop.f32.mrb[0].mxu0
  %v4885 = vpop.f32.mrb[0].mxu0
  %v4886 = vadd.f32 %v4789, %v4885
  %v4887 = vpop.f32.mrb[0].mxu0
  %4888 = vmatprep.mubr.bf16.mxu0 %v2968
  %4889 = vmatmul.mubr.bf16.gmra.mrb[0].mxu0 %v2967
  %v4890 = vpop.f32.mrb[0].mxu0
  %v4891 = vadd.f32 %v4794, %v4890
  %v4892 = vpop.f32.mrb[0].mxu0
  %v4893 = vpop.f32.mrb[0].mxu0
  %v4894 = vadd.f32 %v4797, %v4893
  %v4895 = vpop.f32.mrb[0].mxu0
  %4896 = vmatprep.mubr.bf16.mxu0 %v3004
  %4897 = vmatmul.mubr.bf16.gmra.mrb[0].mxu0 %v3003
  %v4898 = vpop.f32.mrb[0].mxu0
  %v4899 = vadd.f32 %v4802, %v4898
  %v4900 = vpop.f32.mrb[0].mxu0
  %v4901 = vpop.f32.mrb[0].mxu0
  %v4902 = vadd.f32 %v4805, %v4901
  %v4903 = vpop.f32.mrb[0].mxu0
  %4904 = vmatprep.mubr.bf16.mxu0 %v3040
  %4905 = vmatmul.mubr.bf16.gmra.mrb[0].mxu0 %v3039
  %v4906 = vpop.f32.mrb[0].mxu0
  %v4907 = vadd.f32 %v4810, %v4906
  %v4908 = vpop.f32.mrb[0].mxu0
  %v4909 = vpop.f32.mrb[0].mxu0
  %v4910 = vadd.f32 %v4813, %v4909
  %v4911 = vpop.f32.mrb[0].mxu0
  %4912 = vmatprep.mubr.bf16.mxu0 %v3076
  %4913 = vmatmul.mubr.bf16.gmra.mrb[0].mxu0 %v3075
  %v4914 = vpop.f32.mrb[0].mxu0
  %v4915 = vadd.f32 %v4818, %v4914
  %v4916 = vpop.f32.mrb[0].mxu0
  %v4917 = vpop.f32.mrb[0].mxu0
  %v4918 = vadd.f32 %v4821, %v4917
  %v4919 = vpop.f32.mrb[0].mxu0
  %4920 = vdwg.mxu0
  %4921 = vmatprep.subr.bf16.mxu0 0
  %4922 = vmatpush1.bf16.msra.mxu0 %v1604
  %4923 = vmatprep.subr.bf16.mxu0 0
  %4924 = vmatpush1.bf16.msra.mxu0 %v1605
  %4925 = vmatprep.subr.bf16.mxu0 0
  %4926 = vmatpush1.bf16.msra.mxu0 %v1606
  %4927 = vmatprep.subr.bf16.mxu0 0
  %4928 = vmatpush1.bf16.msra.mxu0 %v1607
  %4929 = vmatprep.subr.bf16.mxu0 0
  %4930 = vmatpush1.bf16.msra.mxu0 %v1608
  %4931 = vmatprep.subr.bf16.mxu0 0
  %4932 = vmatpush1.bf16.msra.mxu0 %v1609
  %4933 = vmatprep.subr.bf16.mxu0 0
  %4934 = vmatpush1.bf16.msra.mxu0 %v1610
  %4935 = vmatprep.subr.bf16.mxu0 0
  %4936 = vmatpush1.bf16.msra.mxu0 %v1611
  %4937 = vmatprep.subr.bf16.mxu0 0
  %4938 = vmatpush1.bf16.msra.mxu0 %v1612
  %4939 = vmatprep.subr.bf16.mxu0 0
  %4940 = vmatpush1.bf16.msra.mxu0 %v1613
  %4941 = vmatprep.subr.bf16.mxu0 0
  %4942 = vmatpush1.bf16.msra.mxu0 %v1614
  %4943 = vmatprep.subr.bf16.mxu0 0
  %4944 = vmatpush1.bf16.msra.mxu0 %v1615
  %4945 = vmatprep.subr.bf16.mxu0 0
  %4946 = vmatpush1.bf16.msra.mxu0 %v1616
  %4947 = vmatprep.subr.bf16.mxu0 0
  %4948 = vmatpush1.bf16.msra.mxu0 %v1617
  %4949 = vmatprep.subr.bf16.mxu0 0
  %4950 = vmatpush1.bf16.msra.mxu0 %v1618
  %4951 = vmatprep.subr.bf16.mxu0 0
  %4952 = vmatpush1.bf16.msra.mxu0 %v1619
  %4953 = vmatprep.mubr.bf16.mxu0 %v2826
  %4954 = vmatmul.mubr.bf16.gmra.mrb[0].mxu0 %v2825
  %v4955 = vpop.f32.mrb[0].mxu0
  %v4956 = vadd.f32 %v4859, %v4955
  %v4957 = vpop.f32.mrb[0].mxu0
  %v4958 = vpop.f32.mrb[0].mxu0
  %v4959 = vadd.f32 %v4862, %v4958
  %v4960 = vpop.f32.mrb[0].mxu0
  %4961 = vmatprep.mubr.bf16.mxu0 %v2862
  %4962 = vmatmul.mubr.bf16.gmra.mrb[0].mxu0 %v2861
  %v4963 = vpop.f32.mrb[0].mxu0
  %v4964 = vadd.f32 %v4867, %v4963
  %v4965 = vpop.f32.mrb[0].mxu0
  %v4966 = vpop.f32.mrb[0].mxu0
  %v4967 = vadd.f32 %v4870, %v4966
  %v4968 = vpop.f32.mrb[0].mxu0
  %4969 = vmatprep.mubr.bf16.mxu0 %v2898
  %4970 = vmatmul.mubr.bf16.gmra.mrb[0].mxu0 %v2897
  %v4971 = vpop.f32.mrb[0].mxu0
  %v4972 = vadd.f32 %v4875, %v4971
  %v4973 = vpop.f32.mrb[0].mxu0
  %v4974 = vpop.f32.mrb[0].mxu0
  %v4975 = vadd.f32 %v4878, %v4974
  %v4976 = vpop.f32.mrb[0].mxu0
  %4977 = vmatprep.mubr.bf16.mxu0 %v2934
  %4978 = vmatmul.mubr.bf16.gmra.mrb[0].mxu0 %v2933
  %v4979 = vpop.f32.mrb[0].mxu0
  %v4980 = vadd.f32 %v4883, %v4979
  %v4981 = vpop.f32.mrb[0].mxu0
  %v4982 = vpop.f32.mrb[0].mxu0
  %v4983 = vadd.f32 %v4886, %v4982
  %v4984 = vpop.f32.mrb[0].mxu0
  %4985 = vmatprep.mubr.bf16.mxu0 %v2970
  %4986 = vmatmul.mubr.bf16.gmra.mrb[0].mxu0 %v2969
  %v4987 = vpop.f32.mrb[0].mxu0
  %v4988 = vadd.f32 %v4891, %v4987
  %v4989 = vpop.f32.mrb[0].mxu0
  %v4990 = vpop.f32.mrb[0].mxu0
  %v4991 = vadd.f32 %v4894, %v4990
  %v4992 = vpop.f32.mrb[0].mxu0
  %4993 = vmatprep.mubr.bf16.mxu0 %v3006
  %4994 = vmatmul.mubr.bf16.gmra.mrb[0].mxu0 %v3005
  %v4995 = vpop.f32.mrb[0].mxu0
  %v4996 = vadd.f32 %v4899, %v4995
  %v4997 = vpop.f32.mrb[0].mxu0
  %v4998 = vpop.f32.mrb[0].mxu0
  %v4999 = vadd.f32 %v4902, %v4998
  %v5000 = vpop.f32.mrb[0].mxu0
  %5001 = vmatprep.mubr.bf16.mxu0 %v3042
  %5002 = vmatmul.mubr.bf16.gmra.mrb[0].mxu0 %v3041
  %v5003 = vpop.f32.mrb[0].mxu0
  %v5004 = vadd.f32 %v4907, %v5003
  %v5005 = vpop.f32.mrb[0].mxu0
  %v5006 = vpop.f32.mrb[0].mxu0
  %v5007 = vadd.f32 %v4910, %v5006
  %v5008 = vpop.f32.mrb[0].mxu0
  %5009 = vmatprep.mubr.bf16.mxu0 %v3078
  %5010 = vmatmul.mubr.bf16.gmra.mrb[0].mxu0 %v3077
  %v5011 = vpop.f32.mrb[0].mxu0
  %v5012 = vadd.f32 %v4915, %v5011
  %v5013 = vpop.f32.mrb[0].mxu0
  %v5014 = vpop.f32.mrb[0].mxu0
  %v5015 = vadd.f32 %v4918, %v5014
  %v5016 = vpop.f32.mrb[0].mxu0
  %5017 = vdwg.mxu0
  %5018 = vmatprep.subr.bf16.mxu0 0
  %5019 = vmatpush1.bf16.msra.mxu0 %v1620
  %5020 = vmatprep.subr.bf16.mxu0 0
  %5021 = vmatpush1.bf16.msra.mxu0 %v1621
  %5022 = vmatprep.subr.bf16.mxu0 0
  %5023 = vmatpush1.bf16.msra.mxu0 %v1622
  %5024 = vmatprep.subr.bf16.mxu0 0
  %5025 = vmatpush1.bf16.msra.mxu0 %v1623
  %5026 = vmatprep.subr.bf16.mxu0 0
  %5027 = vmatpush1.bf16.msra.mxu0 %v1624
  %5028 = vmatprep.subr.bf16.mxu0 0
  %5029 = vmatpush1.bf16.msra.mxu0 %v1625
  %5030 = vmatprep.subr.bf16.mxu0 0
  %5031 = vmatpush1.bf16.msra.mxu0 %v1626
  %5032 = vmatprep.subr.bf16.mxu0 0
  %5033 = vmatpush1.bf16.msra.mxu0 %v1627
  %5034 = vmatprep.subr.bf16.mxu0 0
  %5035 = vmatpush1.bf16.msra.mxu0 %v1628
  %5036 = vmatprep.subr.bf16.mxu0 0
  %5037 = vmatpush1.bf16.msra.mxu0 %v1629
  %5038 = vmatprep.subr.bf16.mxu0 0
  %5039 = vmatpush1.bf16.msra.mxu0 %v1630
  %5040 = vmatprep.subr.bf16.mxu0 0
  %5041 = vmatpush1.bf16.msra.mxu0 %v1631
  %5042 = vmatprep.subr.bf16.mxu0 0
  %5043 = vmatpush1.bf16.msra.mxu0 %v1632
  %5044 = vmatprep.subr.bf16.mxu0 0
  %5045 = vmatpush1.bf16.msra.mxu0 %v1633
  %5046 = vmatprep.subr.bf16.mxu0 0
  %5047 = vmatpush1.bf16.msra.mxu0 %v1634
  %5048 = vmatprep.subr.bf16.mxu0 0
  %5049 = vmatpush1.bf16.msra.mxu0 %v1635
  %5050 = vmatprep.mubr.bf16.mxu0 %v2828
  %5051 = vmatmul.mubr.bf16.gmra.mrb[0].mxu0 %v2827
  %v5052 = vpop.f32.mrb[0].mxu0
  %v5053 = vadd.f32 %v4956, %v5052
  %v5054 = vpop.f32.mrb[0].mxu0
  %v5055 = vpop.f32.mrb[0].mxu0
  %v5056 = vadd.f32 %v4959, %v5055
  %v5057 = vpop.f32.mrb[0].mxu0
  %5058 = vmatprep.mubr.bf16.mxu0 %v2864
  %5059 = vmatmul.mubr.bf16.gmra.mrb[0].mxu0 %v2863
  %v5060 = vpop.f32.mrb[0].mxu0
  %v5061 = vadd.f32 %v4964, %v5060
  %v5062 = vpop.f32.mrb[0].mxu0
  %v5063 = vpop.f32.mrb[0].mxu0
  %v5064 = vadd.f32 %v4967, %v5063
  %v5065 = vpop.f32.mrb[0].mxu0
  %5066 = vmatprep.mubr.bf16.mxu0 %v2900
  %5067 = vmatmul.mubr.bf16.gmra.mrb[0].mxu0 %v2899
  %v5068 = vpop.f32.mrb[0].mxu0
  %v5069 = vadd.f32 %v4972, %v5068
  %v5070 = vpop.f32.mrb[0].mxu0
  %v5071 = vpop.f32.mrb[0].mxu0
  %v5072 = vadd.f32 %v4975, %v5071
  %v5073 = vpop.f32.mrb[0].mxu0
  %5074 = vmatprep.mubr.bf16.mxu0 %v2936
  %5075 = vmatmul.mubr.bf16.gmra.mrb[0].mxu0 %v2935
  %v5076 = vpop.f32.mrb[0].mxu0
  %v5077 = vadd.f32 %v4980, %v5076
  %v5078 = vpop.f32.mrb[0].mxu0
  %v5079 = vpop.f32.mrb[0].mxu0
  %v5080 = vadd.f32 %v4983, %v5079
  %v5081 = vpop.f32.mrb[0].mxu0
  %5082 = vmatprep.mubr.bf16.mxu0 %v2972
  %5083 = vmatmul.mubr.bf16.gmra.mrb[0].mxu0 %v2971
  %v5084 = vpop.f32.mrb[0].mxu0
  %v5085 = vadd.f32 %v4988, %v5084
  %v5086 = vpop.f32.mrb[0].mxu0
  %v5087 = vpop.f32.mrb[0].mxu0
  %v5088 = vadd.f32 %v4991, %v5087
  %v5089 = vpop.f32.mrb[0].mxu0
  %5090 = vmatprep.mubr.bf16.mxu0 %v3008
  %5091 = vmatmul.mubr.bf16.gmra.mrb[0].mxu0 %v3007
  %v5092 = vpop.f32.mrb[0].mxu0
  %v5093 = vadd.f32 %v4996, %v5092
  %v5094 = vpop.f32.mrb[0].mxu0
  %v5095 = vpop.f32.mrb[0].mxu0
  %v5096 = vadd.f32 %v4999, %v5095
  %v5097 = vpop.f32.mrb[0].mxu0
  %5098 = vmatprep.mubr.bf16.mxu0 %v3044
  %5099 = vmatmul.mubr.bf16.gmra.mrb[0].mxu0 %v3043
  %v5100 = vpop.f32.mrb[0].mxu0
  %v5101 = vadd.f32 %v5004, %v5100
  %v5102 = vpop.f32.mrb[0].mxu0
  %v5103 = vpop.f32.mrb[0].mxu0
  %v5104 = vadd.f32 %v5007, %v5103
  %v5105 = vpop.f32.mrb[0].mxu0
  %5106 = vmatprep.mubr.bf16.mxu0 %v3080
  %5107 = vmatmul.mubr.bf16.gmra.mrb[0].mxu0 %v3079
  %v5108 = vpop.f32.mrb[0].mxu0
  %v5109 = vadd.f32 %v5012, %v5108
  %v5110 = vpop.f32.mrb[0].mxu0
  %v5111 = vpop.f32.mrb[0].mxu0
  %v5112 = vadd.f32 %v5015, %v5111
  %v5113 = vpop.f32.mrb[0].mxu0
  %5114 = vdwg.mxu0
  %v5115 = vld [vmem:[%s2 + $0x30] sm:$0xff]
  %v5116 = vld [vmem:[%s2 + $0x38] sm:$0xff]
  %v5117 = vld [vmem:[%s2 + $0x40] sm:$0xff]
  %v5118 = vld [vmem:[%s2 + $0x48] sm:$0xff]
  %v5119 = vld [vmem:[%s2 + $0xe8] sm:$0x1]
  %v5120 = vlaneseq
  %v5121 = vshrl.u32 %v5120, 7
  %v5122 = vsub.s32 0, %v5121
  %v5123 = vrot.slane %v5119, %v5122
  %vm5124 = vcmask 261120
  %v5126 = vsel %vm5124, %v5053, 0
  %v5129 = vsel %vm5124, %v5056, 0
  %v5132 = vsel %vm5124, %v5061, 0
  %v5135 = vsel %vm5124, %v5064, 0
  %v5138 = vsel %vm5124, %v5069, 0
  %v5141 = vsel %vm5124, %v5072, 0
  %v5144 = vsel %vm5124, %v5077, 0
  %v5147 = vsel %vm5124, %v5080, 0
  %v5150 = vsel %vm5124, %v5085, 0
  %v5153 = vsel %vm5124, %v5088, 0
  %v5156 = vsel %vm5124, %v5093, 0
  %v5159 = vsel %vm5124, %v5096, 0
  %v5162 = vsel %vm5124, %v5101, 0
  %v5165 = vsel %vm5124, %v5104, 0
  %v5168 = vsel %vm5124, %v5109, 0
  %v5171 = vsel %vm5124, %v5112, 0
  %5173 = vmatprep.subr.mxu0 0.0
  %5174 = vmatpush1.msra.mxu0 %v5115
  %5175 = vmatprep.subr.mxu0 0.0
  %5176 = vmatpush1.msra.mxu0 %v5116
  %5177 = vmatprep.subr.mxu0 0.0
  %5178 = vmatpush1.msra.mxu0 %v5117
  %5179 = vmatprep.subr.mxu0 0.0
  %5180 = vmatpush1.msra.mxu0 %v5118
  %5181 = vmatprep.subr.mxu0 0.0
  %5182 = vmatpush1.msra.mxu0 0.0
  %5183 = vmatprep.subr.mxu0 0.0
  %5184 = vmatpush1.msra.mxu0 0.0
  %5185 = vmatprep.subr.mxu0 0.0
  %5186 = vmatpush1.msra.mxu0 0.0
  %5187 = vmatprep.subr.mxu0 0.0
  %5188 = vmatpush1.msra.mxu0 0.0
  %5189 = vmatprep.subr.mxu0 0.0
  %5190 = vmatpush1.msra.mxu0 0.0
  %5191 = vmatprep.subr.mxu0 0.0
  %5192 = vmatpush1.msra.mxu0 0.0
  %5193 = vmatprep.subr.mxu0 0.0
  %5194 = vmatpush1.msra.mxu0 0.0
  %5195 = vmatprep.subr.mxu0 0.0
  %5196 = vmatpush1.msra.mxu0 0.0
  %5197 = vmatprep.subr.mxu0 0.0
  %5198 = vmatpush1.msra.mxu0 0.0
  %5199 = vmatprep.subr.mxu0 0.0
  %5200 = vmatpush1.msra.mxu0 0.0
  %5201 = vmatprep.subr.mxu0 0.0
  %5202 = vmatpush1.msra.mxu0 0.0
  %5203 = vmatprep.subr.mxu0 0.0
  %5204 = vmatpush1.msra.mxu0 0.0
  %5205 = vmatprep.subr.mxu0 0.0
  %5206 = vmatpush1.msra.mxu0 0.0
  %5207 = vmatprep.subr.mxu0 0.0
  %5208 = vmatpush1.msra.mxu0 0.0
  %5209 = vmatprep.subr.mxu0 0.0
  %5210 = vmatpush1.msra.mxu0 0.0
  %5211 = vmatprep.subr.mxu0 0.0
  %5212 = vmatpush1.msra.mxu0 0.0
  %5213 = vmatprep.subr.mxu0 0.0
  %5214 = vmatpush1.msra.mxu0 0.0
  %5215 = vmatprep.subr.mxu0 0.0
  %5216 = vmatpush1.msra.mxu0 0.0
  %5217 = vmatprep.subr.mxu0 0.0
  %5218 = vmatpush1.msra.mxu0 0.0
  %5219 = vmatprep.subr.mxu0 0.0
  %5220 = vmatpush1.msra.mxu0 0.0
  %5221 = vmatprep.subr.mxu0 0.0
  %5222 = vmatpush1.msra.mxu0 0.0
  %5223 = vmatprep.subr.mxu0 0.0
  %5224 = vmatpush1.msra.mxu0 0.0
  %5225 = vmatprep.subr.mxu0 0.0
  %5226 = vmatpush1.msra.mxu0 0.0
  %5227 = vmatprep.subr.mxu0 0.0
  %5228 = vmatpush1.msra.mxu0 0.0
  %5229 = vmatprep.subr.mxu0 0.0
  %5230 = vmatpush1.msra.mxu0 0.0
  %5231 = vmatprep.subr.mxu0 0.0
  %5232 = vmatpush1.msra.mxu0 0.0
  %5233 = vmatprep.subr.mxu0 0.0
  %5234 = vmatpush1.msra.mxu0 0.0
  %5235 = vmatprep.subr.mxu0 0.0
  %5236 = vmatpush1.msra.mxu0 0.0
  %5237 = vmatprep.mubr.f32.mxu0 0.0
  %5238 = vmatmul.mubr.f32.gmra.mrb[0].mxu0 %v5126
  %v5239 = vpop.f32.mrb[0].mxu0
  %v5240 = vadd.f32 %v5123, %v5239
  %v5241 = vpop.f32.mrb[0].mxu0
  %5242 = vmatprep.mubr.f32.mxu0 0.0
  %5243 = vmatmul.mubr.f32.gmra.mrb[0].mxu0 %v5129
  %v5244 = vpop.f32.mrb[0].mxu0
  %v5245 = vadd.f32 %v5123, %v5244
  %v5246 = vpop.f32.mrb[0].mxu0
  %5247 = vmatprep.mubr.f32.mxu0 0.0
  %5248 = vmatmul.mubr.f32.gmra.mrb[0].mxu0 %v5132
  %v5249 = vpop.f32.mrb[0].mxu0
  %v5250 = vadd.f32 %v5123, %v5249
  %v5251 = vpop.f32.mrb[0].mxu0
  %5252 = vmatprep.mubr.f32.mxu0 0.0
  %5253 = vmatmul.mubr.f32.gmra.mrb[0].mxu0 %v5135
  %v5254 = vpop.f32.mrb[0].mxu0
  %v5255 = vadd.f32 %v5123, %v5254
  %v5256 = vpop.f32.mrb[0].mxu0
  %5257 = vmatprep.mubr.f32.mxu0 0.0
  %5258 = vmatmul.mubr.f32.gmra.mrb[0].mxu0 %v5138
  %v5259 = vpop.f32.mrb[0].mxu0
  %v5260 = vadd.f32 %v5123, %v5259
  %v5261 = vpop.f32.mrb[0].mxu0
  %5262 = vmatprep.mubr.f32.mxu0 0.0
  %5263 = vmatmul.mubr.f32.gmra.mrb[0].mxu0 %v5141
  %v5264 = vpop.f32.mrb[0].mxu0
  %v5265 = vadd.f32 %v5123, %v5264
  %v5266 = vpop.f32.mrb[0].mxu0
  %5267 = vmatprep.mubr.f32.mxu0 0.0
  %5268 = vmatmul.mubr.f32.gmra.mrb[0].mxu0 %v5144
  %v5269 = vpop.f32.mrb[0].mxu0
  %v5270 = vadd.f32 %v5123, %v5269
  %v5271 = vpop.f32.mrb[0].mxu0
  %5272 = vmatprep.mubr.f32.mxu0 0.0
  %5273 = vmatmul.mubr.f32.gmra.mrb[0].mxu0 %v5147
  %v5274 = vpop.f32.mrb[0].mxu0
  %v5275 = vadd.f32 %v5123, %v5274
  %v5276 = vpop.f32.mrb[0].mxu0
  %5277 = vmatprep.mubr.f32.mxu0 0.0
  %5278 = vmatmul.mubr.f32.gmra.mrb[0].mxu0 %v5150
  %v5279 = vpop.f32.mrb[0].mxu0
  %v5280 = vadd.f32 %v5123, %v5279
  %v5281 = vpop.f32.mrb[0].mxu0
  %5282 = vmatprep.mubr.f32.mxu0 0.0
  %5283 = vmatmul.mubr.f32.gmra.mrb[0].mxu0 %v5153
  %v5284 = vpop.f32.mrb[0].mxu0
  %v5285 = vadd.f32 %v5123, %v5284
  %v5286 = vpop.f32.mrb[0].mxu0
  %5287 = vmatprep.mubr.f32.mxu0 0.0
  %5288 = vmatmul.mubr.f32.gmra.mrb[0].mxu0 %v5156
  %v5289 = vpop.f32.mrb[0].mxu0
  %v5290 = vadd.f32 %v5123, %v5289
  %v5291 = vpop.f32.mrb[0].mxu0
  %5292 = vmatprep.mubr.f32.mxu0 0.0
  %5293 = vmatmul.mubr.f32.gmra.mrb[0].mxu0 %v5159
  %v5294 = vpop.f32.mrb[0].mxu0
  %v5295 = vadd.f32 %v5123, %v5294
  %v5296 = vpop.f32.mrb[0].mxu0
  %5297 = vmatprep.mubr.f32.mxu0 0.0
  %5298 = vmatmul.mubr.f32.gmra.mrb[0].mxu0 %v5162
  %v5299 = vpop.f32.mrb[0].mxu0
  %v5300 = vadd.f32 %v5123, %v5299
  %v5301 = vpop.f32.mrb[0].mxu0
  %5302 = vmatprep.mubr.f32.mxu0 0.0
  %5303 = vmatmul.mubr.f32.gmra.mrb[0].mxu0 %v5165
  %v5304 = vpop.f32.mrb[0].mxu0
  %v5305 = vadd.f32 %v5123, %v5304
  %v5306 = vpop.f32.mrb[0].mxu0
  %5307 = vmatprep.mubr.f32.mxu0 0.0
  %5308 = vmatmul.mubr.f32.gmra.mrb[0].mxu0 %v5168
  %v5309 = vpop.f32.mrb[0].mxu0
  %v5310 = vadd.f32 %v5123, %v5309
  %v5311 = vpop.f32.mrb[0].mxu0
  %5312 = vmatprep.mubr.f32.mxu0 0.0
  %5313 = vmatmul.mubr.f32.gmra.mrb[0].mxu0 %v5171
  %v5314 = vpop.f32.mrb[0].mxu0
  %v5315 = vadd.f32 %v5123, %v5314
  %v5316 = vpop.f32.mrb[0].mxu0
  %5317 = vdwg.mxu0
  %v5318 = vmax.f32 %v5240, 0.0
  %v5319 = vmax.f32 %v5245, 0.0
  %v5320 = vmax.f32 %v5250, 0.0
  %v5321 = vmax.f32 %v5255, 0.0
  %v5322 = vmax.f32 %v5260, 0.0
  %v5323 = vmax.f32 %v5265, 0.0
  %v5324 = vmax.f32 %v5270, 0.0
  %v5325 = vmax.f32 %v5275, 0.0
  %v5326 = vmax.f32 %v5280, 0.0
  %v5327 = vmax.f32 %v5285, 0.0
  %v5328 = vmax.f32 %v5290, 0.0
  %v5329 = vmax.f32 %v5295, 0.0
  %v5330 = vmax.f32 %v5300, 0.0
  %v5331 = vmax.f32 %v5305, 0.0
  %v5332 = vmax.f32 %v5310, 0.0
  %v5333 = vmax.f32 %v5315, 0.0
  %v5334 = vld [vmem:[%s2 + $0x50] sm:$0xff]
  %v5335 = vld [vmem:[%s2 + $0x58] sm:$0x1]
  %v5336 = vlaneseq
  %v5337 = vshrl.u32 %v5336, 7
  %v5338 = vsub.s32 0, %v5337
  %v5339 = vrot.slane %v5334, %v5338
  %v5340 = vmul.f32 %v5318, %v5339
  %v5341 = vmul.f32 %v5319, %v5339
  %v5342 = vmul.f32 %v5320, %v5339
  %v5343 = vmul.f32 %v5321, %v5339
  %v5344 = vmul.f32 %v5322, %v5339
  %v5345 = vmul.f32 %v5323, %v5339
  %v5346 = vmul.f32 %v5324, %v5339
  %v5347 = vmul.f32 %v5325, %v5339
  %v5348 = vmul.f32 %v5326, %v5339
  %v5349 = vmul.f32 %v5327, %v5339
  %v5350 = vmul.f32 %v5328, %v5339
  %v5351 = vmul.f32 %v5329, %v5339
  %v5352 = vmul.f32 %v5330, %v5339
  %v5353 = vmul.f32 %v5331, %v5339
  %v5354 = vmul.f32 %v5332, %v5339
  %v5355 = vmul.f32 %v5333, %v5339
  %v5356 = vlaneseq
  %v5357 = vshrl.u32 %v5356, 7
  %v5358 = vsub.s32 1, %v5357
  %v5359 = vrot.slane %v5334, %v5358
  %v5360 = vmul.f32 %v5318, %v5359
  %v5361 = vmul.f32 %v5319, %v5359
  %v5362 = vmul.f32 %v5320, %v5359
  %v5363 = vmul.f32 %v5321, %v5359
  %v5364 = vmul.f32 %v5322, %v5359
  %v5365 = vmul.f32 %v5323, %v5359
  %v5366 = vmul.f32 %v5324, %v5359
  %v5367 = vmul.f32 %v5325, %v5359
  %v5368 = vmul.f32 %v5326, %v5359
  %v5369 = vmul.f32 %v5327, %v5359
  %v5370 = vmul.f32 %v5328, %v5359
  %v5371 = vmul.f32 %v5329, %v5359
  %v5372 = vmul.f32 %v5330, %v5359
  %v5373 = vmul.f32 %v5331, %v5359
  %v5374 = vmul.f32 %v5332, %v5359
  %v5375 = vmul.f32 %v5333, %v5359
  %v5376 = vlaneseq
  %v5377 = vshrl.u32 %v5376, 7
  %v5378 = vsub.s32 2, %v5377
  %v5379 = vrot.slane %v5334, %v5378
  %v5380 = vmul.f32 %v5318, %v5379
  %v5381 = vmul.f32 %v5319, %v5379
  %v5382 = vmul.f32 %v5320, %v5379
  %v5383 = vmul.f32 %v5321, %v5379
  %v5384 = vmul.f32 %v5322, %v5379
  %v5385 = vmul.f32 %v5323, %v5379
  %v5386 = vmul.f32 %v5324, %v5379
  %v5387 = vmul.f32 %v5325, %v5379
  %v5388 = vmul.f32 %v5326, %v5379
  %v5389 = vmul.f32 %v5327, %v5379
  %v5390 = vmul.f32 %v5328, %v5379
  %v5391 = vmul.f32 %v5329, %v5379
  %v5392 = vmul.f32 %v5330, %v5379
  %v5393 = vmul.f32 %v5331, %v5379
  %v5394 = vmul.f32 %v5332, %v5379
  %v5395 = vmul.f32 %v5333, %v5379
  %v5396 = vlaneseq
  %v5397 = vshrl.u32 %v5396, 7
  %v5398 = vsub.s32 3, %v5397
  %v5399 = vrot.slane %v5334, %v5398
  %v5400 = vmul.f32 %v5318, %v5399
  %v5401 = vmul.f32 %v5319, %v5399
  %v5402 = vmul.f32 %v5320, %v5399
  %v5403 = vmul.f32 %v5321, %v5399
  %v5404 = vmul.f32 %v5322, %v5399
  %v5405 = vmul.f32 %v5323, %v5399
  %v5406 = vmul.f32 %v5324, %v5399
  %v5407 = vmul.f32 %v5325, %v5399
  %v5408 = vmul.f32 %v5326, %v5399
  %v5409 = vmul.f32 %v5327, %v5399
  %v5410 = vmul.f32 %v5328, %v5399
  %v5411 = vmul.f32 %v5329, %v5399
  %v5412 = vmul.f32 %v5330, %v5399
  %v5413 = vmul.f32 %v5331, %v5399
  %v5414 = vmul.f32 %v5332, %v5399
  %v5415 = vmul.f32 %v5333, %v5399
  %v5416 = vlaneseq
  %v5417 = vshrl.u32 %v5416, 7
  %v5418 = vsub.s32 4, %v5417
  %v5419 = vrot.slane %v5334, %v5418
  %v5420 = vmul.f32 %v5318, %v5419
  %v5421 = vmul.f32 %v5319, %v5419
  %v5422 = vmul.f32 %v5320, %v5419
  %v5423 = vmul.f32 %v5321, %v5419
  %v5424 = vmul.f32 %v5322, %v5419
  %v5425 = vmul.f32 %v5323, %v5419
  %v5426 = vmul.f32 %v5324, %v5419
  %v5427 = vmul.f32 %v5325, %v5419
  %v5428 = vmul.f32 %v5326, %v5419
  %v5429 = vmul.f32 %v5327, %v5419
  %v5430 = vmul.f32 %v5328, %v5419
  %v5431 = vmul.f32 %v5329, %v5419
  %v5432 = vmul.f32 %v5330, %v5419
  %v5433 = vmul.f32 %v5331, %v5419
  %v5434 = vmul.f32 %v5332, %v5419
  %v5435 = vmul.f32 %v5333, %v5419
  %v5436 = vlaneseq
  %v5437 = vshrl.u32 %v5436, 7
  %v5438 = vsub.s32 5, %v5437
  %v5439 = vrot.slane %v5334, %v5438
  %v5440 = vmul.f32 %v5318, %v5439
  %v5441 = vmul.f32 %v5319, %v5439
  %v5442 = vmul.f32 %v5320, %v5439
  %v5443 = vmul.f32 %v5321, %v5439
  %v5444 = vmul.f32 %v5322, %v5439
  %v5445 = vmul.f32 %v5323, %v5439
  %v5446 = vmul.f32 %v5324, %v5439
  %v5447 = vmul.f32 %v5325, %v5439
  %v5448 = vmul.f32 %v5326, %v5439
  %v5449 = vmul.f32 %v5327, %v5439
  %v5450 = vmul.f32 %v5328, %v5439
  %v5451 = vmul.f32 %v5329, %v5439
  %v5452 = vmul.f32 %v5330, %v5439
  %v5453 = vmul.f32 %v5331, %v5439
  %v5454 = vmul.f32 %v5332, %v5439
  %v5455 = vmul.f32 %v5333, %v5439
  %v5456 = vlaneseq
  %v5457 = vshrl.u32 %v5456, 7
  %v5458 = vsub.s32 6, %v5457
  %v5459 = vrot.slane %v5334, %v5458
  %v5460 = vmul.f32 %v5318, %v5459
  %v5461 = vmul.f32 %v5319, %v5459
  %v5462 = vmul.f32 %v5320, %v5459
  %v5463 = vmul.f32 %v5321, %v5459
  %v5464 = vmul.f32 %v5322, %v5459
  %v5465 = vmul.f32 %v5323, %v5459
  %v5466 = vmul.f32 %v5324, %v5459
  %v5467 = vmul.f32 %v5325, %v5459
  %v5468 = vmul.f32 %v5326, %v5459
  %v5469 = vmul.f32 %v5327, %v5459
  %v5470 = vmul.f32 %v5328, %v5459
  %v5471 = vmul.f32 %v5329, %v5459
  %v5472 = vmul.f32 %v5330, %v5459
  %v5473 = vmul.f32 %v5331, %v5459
  %v5474 = vmul.f32 %v5332, %v5459
  %v5475 = vmul.f32 %v5333, %v5459
  %v5476 = vlaneseq
  %v5477 = vshrl.u32 %v5476, 7
  %v5478 = vsub.s32 7, %v5477
  %v5479 = vrot.slane %v5334, %v5478
  %v5480 = vmul.f32 %v5318, %v5479
  %v5481 = vmul.f32 %v5319, %v5479
  %v5482 = vmul.f32 %v5320, %v5479
  %v5483 = vmul.f32 %v5321, %v5479
  %v5484 = vmul.f32 %v5322, %v5479
  %v5485 = vmul.f32 %v5323, %v5479
  %v5486 = vmul.f32 %v5324, %v5479
  %v5487 = vmul.f32 %v5325, %v5479
  %v5488 = vmul.f32 %v5326, %v5479
  %v5489 = vmul.f32 %v5327, %v5479
  %v5490 = vmul.f32 %v5328, %v5479
  %v5491 = vmul.f32 %v5329, %v5479
  %v5492 = vmul.f32 %v5330, %v5479
  %v5493 = vmul.f32 %v5331, %v5479
  %v5494 = vmul.f32 %v5332, %v5479
  %v5495 = vmul.f32 %v5333, %v5479
  %v5496 = vlaneseq
  %v5497 = vshrl.u32 %v5496, 7
  %v5498 = vsub.s32 0, %v5497
  %v5499 = vrot.slane %v5335, %v5498
  %v5500 = vmul.f32 %v5318, %v5499
  %v5501 = vmul.f32 %v5319, %v5499
  %v5502 = vmul.f32 %v5320, %v5499
  %v5503 = vmul.f32 %v5321, %v5499
  %v5504 = vmul.f32 %v5322, %v5499
  %v5505 = vmul.f32 %v5323, %v5499
  %v5506 = vmul.f32 %v5324, %v5499
  %v5507 = vmul.f32 %v5325, %v5499
  %v5508 = vmul.f32 %v5326, %v5499
  %v5509 = vmul.f32 %v5327, %v5499
  %v5510 = vmul.f32 %v5328, %v5499
  %v5511 = vmul.f32 %v5329, %v5499
  %v5512 = vmul.f32 %v5330, %v5499
  %v5513 = vmul.f32 %v5331, %v5499
  %v5514 = vmul.f32 %v5332, %v5499
  %v5515 = vmul.f32 %v5333, %v5499
  %v5516 = vpack.c.bf16 %v5341, %v5340
  %v5517 = vpack.c.bf16 %v5343, %v5342
  %v5518 = vpack.c.bf16 %v5345, %v5344
  %v5519 = vpack.c.bf16 %v5347, %v5346
  %v5520 = vpack.c.bf16 %v5349, %v5348
  %v5521 = vpack.c.bf16 %v5351, %v5350
  %v5522 = vpack.c.bf16 %v5353, %v5352
  %v5523 = vpack.c.bf16 %v5355, %v5354
  %v5524 = vpack.c.bf16 %v5361, %v5360
  %v5525 = vpack.c.bf16 %v5363, %v5362
  %v5526 = vpack.c.bf16 %v5365, %v5364
  %v5527 = vpack.c.bf16 %v5367, %v5366
  %v5528 = vpack.c.bf16 %v5369, %v5368
  %v5529 = vpack.c.bf16 %v5371, %v5370
  %v5530 = vpack.c.bf16 %v5373, %v5372
  %v5531 = vpack.c.bf16 %v5375, %v5374
  %v5532 = vpack.c.bf16 %v5381, %v5380
  %v5533 = vpack.c.bf16 %v5383, %v5382
  %v5534 = vpack.c.bf16 %v5385, %v5384
  %v5535 = vpack.c.bf16 %v5387, %v5386
  %v5536 = vpack.c.bf16 %v5389, %v5388
  %v5537 = vpack.c.bf16 %v5391, %v5390
  %v5538 = vpack.c.bf16 %v5393, %v5392
  %v5539 = vpack.c.bf16 %v5395, %v5394
  %v5540 = vpack.c.bf16 %v5401, %v5400
  %v5541 = vpack.c.bf16 %v5403, %v5402
  %v5542 = vpack.c.bf16 %v5405, %v5404
  %v5543 = vpack.c.bf16 %v5407, %v5406
  %v5544 = vpack.c.bf16 %v5409, %v5408
  %v5545 = vpack.c.bf16 %v5411, %v5410
  %v5546 = vpack.c.bf16 %v5413, %v5412
  %v5547 = vpack.c.bf16 %v5415, %v5414
  %v5548 = vpack.c.bf16 %v5421, %v5420
  %v5549 = vpack.c.bf16 %v5423, %v5422
  %v5550 = vpack.c.bf16 %v5425, %v5424
  %v5551 = vpack.c.bf16 %v5427, %v5426
  %v5552 = vpack.c.bf16 %v5429, %v5428
  %v5553 = vpack.c.bf16 %v5431, %v5430
  %v5554 = vpack.c.bf16 %v5433, %v5432
  %v5555 = vpack.c.bf16 %v5435, %v5434
  %v5556 = vpack.c.bf16 %v5441, %v5440
  %v5557 = vpack.c.bf16 %v5443, %v5442
  %v5558 = vpack.c.bf16 %v5445, %v5444
  %v5559 = vpack.c.bf16 %v5447, %v5446
  %v5560 = vpack.c.bf16 %v5449, %v5448
  %v5561 = vpack.c.bf16 %v5451, %v5450
  %v5562 = vpack.c.bf16 %v5453, %v5452
  %v5563 = vpack.c.bf16 %v5455, %v5454
  %v5564 = vpack.c.bf16 %v5461, %v5460
  %v5565 = vpack.c.bf16 %v5463, %v5462
  %v5566 = vpack.c.bf16 %v5465, %v5464
  %v5567 = vpack.c.bf16 %v5467, %v5466
  %v5568 = vpack.c.bf16 %v5469, %v5468
  %v5569 = vpack.c.bf16 %v5471, %v5470
  %v5570 = vpack.c.bf16 %v5473, %v5472
  %v5571 = vpack.c.bf16 %v5475, %v5474
  %v5572 = vpack.c.bf16 %v5481, %v5480
  %v5573 = vpack.c.bf16 %v5483, %v5482
  %v5574 = vpack.c.bf16 %v5485, %v5484
  %v5575 = vpack.c.bf16 %v5487, %v5486
  %v5576 = vpack.c.bf16 %v5489, %v5488
  %v5577 = vpack.c.bf16 %v5491, %v5490
  %v5578 = vpack.c.bf16 %v5493, %v5492
  %v5579 = vpack.c.bf16 %v5495, %v5494
  %v5580 = vpack.c.bf16 %v5501, %v5500
  %v5581 = vpack.c.bf16 %v5503, %v5502
  %v5582 = vpack.c.bf16 %v5505, %v5504
  %v5583 = vpack.c.bf16 %v5507, %v5506
  %v5584 = vpack.c.bf16 %v5509, %v5508
  %v5585 = vpack.c.bf16 %v5511, %v5510
  %v5586 = vpack.c.bf16 %v5513, %v5512
  %v5587 = vpack.c.bf16 %v5515, %v5514
  %v5588 = vld [vmem:[%s1 + $0x900] sm:$0xff]
  %v5589 = vld [vmem:[%s1 + $0x908] sm:$0xff]
  %v5590 = vld [vmem:[%s1 + $0x910] sm:$0xff]
  %v5591 = vld [vmem:[%s1 + $0x918] sm:$0xff]
  %v5592 = vld [vmem:[%s1 + $0x920] sm:$0xf]
  %v5593 = vld [vmem:[%s1 + $0x990] sm:$0xff]
  %v5594 = vld [vmem:[%s1 + $0x998] sm:$0xff]
  %v5595 = vld [vmem:[%s1 + $0x9a0] sm:$0xff]
  %v5596 = vld [vmem:[%s1 + $0x9a8] sm:$0xff]
  %v5597 = vld [vmem:[%s1 + $0x9b0] sm:$0xf]
  %v5598 = vld [vmem:[%s1 + $0xa20] sm:$0xff]
  %v5599 = vld [vmem:[%s1 + $0xa28] sm:$0xff]
  %v5600 = vld [vmem:[%s1 + $0xa30] sm:$0xff]
  %v5601 = vld [vmem:[%s1 + $0xa38] sm:$0xff]
  %v5602 = vld [vmem:[%s1 + $0xa40] sm:$0xf]
  %v5603 = vld [vmem:[%s1 + $0xab0] sm:$0xff]
  %v5604 = vld [vmem:[%s1 + $0xab8] sm:$0xff]
  %v5605 = vld [vmem:[%s1 + $0xac0] sm:$0xff]
  %v5606 = vld [vmem:[%s1 + $0xac8] sm:$0xff]
  %v5607 = vld [vmem:[%s1 + $0xad0] sm:$0xf]
  %v5608 = vld [vmem:[%s2 + $0xf0] sm:$0x1]
  %v5609 = vlaneseq
  %v5610 = vshrl.u32 %v5609, 7
  %v5611 = vsub.s32 0, %v5610
  %v5612 = vrot.slane %v5608, %v5611
  %v5633 = vunpack.c.l.b16 %v5588
  %v5634 = vunpack.c.h.b16 %v5588
  %v5635 = vunpack.c.l.b16 %v5589
  %v5636 = vunpack.c.h.b16 %v5589
  %v5637 = vunpack.c.l.b16 %v5590
  %v5638 = vunpack.c.h.b16 %v5590
  %v5639 = vunpack.c.l.b16 %v5591
  %v5640 = vunpack.c.h.b16 %v5591
  %v5641 = vunpack.c.l.b16 %v5592
  %v5642 = vunpack.c.l.b16 %v5593
  %v5643 = vunpack.c.h.b16 %v5593
  %v5644 = vunpack.c.l.b16 %v5594
  %v5645 = vunpack.c.h.b16 %v5594
  %v5646 = vunpack.c.l.b16 %v5595
  %v5647 = vunpack.c.h.b16 %v5595
  %v5648 = vunpack.c.l.b16 %v5596
  %v5649 = vunpack.c.h.b16 %v5596
  %v5650 = vunpack.c.l.b16 %v5597
  %v5651 = vunpack.c.l.b16 %v5598
  %v5652 = vunpack.c.h.b16 %v5598
  %v5653 = vunpack.c.l.b16 %v5599
  %v5654 = vunpack.c.h.b16 %v5599
  %v5655 = vunpack.c.l.b16 %v5600
  %v5656 = vunpack.c.h.b16 %v5600
  %v5657 = vunpack.c.l.b16 %v5601
  %v5658 = vunpack.c.h.b16 %v5601
  %v5659 = vunpack.c.l.b16 %v5602
  %v5660 = vunpack.c.l.b16 %v5603
  %v5661 = vunpack.c.h.b16 %v5603
  %v5662 = vunpack.c.l.b16 %v5604
  %v5663 = vunpack.c.h.b16 %v5604
  %v5664 = vunpack.c.l.b16 %v5605
  %v5665 = vunpack.c.h.b16 %v5605
  %v5666 = vunpack.c.l.b16 %v5606
  %v5667 = vunpack.c.h.b16 %v5606
  %v5668 = vunpack.c.l.b16 %v5607
  %v5669 = vpack.c.b16 %v5642, %v5633
  %v5670 = vpack.c.b16 %v5643, %v5634
  %v5671 = vpack.c.b16 %v5644, %v5635
  %v5672 = vpack.c.b16 %v5645, %v5636
  %v5673 = vpack.c.b16 %v5646, %v5637
  %v5674 = vpack.c.b16 %v5647, %v5638
  %v5675 = vpack.c.b16 %v5648, %v5639
  %v5676 = vpack.c.b16 %v5649, %v5640
  %v5677 = vpack.c.b16 %v5650, %v5641
  %v5678 = vpack.c.b16 %v5660, %v5651
  %v5679 = vpack.c.b16 %v5661, %v5652
  %v5680 = vpack.c.b16 %v5662, %v5653
  %v5681 = vpack.c.b16 %v5663, %v5654
  %v5682 = vpack.c.b16 %v5664, %v5655
  %v5683 = vpack.c.b16 %v5665, %v5656
  %v5684 = vpack.c.b16 %v5666, %v5657
  %v5685 = vpack.c.b16 %v5667, %v5658
  %v5686 = vpack.c.b16 %v5668, %v5659
  %5705 = vmatprep.subr.bf16.mxu0 0
  %5706 = vmatpush1.bf16.msra.mxu0 %v5516
  %5707 = vmatprep.subr.bf16.mxu0 0
  %5708 = vmatpush1.bf16.msra.mxu0 %v5517
  %5709 = vmatprep.subr.bf16.mxu0 0
  %5710 = vmatpush1.bf16.msra.mxu0 %v5518
  %5711 = vmatprep.subr.bf16.mxu0 0
  %5712 = vmatpush1.bf16.msra.mxu0 %v5519
  %5713 = vmatprep.subr.bf16.mxu0 0
  %5714 = vmatpush1.bf16.msra.mxu0 %v5520
  %5715 = vmatprep.subr.bf16.mxu0 0
  %5716 = vmatpush1.bf16.msra.mxu0 %v5521
  %5717 = vmatprep.subr.bf16.mxu0 0
  %5718 = vmatpush1.bf16.msra.mxu0 %v5522
  %5719 = vmatprep.subr.bf16.mxu0 0
  %5720 = vmatpush1.bf16.msra.mxu0 %v5523
  %5721 = vmatprep.subr.bf16.mxu0 0
  %5722 = vmatpush1.bf16.msra.mxu0 %v5524
  %5723 = vmatprep.subr.bf16.mxu0 0
  %5724 = vmatpush1.bf16.msra.mxu0 %v5525
  %5725 = vmatprep.subr.bf16.mxu0 0
  %5726 = vmatpush1.bf16.msra.mxu0 %v5526
  %5727 = vmatprep.subr.bf16.mxu0 0
  %5728 = vmatpush1.bf16.msra.mxu0 %v5527
  %5729 = vmatprep.subr.bf16.mxu0 0
  %5730 = vmatpush1.bf16.msra.mxu0 %v5528
  %5731 = vmatprep.subr.bf16.mxu0 0
  %5732 = vmatpush1.bf16.msra.mxu0 %v5529
  %5733 = vmatprep.subr.bf16.mxu0 0
  %5734 = vmatpush1.bf16.msra.mxu0 %v5530
  %5735 = vmatprep.subr.bf16.mxu0 0
  %5736 = vmatpush1.bf16.msra.mxu0 %v5531
  %5737 = vmatprep.mubr.bf16.mxu0 %v5670
  %5738 = vmatmul.mubr.bf16.gmra.mrb[0].mxu0 %v5669
  %v5739 = vpop.f32.mrb[0].mxu0
  %v5740 = vadd.f32 %v5612, %v5739
  %v5741 = vpop.f32.mrb[0].mxu0
  %v5742 = vpop.f32.mrb[0].mxu0
  %v5743 = vadd.f32 %v5612, %v5742
  %v5744 = vpop.f32.mrb[0].mxu0
  %5745 = vmatprep.mubr.bf16.mxu0 %v5679
  %5746 = vmatmul.mubr.bf16.gmra.mrb[0].mxu0 %v5678
  %v5747 = vpop.f32.mrb[0].mxu0
  %v5748 = vadd.f32 %v5612, %v5747
  %v5749 = vpop.f32.mrb[0].mxu0
  %v5750 = vpop.f32.mrb[0].mxu0
  %v5751 = vadd.f32 %v5612, %v5750
  %v5752 = vpop.f32.mrb[0].mxu0
  %5753 = vdwg.mxu0
  %5754 = vmatprep.subr.bf16.mxu0 0
  %5755 = vmatpush1.bf16.msra.mxu0 %v5532
  %5756 = vmatprep.subr.bf16.mxu0 0
  %5757 = vmatpush1.bf16.msra.mxu0 %v5533
  %5758 = vmatprep.subr.bf16.mxu0 0
  %5759 = vmatpush1.bf16.msra.mxu0 %v5534
  %5760 = vmatprep.subr.bf16.mxu0 0
  %5761 = vmatpush1.bf16.msra.mxu0 %v5535
  %5762 = vmatprep.subr.bf16.mxu0 0
  %5763 = vmatpush1.bf16.msra.mxu0 %v5536
  %5764 = vmatprep.subr.bf16.mxu0 0
  %5765 = vmatpush1.bf16.msra.mxu0 %v5537
  %5766 = vmatprep.subr.bf16.mxu0 0
  %5767 = vmatpush1.bf16.msra.mxu0 %v5538
  %5768 = vmatprep.subr.bf16.mxu0 0
  %5769 = vmatpush1.bf16.msra.mxu0 %v5539
  %5770 = vmatprep.subr.bf16.mxu0 0
  %5771 = vmatpush1.bf16.msra.mxu0 %v5540
  %5772 = vmatprep.subr.bf16.mxu0 0
  %5773 = vmatpush1.bf16.msra.mxu0 %v5541
  %5774 = vmatprep.subr.bf16.mxu0 0
  %5775 = vmatpush1.bf16.msra.mxu0 %v5542
  %5776 = vmatprep.subr.bf16.mxu0 0
  %5777 = vmatpush1.bf16.msra.mxu0 %v5543
  %5778 = vmatprep.subr.bf16.mxu0 0
  %5779 = vmatpush1.bf16.msra.mxu0 %v5544
  %5780 = vmatprep.subr.bf16.mxu0 0
  %5781 = vmatpush1.bf16.msra.mxu0 %v5545
  %5782 = vmatprep.subr.bf16.mxu0 0
  %5783 = vmatpush1.bf16.msra.mxu0 %v5546
  %5784 = vmatprep.subr.bf16.mxu0 0
  %5785 = vmatpush1.bf16.msra.mxu0 %v5547
  %5786 = vmatprep.mubr.bf16.mxu0 %v5672
  %5787 = vmatmul.mubr.bf16.gmra.mrb[0].mxu0 %v5671
  %v5788 = vpop.f32.mrb[0].mxu0
  %v5789 = vadd.f32 %v5740, %v5788
  %v5790 = vpop.f32.mrb[0].mxu0
  %v5791 = vpop.f32.mrb[0].mxu0
  %v5792 = vadd.f32 %v5743, %v5791
  %v5793 = vpop.f32.mrb[0].mxu0
  %5794 = vmatprep.mubr.bf16.mxu0 %v5681
  %5795 = vmatmul.mubr.bf16.gmra.mrb[0].mxu0 %v5680
  %v5796 = vpop.f32.mrb[0].mxu0
  %v5797 = vadd.f32 %v5748, %v5796
  %v5798 = vpop.f32.mrb[0].mxu0
  %v5799 = vpop.f32.mrb[0].mxu0
  %v5800 = vadd.f32 %v5751, %v5799
  %v5801 = vpop.f32.mrb[0].mxu0
  %5802 = vdwg.mxu0
  %5803 = vmatprep.subr.bf16.mxu0 0
  %5804 = vmatpush1.bf16.msra.mxu0 %v5548
  %5805 = vmatprep.subr.bf16.mxu0 0
  %5806 = vmatpush1.bf16.msra.mxu0 %v5549
  %5807 = vmatprep.subr.bf16.mxu0 0
  %5808 = vmatpush1.bf16.msra.mxu0 %v5550
  %5809 = vmatprep.subr.bf16.mxu0 0
  %5810 = vmatpush1.bf16.msra.mxu0 %v5551
  %5811 = vmatprep.subr.bf16.mxu0 0
  %5812 = vmatpush1.bf16.msra.mxu0 %v5552
  %5813 = vmatprep.subr.bf16.mxu0 0
  %5814 = vmatpush1.bf16.msra.mxu0 %v5553
  %5815 = vmatprep.subr.bf16.mxu0 0
  %5816 = vmatpush1.bf16.msra.mxu0 %v5554
  %5817 = vmatprep.subr.bf16.mxu0 0
  %5818 = vmatpush1.bf16.msra.mxu0 %v5555
  %5819 = vmatprep.subr.bf16.mxu0 0
  %5820 = vmatpush1.bf16.msra.mxu0 %v5556
  %5821 = vmatprep.subr.bf16.mxu0 0
  %5822 = vmatpush1.bf16.msra.mxu0 %v5557
  %5823 = vmatprep.subr.bf16.mxu0 0
  %5824 = vmatpush1.bf16.msra.mxu0 %v5558
  %5825 = vmatprep.subr.bf16.mxu0 0
  %5826 = vmatpush1.bf16.msra.mxu0 %v5559
  %5827 = vmatprep.subr.bf16.mxu0 0
  %5828 = vmatpush1.bf16.msra.mxu0 %v5560
  %5829 = vmatprep.subr.bf16.mxu0 0
  %5830 = vmatpush1.bf16.msra.mxu0 %v5561
  %5831 = vmatprep.subr.bf16.mxu0 0
  %5832 = vmatpush1.bf16.msra.mxu0 %v5562
  %5833 = vmatprep.subr.bf16.mxu0 0
  %5834 = vmatpush1.bf16.msra.mxu0 %v5563
  %5835 = vmatprep.mubr.bf16.mxu0 %v5674
  %5836 = vmatmul.mubr.bf16.gmra.mrb[0].mxu0 %v5673
  %v5837 = vpop.f32.mrb[0].mxu0
  %v5838 = vadd.f32 %v5789, %v5837
  %v5839 = vpop.f32.mrb[0].mxu0
  %v5840 = vpop.f32.mrb[0].mxu0
  %v5841 = vadd.f32 %v5792, %v5840
  %v5842 = vpop.f32.mrb[0].mxu0
  %5843 = vmatprep.mubr.bf16.mxu0 %v5683
  %5844 = vmatmul.mubr.bf16.gmra.mrb[0].mxu0 %v5682
  %v5845 = vpop.f32.mrb[0].mxu0
  %v5846 = vadd.f32 %v5797, %v5845
  %v5847 = vpop.f32.mrb[0].mxu0
  %v5848 = vpop.f32.mrb[0].mxu0
  %v5849 = vadd.f32 %v5800, %v5848
  %v5850 = vpop.f32.mrb[0].mxu0
  %5851 = vdwg.mxu0
  %5852 = vmatprep.subr.bf16.mxu0 0
  %5853 = vmatpush1.bf16.msra.mxu0 %v5564
  %5854 = vmatprep.subr.bf16.mxu0 0
  %5855 = vmatpush1.bf16.msra.mxu0 %v5565
  %5856 = vmatprep.subr.bf16.mxu0 0
  %5857 = vmatpush1.bf16.msra.mxu0 %v5566
  %5858 = vmatprep.subr.bf16.mxu0 0
  %5859 = vmatpush1.bf16.msra.mxu0 %v5567
  %5860 = vmatprep.subr.bf16.mxu0 0
  %5861 = vmatpush1.bf16.msra.mxu0 %v5568
  %5862 = vmatprep.subr.bf16.mxu0 0
  %5863 = vmatpush1.bf16.msra.mxu0 %v5569
  %5864 = vmatprep.subr.bf16.mxu0 0
  %5865 = vmatpush1.bf16.msra.mxu0 %v5570
  %5866 = vmatprep.subr.bf16.mxu0 0
  %5867 = vmatpush1.bf16.msra.mxu0 %v5571
  %5868 = vmatprep.subr.bf16.mxu0 0
  %5869 = vmatpush1.bf16.msra.mxu0 %v5572
  %5870 = vmatprep.subr.bf16.mxu0 0
  %5871 = vmatpush1.bf16.msra.mxu0 %v5573
  %5872 = vmatprep.subr.bf16.mxu0 0
  %5873 = vmatpush1.bf16.msra.mxu0 %v5574
  %5874 = vmatprep.subr.bf16.mxu0 0
  %5875 = vmatpush1.bf16.msra.mxu0 %v5575
  %5876 = vmatprep.subr.bf16.mxu0 0
  %5877 = vmatpush1.bf16.msra.mxu0 %v5576
  %5878 = vmatprep.subr.bf16.mxu0 0
  %5879 = vmatpush1.bf16.msra.mxu0 %v5577
  %5880 = vmatprep.subr.bf16.mxu0 0
  %5881 = vmatpush1.bf16.msra.mxu0 %v5578
  %5882 = vmatprep.subr.bf16.mxu0 0
  %5883 = vmatpush1.bf16.msra.mxu0 %v5579
  %5884 = vmatprep.mubr.bf16.mxu0 %v5676
  %5885 = vmatmul.mubr.bf16.gmra.mrb[0].mxu0 %v5675
  %v5886 = vpop.f32.mrb[0].mxu0
  %v5887 = vadd.f32 %v5838, %v5886
  %v5888 = vpop.f32.mrb[0].mxu0
  %v5889 = vpop.f32.mrb[0].mxu0
  %v5890 = vadd.f32 %v5841, %v5889
  %v5891 = vpop.f32.mrb[0].mxu0
  %5892 = vmatprep.mubr.bf16.mxu0 %v5685
  %5893 = vmatmul.mubr.bf16.gmra.mrb[0].mxu0 %v5684
  %v5894 = vpop.f32.mrb[0].mxu0
  %v5895 = vadd.f32 %v5846, %v5894
  %v5896 = vpop.f32.mrb[0].mxu0
  %v5897 = vpop.f32.mrb[0].mxu0
  %v5898 = vadd.f32 %v5849, %v5897
  %v5899 = vpop.f32.mrb[0].mxu0
  %5900 = vdwg.mxu0
  %5901 = vmatprep.subr.bf16.mxu0 0
  %5902 = vmatpush1.bf16.msra.mxu0 %v5580
  %5903 = vmatprep.subr.bf16.mxu0 0
  %5904 = vmatpush1.bf16.msra.mxu0 %v5581
  %5905 = vmatprep.subr.bf16.mxu0 0
  %5906 = vmatpush1.bf16.msra.mxu0 %v5582
  %5907 = vmatprep.subr.bf16.mxu0 0
  %5908 = vmatpush1.bf16.msra.mxu0 %v5583
  %5909 = vmatprep.subr.bf16.mxu0 0
  %5910 = vmatpush1.bf16.msra.mxu0 %v5584
  %5911 = vmatprep.subr.bf16.mxu0 0
  %5912 = vmatpush1.bf16.msra.mxu0 %v5585
  %5913 = vmatprep.subr.bf16.mxu0 0
  %5914 = vmatpush1.bf16.msra.mxu0 %v5586
  %5915 = vmatprep.subr.bf16.mxu0 0
  %5916 = vmatpush1.bf16.msra.mxu0 %v5587
  %5917 = vmatprep.subr.bf16.mxu0 0
  %5918 = vmatpush1.bf16.msra.mxu0 0
  %5919 = vmatprep.subr.bf16.mxu0 0
  %5920 = vmatpush1.bf16.msra.mxu0 0
  %5921 = vmatprep.subr.bf16.mxu0 0
  %5922 = vmatpush1.bf16.msra.mxu0 0
  %5923 = vmatprep.subr.bf16.mxu0 0
  %5924 = vmatpush1.bf16.msra.mxu0 0
  %5925 = vmatprep.subr.bf16.mxu0 0
  %5926 = vmatpush1.bf16.msra.mxu0 0
  %5927 = vmatprep.subr.bf16.mxu0 0
  %5928 = vmatpush1.bf16.msra.mxu0 0
  %5929 = vmatprep.subr.bf16.mxu0 0
  %5930 = vmatpush1.bf16.msra.mxu0 0
  %5931 = vmatprep.subr.bf16.mxu0 0
  %5932 = vmatpush1.bf16.msra.mxu0 0
  %5933 = vmatprep.mubr.bf16.mxu0 0
  %5934 = vmatmul.mubr.bf16.gmra.mrb[0].mxu0 %v5677
  %v5935 = vpop.f32.mrb[0].mxu0
  %v5936 = vadd.f32 %v5887, %v5935
  %v5937 = vpop.f32.mrb[0].mxu0
  %v5938 = vpop.f32.mrb[0].mxu0
  %v5939 = vadd.f32 %v5890, %v5938
  %v5940 = vpop.f32.mrb[0].mxu0
  %5941 = vmatprep.mubr.bf16.mxu0 0
  %5942 = vmatmul.mubr.bf16.gmra.mrb[0].mxu0 %v5686
  %v5943 = vpop.f32.mrb[0].mxu0
  %v5944 = vadd.f32 %v5895, %v5943
  %v5945 = vpop.f32.mrb[0].mxu0
  %v5946 = vpop.f32.mrb[0].mxu0
  %v5947 = vadd.f32 %v5898, %v5946
  %v5948 = vpop.f32.mrb[0].mxu0
  %5949 = vdwg.mxu0
  %v5950 = vld [vmem:[%s2 + $0x60] sm:$0xff]
  %v5951 = vld [vmem:[%s2 + $0x68] sm:$0xff]
  %v5952 = vld [vmem:[%s2 + $0x70] sm:$0xff]
  %v5953 = vld [vmem:[%s2 + $0x78] sm:$0xff]
  %v5954 = vld [vmem:[%s2 + $0x80] sm:$0xff]
  %v5955 = vld [vmem:[%s2 + $0x88] sm:$0xff]
  %v5956 = vld [vmem:[%s2 + $0x90] sm:$0xff]
  %v5957 = vld [vmem:[%s2 + $0x98] sm:$0xff]
  %v5958 = vld [vmem:[%s2 + $0xf8] sm:$0x1]
  %v5959 = vlaneseq
  %v5960 = vshrl.u32 %v5959, 7
  %v5961 = vsub.s32 0, %v5960
  %v5962 = vrot.slane %v5958, %v5961
  %vm5963 = vcmask 523264
  %v5965 = vsel %vm5963, %v5936, 0
  %v5968 = vsel %vm5963, %v5939, 0
  %v5971 = vsel %vm5963, %v5944, 0
  %v5974 = vsel %vm5963, %v5947, 0
  %5976 = vmatprep.subr.mxu0 0.0
  %5977 = vmatpush1.msra.mxu0 %v5950
  %5978 = vmatprep.subr.mxu0 0.0
  %5979 = vmatpush1.msra.mxu0 %v5951
  %5980 = vmatprep.subr.mxu0 0.0
  %5981 = vmatpush1.msra.mxu0 %v5952
  %5982 = vmatprep.subr.mxu0 0.0
  %5983 = vmatpush1.msra.mxu0 %v5953
  %5984 = vmatprep.subr.mxu0 0.0
  %5985 = vmatpush1.msra.mxu0 %v5954
  %5986 = vmatprep.subr.mxu0 0.0
  %5987 = vmatpush1.msra.mxu0 %v5955
  %5988 = vmatprep.subr.mxu0 0.0
  %5989 = vmatpush1.msra.mxu0 %v5956
  %5990 = vmatprep.subr.mxu0 0.0
  %5991 = vmatpush1.msra.mxu0 %v5957
  %5992 = vmatprep.subr.mxu0 0.0
  %5993 = vmatpush1.msra.mxu0 0.0
  %5994 = vmatprep.subr.mxu0 0.0
  %5995 = vmatpush1.msra.mxu0 0.0
  %5996 = vmatprep.subr.mxu0 0.0
  %5997 = vmatpush1.msra.mxu0 0.0
  %5998 = vmatprep.subr.mxu0 0.0
  %5999 = vmatpush1.msra.mxu0 0.0
  %6000 = vmatprep.subr.mxu0 0.0
  %6001 = vmatpush1.msra.mxu0 0.0
  %6002 = vmatprep.subr.mxu0 0.0
  %6003 = vmatpush1.msra.mxu0 0.0
  %6004 = vmatprep.subr.mxu0 0.0
  %6005 = vmatpush1.msra.mxu0 0.0
  %6006 = vmatprep.subr.mxu0 0.0
  %6007 = vmatpush1.msra.mxu0 0.0
  %6008 = vmatprep.subr.mxu0 0.0
  %6009 = vmatpush1.msra.mxu0 0.0
  %6010 = vmatprep.subr.mxu0 0.0
  %6011 = vmatpush1.msra.mxu0 0.0
  %6012 = vmatprep.subr.mxu0 0.0
  %6013 = vmatpush1.msra.mxu0 0.0
  %6014 = vmatprep.subr.mxu0 0.0
  %6015 = vmatpush1.msra.mxu0 0.0
  %6016 = vmatprep.subr.mxu0 0.0
  %6017 = vmatpush1.msra.mxu0 0.0
  %6018 = vmatprep.subr.mxu0 0.0
  %6019 = vmatpush1.msra.mxu0 0.0
  %6020 = vmatprep.subr.mxu0 0.0
  %6021 = vmatpush1.msra.mxu0 0.0
  %6022 = vmatprep.subr.mxu0 0.0
  %6023 = vmatpush1.msra.mxu0 0.0
  %6024 = vmatprep.subr.mxu0 0.0
  %6025 = vmatpush1.msra.mxu0 0.0
  %6026 = vmatprep.subr.mxu0 0.0
  %6027 = vmatpush1.msra.mxu0 0.0
  %6028 = vmatprep.subr.mxu0 0.0
  %6029 = vmatpush1.msra.mxu0 0.0
  %6030 = vmatprep.subr.mxu0 0.0
  %6031 = vmatpush1.msra.mxu0 0.0
  %6032 = vmatprep.subr.mxu0 0.0
  %6033 = vmatpush1.msra.mxu0 0.0
  %6034 = vmatprep.subr.mxu0 0.0
  %6035 = vmatpush1.msra.mxu0 0.0
  %6036 = vmatprep.subr.mxu0 0.0
  %6037 = vmatpush1.msra.mxu0 0.0
  %6038 = vmatprep.subr.mxu0 0.0
  %6039 = vmatpush1.msra.mxu0 0.0
  %6040 = vmatprep.mubr.f32.mxu0 0.0
  %6041 = vmatmul.mubr.f32.gmra.mrb[0].mxu0 %v5965
  %v6042 = vpop.f32.mrb[0].mxu0
  %v6043 = vadd.f32 %v5962, %v6042
  %v6044 = vpop.f32.mrb[0].mxu0
  %6045 = vmatprep.mubr.f32.mxu0 0.0
  %6046 = vmatmul.mubr.f32.gmra.mrb[0].mxu0 %v5968
  %v6047 = vpop.f32.mrb[0].mxu0
  %v6048 = vadd.f32 %v5962, %v6047
  %v6049 = vpop.f32.mrb[0].mxu0
  %6050 = vmatprep.mubr.f32.mxu0 0.0
  %6051 = vmatmul.mubr.f32.gmra.mrb[0].mxu0 %v5971
  %v6052 = vpop.f32.mrb[0].mxu0
  %v6053 = vadd.f32 %v5962, %v6052
  %v6054 = vpop.f32.mrb[0].mxu0
  %6055 = vmatprep.mubr.f32.mxu0 0.0
  %6056 = vmatmul.mubr.f32.gmra.mrb[0].mxu0 %v5974
  %v6057 = vpop.f32.mrb[0].mxu0
  %v6058 = vadd.f32 %v5962, %v6057
  %v6059 = vpop.f32.mrb[0].mxu0
  %6060 = vdwg.mxu0
  %v6061 = vmax.f32 %v6043, 0.0
  %v6062 = vmax.f32 %v6048, 0.0
  %v6063 = vmax.f32 %v6053, 0.0
  %v6064 = vmax.f32 %v6058, 0.0
  %v6065 = vld [vmem:[%s2 + $0xa0] sm:$0xff]
  %v6066 = vld [vmem:[%s2 + $0xa8] sm:$0x1]
  %v6067 = vlaneseq
  %v6068 = vshrl.u32 %v6067, 7
  %v6069 = vsub.s32 0, %v6068
  %v6070 = vrot.slane %v6065, %v6069
  %v6071 = vmul.f32 %v6061, %v6070
  %v6072 = vmul.f32 %v6062, %v6070
  %v6073 = vmul.f32 %v6063, %v6070
  %v6074 = vmul.f32 %v6064, %v6070
  %v6075 = vlaneseq
  %v6076 = vshrl.u32 %v6075, 7
  %v6077 = vsub.s32 1, %v6076
  %v6078 = vrot.slane %v6065, %v6077
  %v6079 = vmul.f32 %v6061, %v6078
  %v6080 = vmul.f32 %v6062, %v6078
  %v6081 = vmul.f32 %v6063, %v6078
  %v6082 = vmul.f32 %v6064, %v6078
  %v6083 = vlaneseq
  %v6084 = vshrl.u32 %v6083, 7
  %v6085 = vsub.s32 2, %v6084
  %v6086 = vrot.slane %v6065, %v6085
  %v6087 = vmul.f32 %v6061, %v6086
  %v6088 = vmul.f32 %v6062, %v6086
  %v6089 = vmul.f32 %v6063, %v6086
  %v6090 = vmul.f32 %v6064, %v6086
  %v6091 = vlaneseq
  %v6092 = vshrl.u32 %v6091, 7
  %v6093 = vsub.s32 3, %v6092
  %v6094 = vrot.slane %v6065, %v6093
  %v6095 = vmul.f32 %v6061, %v6094
  %v6096 = vmul.f32 %v6062, %v6094
  %v6097 = vmul.f32 %v6063, %v6094
  %v6098 = vmul.f32 %v6064, %v6094
  %v6099 = vlaneseq
  %v6100 = vshrl.u32 %v6099, 7
  %v6101 = vsub.s32 4, %v6100
  %v6102 = vrot.slane %v6065, %v6101
  %v6103 = vmul.f32 %v6061, %v6102
  %v6104 = vmul.f32 %v6062, %v6102
  %v6105 = vmul.f32 %v6063, %v6102
  %v6106 = vmul.f32 %v6064, %v6102
  %v6107 = vlaneseq
  %v6108 = vshrl.u32 %v6107, 7
  %v6109 = vsub.s32 5, %v6108
  %v6110 = vrot.slane %v6065, %v6109
  %v6111 = vmul.f32 %v6061, %v6110
  %v6112 = vmul.f32 %v6062, %v6110
  %v6113 = vmul.f32 %v6063, %v6110
  %v6114 = vmul.f32 %v6064, %v6110
  %v6115 = vlaneseq
  %v6116 = vshrl.u32 %v6115, 7
  %v6117 = vsub.s32 6, %v6116
  %v6118 = vrot.slane %v6065, %v6117
  %v6119 = vmul.f32 %v6061, %v6118
  %v6120 = vmul.f32 %v6062, %v6118
  %v6121 = vmul.f32 %v6063, %v6118
  %v6122 = vmul.f32 %v6064, %v6118
  %v6123 = vlaneseq
  %v6124 = vshrl.u32 %v6123, 7
  %v6125 = vsub.s32 7, %v6124
  %v6126 = vrot.slane %v6065, %v6125
  %v6127 = vmul.f32 %v6061, %v6126
  %v6128 = vmul.f32 %v6062, %v6126
  %v6129 = vmul.f32 %v6063, %v6126
  %v6130 = vmul.f32 %v6064, %v6126
  %v6131 = vlaneseq
  %v6132 = vshrl.u32 %v6131, 7
  %v6133 = vsub.s32 0, %v6132
  %v6134 = vrot.slane %v6066, %v6133
  %v6135 = vmul.f32 %v6061, %v6134
  %v6136 = vmul.f32 %v6062, %v6134
  %v6137 = vmul.f32 %v6063, %v6134
  %v6138 = vmul.f32 %v6064, %v6134
  %v6139 = vpack.c.bf16 %v6072, %v6071
  %v6140 = vpack.c.bf16 %v6074, %v6073
  %v6141 = vpack.c.bf16 %v6080, %v6079
  %v6142 = vpack.c.bf16 %v6082, %v6081
  %v6143 = vpack.c.bf16 %v6088, %v6087
  %v6144 = vpack.c.bf16 %v6090, %v6089
  %v6145 = vpack.c.bf16 %v6096, %v6095
  %v6146 = vpack.c.bf16 %v6098, %v6097
  %v6147 = vpack.c.bf16 %v6104, %v6103
  %v6148 = vpack.c.bf16 %v6106, %v6105
  %v6149 = vpack.c.bf16 %v6112, %v6111
  %v6150 = vpack.c.bf16 %v6114, %v6113
  %v6151 = vpack.c.bf16 %v6120, %v6119
  %v6152 = vpack.c.bf16 %v6122, %v6121
  %v6153 = vpack.c.bf16 %v6128, %v6127
  %v6154 = vpack.c.bf16 %v6130, %v6129
  %v6155 = vpack.c.bf16 %v6136, %v6135
  %v6156 = vpack.c.bf16 %v6138, %v6137
  %v6157 = vld [vmem:[%s1 + $0xb40] sm:$0xff]
  %v6158 = vld [vmem:[%s1 + $0xb48] sm:$0xf]
  %v6159 = vld [vmem:[%s2 + $0x100] sm:$0x1]
  %v6160 = vlaneseq
  %v6161 = vshrl.u32 %v6160, 7
  %v6162 = vsub.s32 0, %v6161
  %v6163 = vrot.slane %v6159, %v6162
  %v6166 = vunpack.c.l.b16 %v6157
  %v6167 = vunpack.c.h.b16 %v6157
  %v6168 = vunpack.c.l.b16 %v6158
  %v6169 = vpack.c.b16 %v6166, %v6166
  %v6170 = vpack.c.b16 %v6167, %v6167
  %v6171 = vpack.c.b16 %v6168, %v6168
  %v6175 = vsel %vm5124, %v6171, 0
  %6177 = vmatprep.subr.bf16.mxu0 0
  %6178 = vmatpush1.bf16.msra.mxu0 %v6139
  %6179 = vmatprep.subr.bf16.mxu0 0
  %6180 = vmatpush1.bf16.msra.mxu0 %v6140
  %6181 = vmatprep.subr.bf16.mxu0 0
  %6182 = vmatpush1.bf16.msra.mxu0 %v6141
  %6183 = vmatprep.subr.bf16.mxu0 0
  %6184 = vmatpush1.bf16.msra.mxu0 %v6142
  %6185 = vmatprep.subr.bf16.mxu0 0
  %6186 = vmatpush1.bf16.msra.mxu0 %v6143
  %6187 = vmatprep.subr.bf16.mxu0 0
  %6188 = vmatpush1.bf16.msra.mxu0 %v6144
  %6189 = vmatprep.subr.bf16.mxu0 0
  %6190 = vmatpush1.bf16.msra.mxu0 %v6145
  %6191 = vmatprep.subr.bf16.mxu0 0
  %6192 = vmatpush1.bf16.msra.mxu0 %v6146
  %6193 = vmatprep.subr.bf16.mxu0 0
  %6194 = vmatpush1.bf16.msra.mxu0 %v6147
  %6195 = vmatprep.subr.bf16.mxu0 0
  %6196 = vmatpush1.bf16.msra.mxu0 %v6148
  %6197 = vmatprep.subr.bf16.mxu0 0
  %6198 = vmatpush1.bf16.msra.mxu0 %v6149
  %6199 = vmatprep.subr.bf16.mxu0 0
  %6200 = vmatpush1.bf16.msra.mxu0 %v6150
  %6201 = vmatprep.subr.bf16.mxu0 0
  %6202 = vmatpush1.bf16.msra.mxu0 %v6151
  %6203 = vmatprep.subr.bf16.mxu0 0
  %6204 = vmatpush1.bf16.msra.mxu0 %v6152
  %6205 = vmatprep.subr.bf16.mxu0 0
  %6206 = vmatpush1.bf16.msra.mxu0 %v6153
  %6207 = vmatprep.subr.bf16.mxu0 0
  %6208 = vmatpush1.bf16.msra.mxu0 %v6154
  %6209 = vmatprep.mubr.bf16.mxu0 %v6170
  %6210 = vmatmul.mubr.bf16.gmra.mrb[0].mxu0 %v6169
  %v6211 = vpop.f32.mrb[0].mxu0
  %v6212 = vadd.f32 %v6163, %v6211
  %v6213 = vpop.f32.mrb[0].mxu0
  %v6214 = vpop.f32.mrb[0].mxu0
  %v6215 = vpop.f32.mrb[0].mxu0
  %6216 = vdwg.mxu0
  %6217 = vmatprep.subr.bf16.mxu0 0
  %6218 = vmatpush1.bf16.msra.mxu0 %v6155
  %6219 = vmatprep.subr.bf16.mxu0 0
  %6220 = vmatpush1.bf16.msra.mxu0 %v6156
  %6221 = vmatprep.subr.bf16.mxu0 0
  %6222 = vmatpush1.bf16.msra.mxu0 0
  %6223 = vmatprep.subr.bf16.mxu0 0
  %6224 = vmatpush1.bf16.msra.mxu0 0
  %6225 = vmatprep.subr.bf16.mxu0 0
  %6226 = vmatpush1.bf16.msra.mxu0 0
  %6227 = vmatprep.subr.bf16.mxu0 0
  %6228 = vmatpush1.bf16.msra.mxu0 0
  %6229 = vmatprep.subr.bf16.mxu0 0
  %6230 = vmatpush1.bf16.msra.mxu0 0
  %6231 = vmatprep.subr.bf16.mxu0 0
  %6232 = vmatpush1.bf16.msra.mxu0 0
  %6233 = vmatprep.subr.bf16.mxu0 0
  %6234 = vmatpush1.bf16.msra.mxu0 0
  %6235 = vmatprep.subr.bf16.mxu0 0
  %6236 = vmatpush1.bf16.msra.mxu0 0
  %6237 = vmatprep.subr.bf16.mxu0 0
  %6238 = vmatpush1.bf16.msra.mxu0 0
  %6239 = vmatprep.subr.bf16.mxu0 0
  %6240 = vmatpush1.bf16.msra.mxu0 0
  %6241 = vmatprep.subr.bf16.mxu0 0
  %6242 = vmatpush1.bf16.msra.mxu0 0
  %6243 = vmatprep.subr.bf16.mxu0 0
  %6244 = vmatpush1.bf16.msra.mxu0 0
  %6245 = vmatprep.subr.bf16.mxu0 0
  %6246 = vmatpush1.bf16.msra.mxu0 0
  %6247 = vmatprep.subr.bf16.mxu0 0
  %6248 = vmatpush1.bf16.msra.mxu0 0
  %6249 = vmatprep.mubr.bf16.mxu0 0
  %6250 = vmatmul.mubr.bf16.gmra.mrb[0].mxu0 %v6175
  %v6251 = vpop.f32.mrb[0].mxu0
  %v6252 = vadd.f32 %v6212, %v6251
  %v6253 = vpop.f32.mrb[0].mxu0
  %v6254 = vpop.f32.mrb[0].mxu0
  %v6255 = vpop.f32.mrb[0].mxu0
  %6256 = vdwg.mxu0
  %v6257 = vld [vmem:[%s2 + $0xb0] sm:$0xff]
  %v6258 = vld [vmem:[%s2 + $0xb8] sm:$0xff]
  %v6259 = vld [vmem:[%s2 + $0xc0] sm:$0xff]
  %v6260 = vld [vmem:[%s2 + $0xc8] sm:$0xff]
  %v6261 = vld [vmem:[%s2 + $0x108] sm:$0x1]
  %v6262 = vlaneseq
  %v6263 = vshrl.u32 %v6262, 7
  %v6264 = vsub.s32 0, %v6263
  %v6265 = vrot.slane %v6261, %v6264
  %v6267 = vsel %vm5124, %v6252, 0
  %6269 = vmatprep.subr.mxu0 0.0
  %6270 = vmatpush1.msra.mxu0 %v6257
  %6271 = vmatprep.subr.mxu0 0.0
  %6272 = vmatpush1.msra.mxu0 %v6258
  %6273 = vmatprep.subr.mxu0 0.0
  %6274 = vmatpush1.msra.mxu0 %v6259
  %6275 = vmatprep.subr.mxu0 0.0
  %6276 = vmatpush1.msra.mxu0 %v6260
  %6277 = vmatprep.subr.mxu0 0.0
  %6278 = vmatpush1.msra.mxu0 0.0
  %6279 = vmatprep.subr.mxu0 0.0
  %6280 = vmatpush1.msra.mxu0 0.0
  %6281 = vmatprep.subr.mxu0 0.0
  %6282 = vmatpush1.msra.mxu0 0.0
  %6283 = vmatprep.subr.mxu0 0.0
  %6284 = vmatpush1.msra.mxu0 0.0
  %6285 = vmatprep.subr.mxu0 0.0
  %6286 = vmatpush1.msra.mxu0 0.0
  %6287 = vmatprep.subr.mxu0 0.0
  %6288 = vmatpush1.msra.mxu0 0.0
  %6289 = vmatprep.subr.mxu0 0.0
  %6290 = vmatpush1.msra.mxu0 0.0
  %6291 = vmatprep.subr.mxu0 0.0
  %6292 = vmatpush1.msra.mxu0 0.0
  %6293 = vmatprep.subr.mxu0 0.0
  %6294 = vmatpush1.msra.mxu0 0.0
  %6295 = vmatprep.subr.mxu0 0.0
  %6296 = vmatpush1.msra.mxu0 0.0
  %6297 = vmatprep.subr.mxu0 0.0
  %6298 = vmatpush1.msra.mxu0 0.0
  %6299 = vmatprep.subr.mxu0 0.0
  %6300 = vmatpush1.msra.mxu0 0.0
  %6301 = vmatprep.subr.mxu0 0.0
  %6302 = vmatpush1.msra.mxu0 0.0
  %6303 = vmatprep.subr.mxu0 0.0
  %6304 = vmatpush1.msra.mxu0 0.0
  %6305 = vmatprep.subr.mxu0 0.0
  %6306 = vmatpush1.msra.mxu0 0.0
  %6307 = vmatprep.subr.mxu0 0.0
  %6308 = vmatpush1.msra.mxu0 0.0
  %6309 = vmatprep.subr.mxu0 0.0
  %6310 = vmatpush1.msra.mxu0 0.0
  %6311 = vmatprep.subr.mxu0 0.0
  %6312 = vmatpush1.msra.mxu0 0.0
  %6313 = vmatprep.subr.mxu0 0.0
  %6314 = vmatpush1.msra.mxu0 0.0
  %6315 = vmatprep.subr.mxu0 0.0
  %6316 = vmatpush1.msra.mxu0 0.0
  %6317 = vmatprep.subr.mxu0 0.0
  %6318 = vmatpush1.msra.mxu0 0.0
  %6319 = vmatprep.subr.mxu0 0.0
  %6320 = vmatpush1.msra.mxu0 0.0
  %6321 = vmatprep.subr.mxu0 0.0
  %6322 = vmatpush1.msra.mxu0 0.0
  %6323 = vmatprep.subr.mxu0 0.0
  %6324 = vmatpush1.msra.mxu0 0.0
  %6325 = vmatprep.subr.mxu0 0.0
  %6326 = vmatpush1.msra.mxu0 0.0
  %6327 = vmatprep.subr.mxu0 0.0
  %6328 = vmatpush1.msra.mxu0 0.0
  %6329 = vmatprep.subr.mxu0 0.0
  %6330 = vmatpush1.msra.mxu0 0.0
  %6331 = vmatprep.subr.mxu0 0.0
  %6332 = vmatpush1.msra.mxu0 0.0
  %6333 = vmatprep.mubr.f32.mxu0 0.0
  %6334 = vmatmul.mubr.f32.gmra.mrb[0].mxu0 %v6267
  %v6335 = vpop.f32.mrb[0].mxu0
  %v6336 = vadd.f32 %v6265, %v6335
  %v6337 = vpop.f32.mrb[0].mxu0
  %6338 = vdwg.mxu0
  %v6339 = vmax.f32 %v6336, 0.0
  %v6340 = vld [vmem:[%s2 + $0xd0] sm:$0x7f]
  %v6341 = vld [vmem:[%s2 + $0x110] sm:$0x7f]
  %6343 = vset.pattern.permute.xlu0 0
  %6344 = vperm.xlu0 %6343, %v6341
  %v6345 = vpop.permute.xlu0 %6344
  %vm6347 = vcmask 130048
  %v6349 = vsel %vm6347, %v6340, 0
  %v6352 = vsel %vm6347, %v6339, 0
  %6354 = vmatprep.subr.mxu0 0.0
  %6355 = vmatpush1.xpose.msra.mxu0 %v6352
  %6356 = vmatprep.subr.mxu0 0.0
  %6357 = vmatpush1.xpose.msra.mxu0 0.0
  %6358 = vmatprep.subr.mxu0 0.0
  %6359 = vmatpush1.xpose.msra.mxu0 0.0
  %6360 = vmatprep.subr.mxu0 0.0
  %6361 = vmatpush1.xpose.msra.mxu0 0.0
  %6362 = vmatprep.subr.mxu0 0.0
  %6363 = vmatpush1.xpose.msra.mxu0 0.0
  %6364 = vmatprep.subr.mxu0 0.0
  %6365 = vmatpush1.xpose.msra.mxu0 0.0
  %6366 = vmatprep.subr.mxu0 0.0
  %6367 = vmatpush1.xpose.msra.mxu0 0.0
  %6368 = vmatprep.subr.mxu0 0.0
  %6369 = vmatpush1.xpose.msra.mxu0 0.0
  %6370 = vmatprep.subr.mxu0 0.0
  %6371 = vmatpush1.xpose.msra.mxu0 0.0
  %6372 = vmatprep.subr.mxu0 0.0
  %6373 = vmatpush1.xpose.msra.mxu0 0.0
  %6374 = vmatprep.subr.mxu0 0.0
  %6375 = vmatpush1.xpose.msra.mxu0 0.0
  %6376 = vmatprep.subr.mxu0 0.0
  %6377 = vmatpush1.xpose.msra.mxu0 0.0
  %6378 = vmatprep.subr.mxu0 0.0
  %6379 = vmatpush1.xpose.msra.mxu0 0.0
  %6380 = vmatprep.subr.mxu0 0.0
  %6381 = vmatpush1.xpose.msra.mxu0 0.0
  %6382 = vmatprep.subr.mxu0 0.0
  %6383 = vmatpush1.xpose.msra.mxu0 0.0
  %6384 = vmatprep.subr.mxu0 0.0
  %6385 = vmatpush1.xpose.msra.mxu0 0.0
  %6386 = vmatprep.subr.mxu0 0.0
  %6387 = vmatpush1.xpose.msra.mxu0 0.0
  %6388 = vmatprep.subr.mxu0 0.0
  %6389 = vmatpush1.xpose.msra.mxu0 0.0
  %6390 = vmatprep.subr.mxu0 0.0
  %6391 = vmatpush1.xpose.msra.mxu0 0.0
  %6392 = vmatprep.subr.mxu0 0.0
  %6393 = vmatpush1.xpose.msra.mxu0 0.0
  %6394 = vmatprep.subr.mxu0 0.0
  %6395 = vmatpush1.xpose.msra.mxu0 0.0
  %6396 = vmatprep.subr.mxu0 0.0
  %6397 = vmatpush1.xpose.msra.mxu0 0.0
  %6398 = vmatprep.subr.mxu0 0.0
  %6399 = vmatpush1.xpose.msra.mxu0 0.0
  %6400 = vmatprep.subr.mxu0 0.0
  %6401 = vmatpush1.xpose.msra.mxu0 0.0
  %6402 = vmatprep.subr.mxu0 0.0
  %6403 = vmatpush1.xpose.msra.mxu0 0.0
  %6404 = vmatprep.subr.mxu0 0.0
  %6405 = vmatpush1.xpose.msra.mxu0 0.0
  %6406 = vmatprep.subr.mxu0 0.0
  %6407 = vmatpush1.xpose.msra.mxu0 0.0
  %6408 = vmatprep.subr.mxu0 0.0
  %6409 = vmatpush1.xpose.msra.mxu0 0.0
  %6410 = vmatprep.subr.mxu0 0.0
  %6411 = vmatpush1.xpose.msra.mxu0 0.0
  %6412 = vmatprep.subr.mxu0 0.0
  %6413 = vmatpush1.xpose.msra.mxu0 0.0
  %6414 = vmatprep.subr.mxu0 0.0
  %6415 = vmatpush1.xpose.msra.mxu0 0.0
  %6416 = vmatprep.subr.mxu0 0.0
  %6417 = vmatpush1.xpose.msra.mxu0 0.0
  %6418 = vmatprep.mubr.f32.mxu0 0.0
  %6419 = vmatmul.mubr.f32.gmra.mrb[0].mxu0 %v6349
  %v6420 = vpop.f32.mrb[0].mxu0
  %v6421 = vadd.f32 %v6345, %v6420
  %v6422 = vpop.f32.mrb[0].mxu0
  %6423 = vdwg.mxu0
  %vm6424 = vcmask 30720
  %6425 = vst.msk [vmem:[%s3] sm:$0x7f] %vm6424, %v6421
  %6427 = vrot.lane.b32.xlu0 %v6421, 124
  %v6428 = vpop.permute.xlu0 %6427
  %s6430 = scalar_lea.vmem %s3, 8
  %6431 = vst.msk [vmem:[%s6430] sm:$0x7f] %vm6424, %v6428
  // Predicated region
  $region14: #{forward.1} parent=0 // pred_check
    _
  $region15: #{forward.1} parent=0 // pred_check_branch
    %6433 = sbr.rel (0) target = $region17
  $region16: #{forward.1} parent=0 // pred_region
    _
  $region17: #{forward.1} parent=0 // pred_fallthru
    _
  // Predicated region
  $region18: #{forward.1} parent=0 // pred_check
    _
  $region19: #{forward.1} parent=0 // pred_check_branch
    %6435 = sbr.rel (0) target = $region21
  $region20: #{forward.1} parent=0 // pred_region
    _
  $region21: #{forward.1} parent=0 // pred_fallthru
    _

</llo_original>
